<compile_context>
chip_gen: v7x
topology: tpu7x:2x2x1
jax: 0.10.0
libtpu: 0.0.40
codegen_flags: <defaults>
</compile_context>

<pallas_src>
import numpy as np
import jax
import jax.numpy as jnp
from jax.experimental import pallas as pl
from jax.experimental.pallas import tpu as pltpu

Embedding_size = 16
M = 4                 # number of attention heads
batchsize = 16        # must equal Embedding_size (see NOTE above)
timestep = 8
num_factor = 8        # only feeds self.embedding, which is unused in forward
LN_EPS = 1e-5
SELU_ALPHA = 1.6732632423543772
SELU_SCALE = 1.0507009873554805
NEG_BIG = -1e30


def _selu(x):
    return SELU_SCALE * jnp.where(x > 0, x, SELU_ALPHA * (jnp.exp(x) - 1.0))


def _layernorm(x, gamma, beta):
    mean = jnp.mean(x, axis=-1, keepdims=True)
    var = jnp.mean((x - mean) ** 2, axis=-1, keepdims=True)
    return (x - mean) * jax.lax.rsqrt(var + LN_EPS) * gamma + beta


# -----------------------------------------------------------------------------
# Single fused kernel: QKV -> masked block-diagonal attention -> LN + residual
# -> SELU FFN -> LN + residual -> fc0 (VPU) -> fc + abs.
# Everything lives in VMEM for the whole (tiny) problem; no grid.
# -----------------------------------------------------------------------------
def encoder2_kernel(x_ref, wqkv_ref, bqkv_ref, abias_ref,
                    g11_ref, b11_ref, w1_ref, c1_ref, w2_ref, c2_ref,
                    g12_ref, b12_ref, w0_ref, b0_ref, wfc_ref, bfc_ref,
                    out_ref, mmd_ref):
    BT, E = x_ref.shape                    # (128, 16)
    n_out = w0_ref.shape[0]                # fc0 output width (== batchsize)
    dh = E // M

    x = x_ref[...]                                                         # (BT, E)

    # Fused QKV projection (dk scale already folded into the Q slice).
    qkv = jnp.dot(x, wqkv_ref[...], preferred_element_type=jnp.float32) + bqkv_ref[...]
    q = qkv[:, :E]
    k = qkv[:, E:2 * E]
    v = qkv[:, 2 * E:]

    abias = abias_ref[...]                                                 # (BT, BT) 0 / -1e30
    col_e = jax.lax.broadcasted_iota(jnp.int32, (1, E), 1)                 # lane index, hoisted

    # Multi-head attention: full-row MXU matmuls + block-diagonal softmax mask.
    att = jnp.zeros((BT, E), jnp.float32)
    for h in range(M):                                                     # static unroll, M=4
        lo = h * dh
        s = jnp.einsum('td,ud->tu', q[:, lo:lo + dh], k[:, lo:lo + dh],
                       preferred_element_type=jnp.float32)                 # (BT, BT)
        s = s + abias                                                      # mask cross-batch
        s = s - jnp.max(s, axis=-1, keepdims=True)
        p = jnp.exp(s)
        p = p * pl.reciprocal(jnp.sum(p, axis=-1, keepdims=True), approx=True)
        # head-masked full-width V: accumulating avoids a dh=4 lane concat
        vh = jnp.where((col_e >= lo) & (col_e < lo + dh), v, 0.0)          # (BT, E)
        att = att + jnp.dot(p, vh, preferred_element_type=jnp.float32)     # (BT, E)

    # LayerNorm + residual, SELU FFN, LayerNorm + residual.
    xr = _layernorm(att, g11_ref[...], b11_ref[...]) + x
    h1 = _selu(jnp.dot(xr, w1_ref[...], preferred_element_type=jnp.float32) + c1_ref[...])
    h2 = jnp.dot(h1, w2_ref[...], preferred_element_type=jnp.float32) + c2_ref[...]
    y = xr + _layernorm(h2, g12_ref[...], b12_ref[...])                    # (BT, E)

    # fc0 head on the VPU:  mmd[j] = sum_{r,e} y[r, e] * fc0_w[r*E + e, j] + b0[j]
    # w0_ref is pre-permuted to (n_out, BT, E) so each j-slice aligns with y.
    j_lane = jax.lax.broadcasted_iota(jnp.int32, (1, n_out), 1)            # hoisted
    mmd = b0_ref[...]                                                      # (1, n_out)
    for j in range(n_out):                                                 # static unroll
        prod = y * w0_ref[j]                                               # (BT, E)
        t = jnp.sum(prod, axis=-1, keepdims=True)                          # (BT, 1)
        c = jnp.sum(t, axis=0, keepdims=True)                              # (1, 1)
        mmd = mmd + jnp.where(j_lane == j, c, 0.0)                         # scatter into lane j
    mmd_ref[...] = mmd

    # final fc + abs (one tiny MXU push)
    out = jnp.dot(mmd, wfc_ref[...], preferred_element_type=jnp.float32) + bfc_ref[...]
    out_ref[...] = jnp.abs(out)


def encoder2_forward(x, params):
    B, T, E = x.shape
    BT = B * T
    n_out = params['fc0_w'].shape[1]       # == batchsize

    # ---- host-side packing (layout plumbing only) ----
    dk = 1.0 / ((E // M) ** 0.5)
    wqkv = jnp.concatenate([params['wq'] * dk, params['wk'], params['wv']], axis=1)  # (E, 3E)
    bqkv = jnp.concatenate([params['bq'] * dk, params['bk'], params['bv']], axis=1)  # (1, 3E)

    rb = jnp.arange(BT, dtype=jnp.int32) // T
    attn_bias = jnp.where(rb[:, None] == rb[None, :], 0.0, NEG_BIG).astype(jnp.float32)

    # fc0 weight permuted so that slice j matches the (BT, E) layout of y.
    w0k = params['fc0_w'].T.reshape(n_out, BT, E)                           # (n_out, BT, E)

    vmem = pl.BlockSpec(memory_space=pltpu.MemorySpace.VMEM)
    out, mmd_in = pl.pallas_call(
        encoder2_kernel,
        out_shape=(jax.ShapeDtypeStruct((1, E), jnp.float32),
                   jax.ShapeDtypeStruct((1, n_out), jnp.float32)),
        in_specs=[vmem] * 16,
        out_specs=(vmem, vmem),
    )(x.reshape(BT, E), wqkv, bqkv, attn_bias,
      params['g11'], params['beta11'],
      params['ffw1'], params['ffw1_b'],
      params['ffb1'], params['ffb1_b'],
      params['g12'], params['beta12'],
      w0k, params['fc0_b'], params['fc_w'], params['fc_b'])
    return out, mmd_in


# -----------------------------------------------------------------------------
# Deterministic parameter init (PyTorch nn.Linear-style uniform bounds).
# Weights stored as (in, out); biases as (1, out).
# -----------------------------------------------------------------------------
def init_params(key):
    E = Embedding_size
    ks = jax.random.split(key, 8)

    def lin(k, fan_in, fan_out):
        k1, k2 = jax.random.split(k)
        bound = 1.0 / np.sqrt(fan_in)
        w = jax.random.uniform(k1, (fan_in, fan_out), jnp.float32, -bound, bound)
        b = jax.random.uniform(k2, (1, fan_out), jnp.float32, -bound, bound)
        return w, b

    p = {}
    p['wq'], p['bq'] = lin(ks[0], E, E)
    p['wk'], p['bk'] = lin(ks[1], E, E)
    p['wv'], p['bv'] = lin(ks[2], E, E)
    p['ffw1'], p['ffw1_b'] = lin(ks[3], E, 4 * E)
    p['ffb1'], p['ffb1_b'] = lin(ks[4], 4 * E, E)
    p['g11'] = jnp.ones((1, E), jnp.float32)
    p['beta11'] = jnp.zeros((1, E), jnp.float32)
    p['g12'] = jnp.ones((1, E), jnp.float32)
    p['beta12'] = jnp.zeros((1, E), jnp.float32)
    N = batchsize * Embedding_size * timestep
    p['fc0_w'], p['fc0_b'] = lin(ks[5], N, batchsize)
    p['fc_w'], p['fc_b'] = lin(ks[6], E, E)
    return p


# Pure-JAX reference mirroring the PyTorch forward (for correctness check).
def reference_forward(x, params):
    B, T, E = x.shape
    dh = E // M
    q = (x @ params['wq'] + params['bq']).reshape(B, T, M, dh).transpose(0, 2, 1, 3)
    k = (x @ params['wk'] + params['bk']).reshape(B, T, M, dh).transpose(0, 2, 1, 3)
    v = (x @ params['wv'] + params['bv']).reshape(B, T, M, dh).transpose(0, 2, 1, 3)
    s = jnp.einsum('bmtd,bmsd->bmts', q, k) * (1.0 / dh ** 0.5)
    p = jax.nn.softmax(s, axis=-1)
    att = jnp.einsum('bmts,bmsd->bmtd', p, v).transpose(0, 2, 1, 3).reshape(B, T, E)
    xr = _layernorm(att, params['g11'], params['beta11']) + x
    h1 = _selu(xr @ params['ffw1'] + params['ffw1_b'])
    h2 = h1 @ params['ffb1'] + params['ffb1_b']
    y = xr + _layernorm(h2, params['g12'], params['beta12'])
    xf = y.reshape(1, -1)
    mmd = xf @ params['fc0_w'] + params['fc0_b']
    out = jnp.abs(mmd @ params['fc_w'] + params['fc_b'])
    return out, mmd


if __name__ == "__main__":
    key = jax.random.PRNGKey(0)
    pkey, xkey = jax.random.split(key)
    params = init_params(pkey)
    embedding_node = jax.random.normal(
        xkey, (batchsize, timestep, Embedding_size), jnp.float32)

    out, mmd_in = encoder2_forward(embedding_node, params)
    jax.block_until_ready((out, mmd_in))

    ref_out, ref_mmd = reference_forward(embedding_node, params)
    # slightly relaxed tolerance: softmax denom uses the EUP approx reciprocal
    np.testing.assert_allclose(np.asarray(mmd_in), np.asarray(ref_mmd),
                               rtol=3e-3, atol=3e-3)
    np.testing.assert_allclose(np.asarray(out), np.asarray(ref_out),
                               rtol=3e-3, atol=3e-3)
    print("KERNEL_OK")
</pallas_src>

<mosaic_0001>
module attributes {stable_mosaic.version = 11 : i64} {
  func.func @encoder2_kernel(%arg0: memref<128x16xf32, #tpu.memory_space<vmem>>, %arg1: memref<16x48xf32, #tpu.memory_space<vmem>>, %arg2: memref<1x48xf32, #tpu.memory_space<vmem>>, %arg3: memref<128x128xf32, #tpu.memory_space<vmem>>, %arg4: memref<1x16xf32, #tpu.memory_space<vmem>>, %arg5: memref<1x16xf32, #tpu.memory_space<vmem>>, %arg6: memref<16x64xf32, #tpu.memory_space<vmem>>, %arg7: memref<1x64xf32, #tpu.memory_space<vmem>>, %arg8: memref<64x16xf32, #tpu.memory_space<vmem>>, %arg9: memref<1x16xf32, #tpu.memory_space<vmem>>, %arg10: memref<1x16xf32, #tpu.memory_space<vmem>>, %arg11: memref<1x16xf32, #tpu.memory_space<vmem>>, %arg12: memref<16x128x16xf32, #tpu.memory_space<vmem>>, %arg13: memref<1x16xf32, #tpu.memory_space<vmem>>, %arg14: memref<16x16xf32, #tpu.memory_space<vmem>>, %arg15: memref<1x16xf32, #tpu.memory_space<vmem>>, %arg16: memref<1x16xf32, #tpu.memory_space<vmem>>, %arg17: memref<1x16xf32, #tpu.memory_space<vmem>>) attributes {dimension_semantics = [], scalar_prefetch = 0 : i64, scratch_operands = 0 : i64, tpu.core_type = #tpu.core_type<tc>} {
    %c0 = arith.constant 0 : index
    %c0_0 = arith.constant 0 : index
    %0 = vector.load %arg0[%c0, %c0_0] : memref<128x16xf32, #tpu.memory_space<vmem>>, vector<128x16xf32>
    %c0_1 = arith.constant 0 : index
    %c0_2 = arith.constant 0 : index
    %1 = vector.load %arg1[%c0_1, %c0_2] : memref<16x48xf32, #tpu.memory_space<vmem>>, vector<16x48xf32>
    %cst = arith.constant dense<0.000000e+00> : vector<128x48xf32>
    %2 = tpu.matmul %0, %1, %cst {dimension_numbers = #tpu.dot_dimension_numbers<[1], [0], [0], [1], [0, 0, 1, 1], [], []>} : vector<128x16xf32>, vector<16x48xf32>, vector<128x48xf32> -> vector<128x48xf32>
    %c0_3 = arith.constant 0 : index
    %c0_4 = arith.constant 0 : index
    %3 = vector.load %arg2[%c0_3, %c0_4] : memref<1x48xf32, #tpu.memory_space<vmem>>, vector<1x48xf32>
    %4 = vector.broadcast %3 : vector<1x48xf32> to vector<128x48xf32>
    %5 = arith.addf %2, %4 : vector<128x48xf32>
    %6 = vector.extract_strided_slice %5 {offsets = [0, 0], sizes = [128, 16], strides = [1, 1]} : vector<128x48xf32> to vector<128x16xf32>
    %7 = vector.extract_strided_slice %5 {offsets = [0, 16], sizes = [128, 16], strides = [1, 1]} : vector<128x48xf32> to vector<128x16xf32>
    %8 = vector.extract_strided_slice %5 {offsets = [0, 32], sizes = [128, 16], strides = [1, 1]} : vector<128x48xf32> to vector<128x16xf32>
    %c0_5 = arith.constant 0 : index
    %c0_6 = arith.constant 0 : index
    %9 = vector.load %arg3[%c0_5, %c0_6] : memref<128x128xf32, #tpu.memory_space<vmem>>, vector<128x128xf32>
    %10 = tpu.iota {dimensions = array<i32: 1>} : vector<1x16xi32>
    %cst_7 = arith.constant 0.000000e+00 : f32
    %11 = vector.broadcast %cst_7 : f32 to vector<128x16xf32>
    %12 = vector.extract_strided_slice %6 {offsets = [0, 0], sizes = [128, 4], strides = [1, 1]} : vector<128x16xf32> to vector<128x4xf32>
    %13 = vector.extract_strided_slice %7 {offsets = [0, 0], sizes = [128, 4], strides = [1, 1]} : vector<128x16xf32> to vector<128x4xf32>
    "tpu.trace_start"() <{level = 10 : i32, message = "td,ud->tu"}> : () -> ()
    %cst_8 = arith.constant dense<0.000000e+00> : vector<128x128xf32>
    %14 = tpu.matmul %12, %13, %cst_8 {dimension_numbers = #tpu.dot_dimension_numbers<[1], [1], [0], [0], [0, 0, 1, 0], [], []>} : vector<128x4xf32>, vector<128x4xf32>, vector<128x128xf32> -> vector<128x128xf32>
    "tpu.trace_stop"() : () -> ()
    %15 = arith.addf %14, %9 : vector<128x128xf32>
    %cst_9 = arith.constant dense<0xFF800000> : vector<128xf32>
    %16 = vector.multi_reduction <maximumf>, %15, %cst_9 [1] : vector<128x128xf32> to vector<128xf32>
    %17 = vector.shape_cast %16 : vector<128xf32> to vector<128x1xf32>
    %18 = vector.broadcast %17 : vector<128x1xf32> to vector<128x128xf32>
    %19 = arith.subf %15, %18 : vector<128x128xf32>
    %20 = math.exp %19 : vector<128x128xf32>
    %cst_10 = arith.constant dense<0.000000e+00> : vector<128xf32>
    %21 = vector.multi_reduction <add>, %20, %cst_10 [1] : vector<128x128xf32> to vector<128xf32>
    %22 = vector.shape_cast %21 : vector<128xf32> to vector<128x1xf32>
    %23 = tpu.reciprocal %22 {approx = true} : vector<128x1xf32> -> vector<128x1xf32>
    %24 = vector.broadcast %23 : vector<128x1xf32> to vector<128x128xf32>
    %25 = arith.mulf %20, %24 : vector<128x128xf32>
    %c0_i32 = arith.constant 0 : i32
    %26 = vector.broadcast %c0_i32 : i32 to vector<1x16xi32>
    %27 = arith.cmpi sge, %10, %26 : vector<1x16xi32>
    %c4_i32 = arith.constant 4 : i32
    %28 = vector.broadcast %c4_i32 : i32 to vector<1x16xi32>
    %29 = arith.cmpi slt, %10, %28 : vector<1x16xi32>
    %30 = arith.andi %27, %29 : vector<1x16xi1>
    %cst_11 = arith.constant 0.000000e+00 : f32
    %31 = vector.shape_cast %30 : vector<1x16xi1> to vector<1x16xi1>
    %32 = vector.broadcast %31 : vector<1x16xi1> to vector<128x16xi1>
    %33 = vector.broadcast %cst_11 : f32 to vector<128x16xf32>
    %34 = arith.select %32, %8, %33 : vector<128x16xi1>, vector<128x16xf32>
    %cst_12 = arith.constant dense<0.000000e+00> : vector<128x16xf32>
    %35 = tpu.matmul %25, %34, %cst_12 {dimension_numbers = #tpu.dot_dimension_numbers<[1], [0], [0], [1], [0, 0, 1, 1], [], []>} : vector<128x128xf32>, vector<128x16xf32>, vector<128x16xf32> -> vector<128x16xf32>
    %36 = arith.addf %11, %35 : vector<128x16xf32>
    %37 = vector.extract_strided_slice %6 {offsets = [0, 4], sizes = [128, 4], strides = [1, 1]} : vector<128x16xf32> to vector<128x4xf32>
    %38 = vector.extract_strided_slice %7 {offsets = [0, 4], sizes = [128, 4], strides = [1, 1]} : vector<128x16xf32> to vector<128x4xf32>
    "tpu.trace_start"() <{level = 10 : i32, message = "td,ud->tu"}> : () -> ()
    %cst_13 = arith.constant dense<0.000000e+00> : vector<128x128xf32>
    %39 = tpu.matmul %37, %38, %cst_13 {dimension_numbers = #tpu.dot_dimension_numbers<[1], [1], [0], [0], [0, 0, 1, 0], [], []>} : vector<128x4xf32>, vector<128x4xf32>, vector<128x128xf32> -> vector<128x128xf32>
    "tpu.trace_stop"() : () -> ()
    %40 = arith.addf %39, %9 : vector<128x128xf32>
    %cst_14 = arith.constant dense<0xFF800000> : vector<128xf32>
    %41 = vector.multi_reduction <maximumf>, %40, %cst_14 [1] : vector<128x128xf32> to vector<128xf32>
    %42 = vector.shape_cast %41 : vector<128xf32> to vector<128x1xf32>
    %43 = vector.broadcast %42 : vector<128x1xf32> to vector<128x128xf32>
    %44 = arith.subf %40, %43 : vector<128x128xf32>
    %45 = math.exp %44 : vector<128x128xf32>
    %cst_15 = arith.constant dense<0.000000e+00> : vector<128xf32>
    %46 = vector.multi_reduction <add>, %45, %cst_15 [1] : vector<128x128xf32> to vector<128xf32>
    %47 = vector.shape_cast %46 : vector<128xf32> to vector<128x1xf32>
    %48 = tpu.reciprocal %47 {approx = true} : vector<128x1xf32> -> vector<128x1xf32>
    %49 = vector.broadcast %48 : vector<128x1xf32> to vector<128x128xf32>
    %50 = arith.mulf %45, %49 : vector<128x128xf32>
    %c4_i32_16 = arith.constant 4 : i32
    %51 = vector.broadcast %c4_i32_16 : i32 to vector<1x16xi32>
    %52 = arith.cmpi sge, %10, %51 : vector<1x16xi32>
    %c8_i32 = arith.constant 8 : i32
    %53 = vector.broadcast %c8_i32 : i32 to vector<1x16xi32>
    %54 = arith.cmpi slt, %10, %53 : vector<1x16xi32>
    %55 = arith.andi %52, %54 : vector<1x16xi1>
    %cst_17 = arith.constant 0.000000e+00 : f32
    %56 = vector.shape_cast %55 : vector<1x16xi1> to vector<1x16xi1>
    %57 = vector.broadcast %56 : vector<1x16xi1> to vector<128x16xi1>
    %58 = vector.broadcast %cst_17 : f32 to vector<128x16xf32>
    %59 = arith.select %57, %8, %58 : vector<128x16xi1>, vector<128x16xf32>
    %cst_18 = arith.constant dense<0.000000e+00> : vector<128x16xf32>
    %60 = tpu.matmul %50, %59, %cst_18 {dimension_numbers = #tpu.dot_dimension_numbers<[1], [0], [0], [1], [0, 0, 1, 1], [], []>} : vector<128x128xf32>, vector<128x16xf32>, vector<128x16xf32> -> vector<128x16xf32>
    %61 = arith.addf %36, %60 : vector<128x16xf32>
    %62 = vector.extract_strided_slice %6 {offsets = [0, 8], sizes = [128, 4], strides = [1, 1]} : vector<128x16xf32> to vector<128x4xf32>
    %63 = vector.extract_strided_slice %7 {offsets = [0, 8], sizes = [128, 4], strides = [1, 1]} : vector<128x16xf32> to vector<128x4xf32>
    "tpu.trace_start"() <{level = 10 : i32, message = "td,ud->tu"}> : () -> ()
    %cst_19 = arith.constant dense<0.000000e+00> : vector<128x128xf32>
    %64 = tpu.matmul %62, %63, %cst_19 {dimension_numbers = #tpu.dot_dimension_numbers<[1], [1], [0], [0], [0, 0, 1, 0], [], []>} : vector<128x4xf32>, vector<128x4xf32>, vector<128x128xf32> -> vector<128x128xf32>
    "tpu.trace_stop"() : () -> ()
    %65 = arith.addf %64, %9 : vector<128x128xf32>
    %cst_20 = arith.constant dense<0xFF800000> : vector<128xf32>
    %66 = vector.multi_reduction <maximumf>, %65, %cst_20 [1] : vector<128x128xf32> to vector<128xf32>
    %67 = vector.shape_cast %66 : vector<128xf32> to vector<128x1xf32>
    %68 = vector.broadcast %67 : vector<128x1xf32> to vector<128x128xf32>
    %69 = arith.subf %65, %68 : vector<128x128xf32>
    %70 = math.exp %69 : vector<128x128xf32>
    %cst_21 = arith.constant dense<0.000000e+00> : vector<128xf32>
    %71 = vector.multi_reduction <add>, %70, %cst_21 [1] : vector<128x128xf32> to vector<128xf32>
    %72 = vector.shape_cast %71 : vector<128xf32> to vector<128x1xf32>
    %73 = tpu.reciprocal %72 {approx = true} : vector<128x1xf32> -> vector<128x1xf32>
    %74 = vector.broadcast %73 : vector<128x1xf32> to vector<128x128xf32>
    %75 = arith.mulf %70, %74 : vector<128x128xf32>
    %c8_i32_22 = arith.constant 8 : i32
    %76 = vector.broadcast %c8_i32_22 : i32 to vector<1x16xi32>
    %77 = arith.cmpi sge, %10, %76 : vector<1x16xi32>
    %c12_i32 = arith.constant 12 : i32
    %78 = vector.broadcast %c12_i32 : i32 to vector<1x16xi32>
    %79 = arith.cmpi slt, %10, %78 : vector<1x16xi32>
    %80 = arith.andi %77, %79 : vector<1x16xi1>
    %cst_23 = arith.constant 0.000000e+00 : f32
    %81 = vector.shape_cast %80 : vector<1x16xi1> to vector<1x16xi1>
    %82 = vector.broadcast %81 : vector<1x16xi1> to vector<128x16xi1>
    %83 = vector.broadcast %cst_23 : f32 to vector<128x16xf32>
    %84 = arith.select %82, %8, %83 : vector<128x16xi1>, vector<128x16xf32>
    %cst_24 = arith.constant dense<0.000000e+00> : vector<128x16xf32>
    %85 = tpu.matmul %75, %84, %cst_24 {dimension_numbers = #tpu.dot_dimension_numbers<[1], [0], [0], [1], [0, 0, 1, 1], [], []>} : vector<128x128xf32>, vector<128x16xf32>, vector<128x16xf32> -> vector<128x16xf32>
    %86 = arith.addf %61, %85 : vector<128x16xf32>
    %87 = vector.extract_strided_slice %6 {offsets = [0, 12], sizes = [128, 4], strides = [1, 1]} : vector<128x16xf32> to vector<128x4xf32>
    %88 = vector.extract_strided_slice %7 {offsets = [0, 12], sizes = [128, 4], strides = [1, 1]} : vector<128x16xf32> to vector<128x4xf32>
    "tpu.trace_start"() <{level = 10 : i32, message = "td,ud->tu"}> : () -> ()
    %cst_25 = arith.constant dense<0.000000e+00> : vector<128x128xf32>
    %89 = tpu.matmul %87, %88, %cst_25 {dimension_numbers = #tpu.dot_dimension_numbers<[1], [1], [0], [0], [0, 0, 1, 0], [], []>} : vector<128x4xf32>, vector<128x4xf32>, vector<128x128xf32> -> vector<128x128xf32>
    "tpu.trace_stop"() : () -> ()
    %90 = arith.addf %89, %9 : vector<128x128xf32>
    %cst_26 = arith.constant dense<0xFF800000> : vector<128xf32>
    %91 = vector.multi_reduction <maximumf>, %90, %cst_26 [1] : vector<128x128xf32> to vector<128xf32>
    %92 = vector.shape_cast %91 : vector<128xf32> to vector<128x1xf32>
    %93 = vector.broadcast %92 : vector<128x1xf32> to vector<128x128xf32>
    %94 = arith.subf %90, %93 : vector<128x128xf32>
    %95 = math.exp %94 : vector<128x128xf32>
    %cst_27 = arith.constant dense<0.000000e+00> : vector<128xf32>
    %96 = vector.multi_reduction <add>, %95, %cst_27 [1] : vector<128x128xf32> to vector<128xf32>
    %97 = vector.shape_cast %96 : vector<128xf32> to vector<128x1xf32>
    %98 = tpu.reciprocal %97 {approx = true} : vector<128x1xf32> -> vector<128x1xf32>
    %99 = vector.broadcast %98 : vector<128x1xf32> to vector<128x128xf32>
    %100 = arith.mulf %95, %99 : vector<128x128xf32>
    %c12_i32_28 = arith.constant 12 : i32
    %101 = vector.broadcast %c12_i32_28 : i32 to vector<1x16xi32>
    %102 = arith.cmpi sge, %10, %101 : vector<1x16xi32>
    %c16_i32 = arith.constant 16 : i32
    %103 = vector.broadcast %c16_i32 : i32 to vector<1x16xi32>
    %104 = arith.cmpi slt, %10, %103 : vector<1x16xi32>
    %105 = arith.andi %102, %104 : vector<1x16xi1>
    %cst_29 = arith.constant 0.000000e+00 : f32
    %106 = vector.shape_cast %105 : vector<1x16xi1> to vector<1x16xi1>
    %107 = vector.broadcast %106 : vector<1x16xi1> to vector<128x16xi1>
    %108 = vector.broadcast %cst_29 : f32 to vector<128x16xf32>
    %109 = arith.select %107, %8, %108 : vector<128x16xi1>, vector<128x16xf32>
    %cst_30 = arith.constant dense<0.000000e+00> : vector<128x16xf32>
    %110 = tpu.matmul %100, %109, %cst_30 {dimension_numbers = #tpu.dot_dimension_numbers<[1], [0], [0], [1], [0, 0, 1, 1], [], []>} : vector<128x128xf32>, vector<128x16xf32>, vector<128x16xf32> -> vector<128x16xf32>
    %111 = arith.addf %86, %110 : vector<128x16xf32>
    %c0_31 = arith.constant 0 : index
    %c0_32 = arith.constant 0 : index
    %112 = vector.load %arg4[%c0_31, %c0_32] : memref<1x16xf32, #tpu.memory_space<vmem>>, vector<1x16xf32>
    %c0_33 = arith.constant 0 : index
    %c0_34 = arith.constant 0 : index
    %113 = vector.load %arg5[%c0_33, %c0_34] : memref<1x16xf32, #tpu.memory_space<vmem>>, vector<1x16xf32>
    %cst_35 = arith.constant dense<0.000000e+00> : vector<128xf32>
    %114 = vector.multi_reduction <add>, %111, %cst_35 [1] : vector<128x16xf32> to vector<128xf32>
    %115 = vector.shape_cast %114 : vector<128xf32> to vector<128x1xf32>
    %cst_36 = arith.constant 1.600000e+01 : f32
    %116 = vector.broadcast %cst_36 : f32 to vector<128x1xf32>
    %117 = arith.divf %115, %116 : vector<128x1xf32>
    %118 = vector.broadcast %117 : vector<128x1xf32> to vector<128x16xf32>
    %119 = arith.subf %111, %118 : vector<128x16xf32>
    %120 = arith.mulf %119, %119 : vector<128x16xf32>
    %cst_37 = arith.constant dense<0.000000e+00> : vector<128xf32>
    %121 = vector.multi_reduction <add>, %120, %cst_37 [1] : vector<128x16xf32> to vector<128xf32>
    %122 = vector.shape_cast %121 : vector<128xf32> to vector<128x1xf32>
    %cst_38 = arith.constant 1.600000e+01 : f32
    %123 = vector.broadcast %cst_38 : f32 to vector<128x1xf32>
    %124 = arith.divf %122, %123 : vector<128x1xf32>
    %125 = vector.broadcast %117 : vector<128x1xf32> to vector<128x16xf32>
    %126 = arith.subf %111, %125 : vector<128x16xf32>
    %cst_39 = arith.constant 9.99999974E-6 : f32
    %127 = vector.broadcast %cst_39 : f32 to vector<128x1xf32>
    %128 = arith.addf %124, %127 : vector<128x1xf32>
    %129 = math.rsqrt %128 : vector<128x1xf32>
    %130 = vector.broadcast %129 : vector<128x1xf32> to vector<128x16xf32>
    %131 = arith.mulf %126, %130 : vector<128x16xf32>
    %132 = vector.broadcast %112 : vector<1x16xf32> to vector<128x16xf32>
    %133 = arith.mulf %131, %132 : vector<128x16xf32>
    %134 = vector.broadcast %113 : vector<1x16xf32> to vector<128x16xf32>
    %135 = arith.addf %133, %134 : vector<128x16xf32>
    %136 = arith.addf %135, %0 : vector<128x16xf32>
    %c0_40 = arith.constant 0 : index
    %c0_41 = arith.constant 0 : index
    %137 = vector.load %arg6[%c0_40, %c0_41] : memref<16x64xf32, #tpu.memory_space<vmem>>, vector<16x64xf32>
    %cst_42 = arith.constant dense<0.000000e+00> : vector<128x64xf32>
    %138 = tpu.matmul %136, %137, %cst_42 {dimension_numbers = #tpu.dot_dimension_numbers<[1], [0], [0], [1], [0, 0, 1, 1], [], []>} : vector<128x16xf32>, vector<16x64xf32>, vector<128x64xf32> -> vector<128x64xf32>
    %c0_43 = arith.constant 0 : index
    %c0_44 = arith.constant 0 : index
    %139 = vector.load %arg7[%c0_43, %c0_44] : memref<1x64xf32, #tpu.memory_space<vmem>>, vector<1x64xf32>
    %140 = vector.broadcast %139 : vector<1x64xf32> to vector<128x64xf32>
    %141 = arith.addf %138, %140 : vector<128x64xf32>
    %cst_45 = arith.constant 0.000000e+00 : f32
    %142 = vector.broadcast %cst_45 : f32 to vector<128x64xf32>
    %143 = arith.cmpf ogt, %141, %142 : vector<128x64xf32>
    %144 = math.exp %141 : vector<128x64xf32>
    %cst_46 = arith.constant 1.000000e+00 : f32
    %145 = vector.broadcast %cst_46 : f32 to vector<128x64xf32>
    %146 = arith.subf %144, %145 : vector<128x64xf32>
    %cst_47 = arith.constant 1.67326319 : f32
    %147 = vector.broadcast %cst_47 : f32 to vector<128x64xf32>
    %148 = arith.mulf %147, %146 : vector<128x64xf32>
    %149 = arith.select %143, %141, %148 : vector<128x64xi1>, vector<128x64xf32>
    %cst_48 = arith.constant 1.05070102 : f32
    %150 = vector.broadcast %cst_48 : f32 to vector<128x64xf32>
    %151 = arith.mulf %150, %149 : vector<128x64xf32>
    %c0_49 = arith.constant 0 : index
    %c0_50 = arith.constant 0 : index
    %152 = vector.load %arg8[%c0_49, %c0_50] : memref<64x16xf32, #tpu.memory_space<vmem>>, vector<64x16xf32>
    %cst_51 = arith.constant dense<0.000000e+00> : vector<128x16xf32>
    %153 = tpu.matmul %151, %152, %cst_51 {dimension_numbers = #tpu.dot_dimension_numbers<[1], [0], [0], [1], [0, 0, 1, 1], [], []>} : vector<128x64xf32>, vector<64x16xf32>, vector<128x16xf32> -> vector<128x16xf32>
    %c0_52 = arith.constant 0 : index
    %c0_53 = arith.constant 0 : index
    %154 = vector.load %arg9[%c0_52, %c0_53] : memref<1x16xf32, #tpu.memory_space<vmem>>, vector<1x16xf32>
    %155 = vector.broadcast %154 : vector<1x16xf32> to vector<128x16xf32>
    %156 = arith.addf %153, %155 : vector<128x16xf32>
    %c0_54 = arith.constant 0 : index
    %c0_55 = arith.constant 0 : index
    %157 = vector.load %arg10[%c0_54, %c0_55] : memref<1x16xf32, #tpu.memory_space<vmem>>, vector<1x16xf32>
    %c0_56 = arith.constant 0 : index
    %c0_57 = arith.constant 0 : index
    %158 = vector.load %arg11[%c0_56, %c0_57] : memref<1x16xf32, #tpu.memory_space<vmem>>, vector<1x16xf32>
    %cst_58 = arith.constant dense<0.000000e+00> : vector<128xf32>
    %159 = vector.multi_reduction <add>, %156, %cst_58 [1] : vector<128x16xf32> to vector<128xf32>
    %160 = vector.shape_cast %159 : vector<128xf32> to vector<128x1xf32>
    %cst_59 = arith.constant 1.600000e+01 : f32
    %161 = vector.broadcast %cst_59 : f32 to vector<128x1xf32>
    %162 = arith.divf %160, %161 : vector<128x1xf32>
    %163 = vector.broadcast %162 : vector<128x1xf32> to vector<128x16xf32>
    %164 = arith.subf %156, %163 : vector<128x16xf32>
    %165 = arith.mulf %164, %164 : vector<128x16xf32>
    %cst_60 = arith.constant dense<0.000000e+00> : vector<128xf32>
    %166 = vector.multi_reduction <add>, %165, %cst_60 [1] : vector<128x16xf32> to vector<128xf32>
    %167 = vector.shape_cast %166 : vector<128xf32> to vector<128x1xf32>
    %cst_61 = arith.constant 1.600000e+01 : f32
    %168 = vector.broadcast %cst_61 : f32 to vector<128x1xf32>
    %169 = arith.divf %167, %168 : vector<128x1xf32>
    %170 = vector.broadcast %162 : vector<128x1xf32> to vector<128x16xf32>
    %171 = arith.subf %156, %170 : vector<128x16xf32>
    %cst_62 = arith.constant 9.99999974E-6 : f32
    %172 = vector.broadcast %cst_62 : f32 to vector<128x1xf32>
    %173 = arith.addf %169, %172 : vector<128x1xf32>
    %174 = math.rsqrt %173 : vector<128x1xf32>
    %175 = vector.broadcast %174 : vector<128x1xf32> to vector<128x16xf32>
    %176 = arith.mulf %171, %175 : vector<128x16xf32>
    %177 = vector.broadcast %157 : vector<1x16xf32> to vector<128x16xf32>
    %178 = arith.mulf %176, %177 : vector<128x16xf32>
    %179 = vector.broadcast %158 : vector<1x16xf32> to vector<128x16xf32>
    %180 = arith.addf %178, %179 : vector<128x16xf32>
    %181 = arith.addf %136, %180 : vector<128x16xf32>
    %182 = tpu.iota {dimensions = array<i32: 1>} : vector<1x16xi32>
    %c0_63 = arith.constant 0 : index
    %c0_64 = arith.constant 0 : index
    %183 = vector.load %arg13[%c0_63, %c0_64] : memref<1x16xf32, #tpu.memory_space<vmem>>, vector<1x16xf32>
    %c0_65 = arith.constant 0 : index
    %c0_66 = arith.constant 0 : index
    %c0_67 = arith.constant 0 : index
    %184 = vector.load %arg12[%c0_65, %c0_66, %c0_67] : memref<16x128x16xf32, #tpu.memory_space<vmem>>, vector<1x128x16xf32>
    %185 = vector.shape_cast %184 : vector<1x128x16xf32> to vector<128x16xf32>
    %186 = arith.mulf %181, %185 : vector<128x16xf32>
    %cst_68 = arith.constant dense<0.000000e+00> : vector<128xf32>
    %187 = vector.multi_reduction <add>, %186, %cst_68 [1] : vector<128x16xf32> to vector<128xf32>
    %188 = vector.shape_cast %187 : vector<128xf32> to vector<128x1xf32>
    %cst_69 = arith.constant dense<0.000000e+00> : vector<1xf32>
    %189 = vector.multi_reduction <add>, %188, %cst_69 [0] : vector<128x1xf32> to vector<1xf32>
    %190 = vector.shape_cast %189 : vector<1xf32> to vector<1x1xf32>
    %c0_i32_70 = arith.constant 0 : i32
    %191 = vector.broadcast %c0_i32_70 : i32 to vector<1x16xi32>
    %192 = arith.cmpi eq, %182, %191 : vector<1x16xi32>
    %cst_71 = arith.constant 0.000000e+00 : f32
    %193 = vector.shape_cast %190 : vector<1x1xf32> to vector<1x1xf32>
    %194 = vector.broadcast %193 : vector<1x1xf32> to vector<1x16xf32>
    %195 = vector.broadcast %cst_71 : f32 to vector<1x16xf32>
    %196 = arith.select %192, %194, %195 : vector<1x16xi1>, vector<1x16xf32>
    %197 = arith.addf %183, %196 : vector<1x16xf32>
    %c1 = arith.constant 1 : index
    %c0_72 = arith.constant 0 : index
    %c0_73 = arith.constant 0 : index
    %198 = vector.load %arg12[%c1, %c0_72, %c0_73] : memref<16x128x16xf32, #tpu.memory_space<vmem>>, vector<1x128x16xf32>
    %199 = vector.shape_cast %198 : vector<1x128x16xf32> to vector<128x16xf32>
    %200 = arith.mulf %181, %199 : vector<128x16xf32>
    %cst_74 = arith.constant dense<0.000000e+00> : vector<128xf32>
    %201 = vector.multi_reduction <add>, %200, %cst_74 [1] : vector<128x16xf32> to vector<128xf32>
    %202 = vector.shape_cast %201 : vector<128xf32> to vector<128x1xf32>
    %cst_75 = arith.constant dense<0.000000e+00> : vector<1xf32>
    %203 = vector.multi_reduction <add>, %202, %cst_75 [0] : vector<128x1xf32> to vector<1xf32>
    %204 = vector.shape_cast %203 : vector<1xf32> to vector<1x1xf32>
    %c1_i32 = arith.constant 1 : i32
    %205 = vector.broadcast %c1_i32 : i32 to vector<1x16xi32>
    %206 = arith.cmpi eq, %182, %205 : vector<1x16xi32>
    %cst_76 = arith.constant 0.000000e+00 : f32
    %207 = vector.shape_cast %204 : vector<1x1xf32> to vector<1x1xf32>
    %208 = vector.broadcast %207 : vector<1x1xf32> to vector<1x16xf32>
    %209 = vector.broadcast %cst_76 : f32 to vector<1x16xf32>
    %210 = arith.select %206, %208, %209 : vector<1x16xi1>, vector<1x16xf32>
    %211 = arith.addf %197, %210 : vector<1x16xf32>
    %c2 = arith.constant 2 : index
    %c0_77 = arith.constant 0 : index
    %c0_78 = arith.constant 0 : index
    %212 = vector.load %arg12[%c2, %c0_77, %c0_78] : memref<16x128x16xf32, #tpu.memory_space<vmem>>, vector<1x128x16xf32>
    %213 = vector.shape_cast %212 : vector<1x128x16xf32> to vector<128x16xf32>
    %214 = arith.mulf %181, %213 : vector<128x16xf32>
    %cst_79 = arith.constant dense<0.000000e+00> : vector<128xf32>
    %215 = vector.multi_reduction <add>, %214, %cst_79 [1] : vector<128x16xf32> to vector<128xf32>
    %216 = vector.shape_cast %215 : vector<128xf32> to vector<128x1xf32>
    %cst_80 = arith.constant dense<0.000000e+00> : vector<1xf32>
    %217 = vector.multi_reduction <add>, %216, %cst_80 [0] : vector<128x1xf32> to vector<1xf32>
    %218 = vector.shape_cast %217 : vector<1xf32> to vector<1x1xf32>
    %c2_i32 = arith.constant 2 : i32
    %219 = vector.broadcast %c2_i32 : i32 to vector<1x16xi32>
    %220 = arith.cmpi eq, %182, %219 : vector<1x16xi32>
    %cst_81 = arith.constant 0.000000e+00 : f32
    %221 = vector.shape_cast %218 : vector<1x1xf32> to vector<1x1xf32>
    %222 = vector.broadcast %221 : vector<1x1xf32> to vector<1x16xf32>
    %223 = vector.broadcast %cst_81 : f32 to vector<1x16xf32>
    %224 = arith.select %220, %222, %223 : vector<1x16xi1>, vector<1x16xf32>
    %225 = arith.addf %211, %224 : vector<1x16xf32>
    %c3 = arith.constant 3 : index
    %c0_82 = arith.constant 0 : index
    %c0_83 = arith.constant 0 : index
    %226 = vector.load %arg12[%c3, %c0_82, %c0_83] : memref<16x128x16xf32, #tpu.memory_space<vmem>>, vector<1x128x16xf32>
    %227 = vector.shape_cast %226 : vector<1x128x16xf32> to vector<128x16xf32>
    %228 = arith.mulf %181, %227 : vector<128x16xf32>
    %cst_84 = arith.constant dense<0.000000e+00> : vector<128xf32>
    %229 = vector.multi_reduction <add>, %228, %cst_84 [1] : vector<128x16xf32> to vector<128xf32>
    %230 = vector.shape_cast %229 : vector<128xf32> to vector<128x1xf32>
    %cst_85 = arith.constant dense<0.000000e+00> : vector<1xf32>
    %231 = vector.multi_reduction <add>, %230, %cst_85 [0] : vector<128x1xf32> to vector<1xf32>
    %232 = vector.shape_cast %231 : vector<1xf32> to vector<1x1xf32>
    %c3_i32 = arith.constant 3 : i32
    %233 = vector.broadcast %c3_i32 : i32 to vector<1x16xi32>
    %234 = arith.cmpi eq, %182, %233 : vector<1x16xi32>
    %cst_86 = arith.constant 0.000000e+00 : f32
    %235 = vector.shape_cast %232 : vector<1x1xf32> to vector<1x1xf32>
    %236 = vector.broadcast %235 : vector<1x1xf32> to vector<1x16xf32>
    %237 = vector.broadcast %cst_86 : f32 to vector<1x16xf32>
    %238 = arith.select %234, %236, %237 : vector<1x16xi1>, vector<1x16xf32>
    %239 = arith.addf %225, %238 : vector<1x16xf32>
    %c4 = arith.constant 4 : index
    %c0_87 = arith.constant 0 : index
    %c0_88 = arith.constant 0 : index
    %240 = vector.load %arg12[%c4, %c0_87, %c0_88] : memref<16x128x16xf32, #tpu.memory_space<vmem>>, vector<1x128x16xf32>
    %241 = vector.shape_cast %240 : vector<1x128x16xf32> to vector<128x16xf32>
    %242 = arith.mulf %181, %241 : vector<128x16xf32>
    %cst_89 = arith.constant dense<0.000000e+00> : vector<128xf32>
    %243 = vector.multi_reduction <add>, %242, %cst_89 [1] : vector<128x16xf32> to vector<128xf32>
    %244 = vector.shape_cast %243 : vector<128xf32> to vector<128x1xf32>
    %cst_90 = arith.constant dense<0.000000e+00> : vector<1xf32>
    %245 = vector.multi_reduction <add>, %244, %cst_90 [0] : vector<128x1xf32> to vector<1xf32>
    %246 = vector.shape_cast %245 : vector<1xf32> to vector<1x1xf32>
    %c4_i32_91 = arith.constant 4 : i32
    %247 = vector.broadcast %c4_i32_91 : i32 to vector<1x16xi32>
    %248 = arith.cmpi eq, %182, %247 : vector<1x16xi32>
    %cst_92 = arith.constant 0.000000e+00 : f32
    %249 = vector.shape_cast %246 : vector<1x1xf32> to vector<1x1xf32>
    %250 = vector.broadcast %249 : vector<1x1xf32> to vector<1x16xf32>
    %251 = vector.broadcast %cst_92 : f32 to vector<1x16xf32>
    %252 = arith.select %248, %250, %251 : vector<1x16xi1>, vector<1x16xf32>
    %253 = arith.addf %239, %252 : vector<1x16xf32>
    %c5 = arith.constant 5 : index
    %c0_93 = arith.constant 0 : index
    %c0_94 = arith.constant 0 : index
    %254 = vector.load %arg12[%c5, %c0_93, %c0_94] : memref<16x128x16xf32, #tpu.memory_space<vmem>>, vector<1x128x16xf32>
    %255 = vector.shape_cast %254 : vector<1x128x16xf32> to vector<128x16xf32>
    %256 = arith.mulf %181, %255 : vector<128x16xf32>
    %cst_95 = arith.constant dense<0.000000e+00> : vector<128xf32>
    %257 = vector.multi_reduction <add>, %256, %cst_95 [1] : vector<128x16xf32> to vector<128xf32>
    %258 = vector.shape_cast %257 : vector<128xf32> to vector<128x1xf32>
    %cst_96 = arith.constant dense<0.000000e+00> : vector<1xf32>
    %259 = vector.multi_reduction <add>, %258, %cst_96 [0] : vector<128x1xf32> to vector<1xf32>
    %260 = vector.shape_cast %259 : vector<1xf32> to vector<1x1xf32>
    %c5_i32 = arith.constant 5 : i32
    %261 = vector.broadcast %c5_i32 : i32 to vector<1x16xi32>
    %262 = arith.cmpi eq, %182, %261 : vector<1x16xi32>
    %cst_97 = arith.constant 0.000000e+00 : f32
    %263 = vector.shape_cast %260 : vector<1x1xf32> to vector<1x1xf32>
    %264 = vector.broadcast %263 : vector<1x1xf32> to vector<1x16xf32>
    %265 = vector.broadcast %cst_97 : f32 to vector<1x16xf32>
    %266 = arith.select %262, %264, %265 : vector<1x16xi1>, vector<1x16xf32>
    %267 = arith.addf %253, %266 : vector<1x16xf32>
    %c6 = arith.constant 6 : index
    %c0_98 = arith.constant 0 : index
    %c0_99 = arith.constant 0 : index
    %268 = vector.load %arg12[%c6, %c0_98, %c0_99] : memref<16x128x16xf32, #tpu.memory_space<vmem>>, vector<1x128x16xf32>
    %269 = vector.shape_cast %268 : vector<1x128x16xf32> to vector<128x16xf32>
    %270 = arith.mulf %181, %269 : vector<128x16xf32>
    %cst_100 = arith.constant dense<0.000000e+00> : vector<128xf32>
    %271 = vector.multi_reduction <add>, %270, %cst_100 [1] : vector<128x16xf32> to vector<128xf32>
    %272 = vector.shape_cast %271 : vector<128xf32> to vector<128x1xf32>
    %cst_101 = arith.constant dense<0.000000e+00> : vector<1xf32>
    %273 = vector.multi_reduction <add>, %272, %cst_101 [0] : vector<128x1xf32> to vector<1xf32>
    %274 = vector.shape_cast %273 : vector<1xf32> to vector<1x1xf32>
    %c6_i32 = arith.constant 6 : i32
    %275 = vector.broadcast %c6_i32 : i32 to vector<1x16xi32>
    %276 = arith.cmpi eq, %182, %275 : vector<1x16xi32>
    %cst_102 = arith.constant 0.000000e+00 : f32
    %277 = vector.shape_cast %274 : vector<1x1xf32> to vector<1x1xf32>
    %278 = vector.broadcast %277 : vector<1x1xf32> to vector<1x16xf32>
    %279 = vector.broadcast %cst_102 : f32 to vector<1x16xf32>
    %280 = arith.select %276, %278, %279 : vector<1x16xi1>, vector<1x16xf32>
    %281 = arith.addf %267, %280 : vector<1x16xf32>
    %c7 = arith.constant 7 : index
    %c0_103 = arith.constant 0 : index
    %c0_104 = arith.constant 0 : index
    %282 = vector.load %arg12[%c7, %c0_103, %c0_104] : memref<16x128x16xf32, #tpu.memory_space<vmem>>, vector<1x128x16xf32>
    %283 = vector.shape_cast %282 : vector<1x128x16xf32> to vector<128x16xf32>
    %284 = arith.mulf %181, %283 : vector<128x16xf32>
    %cst_105 = arith.constant dense<0.000000e+00> : vector<128xf32>
    %285 = vector.multi_reduction <add>, %284, %cst_105 [1] : vector<128x16xf32> to vector<128xf32>
    %286 = vector.shape_cast %285 : vector<128xf32> to vector<128x1xf32>
    %cst_106 = arith.constant dense<0.000000e+00> : vector<1xf32>
    %287 = vector.multi_reduction <add>, %286, %cst_106 [0] : vector<128x1xf32> to vector<1xf32>
    %288 = vector.shape_cast %287 : vector<1xf32> to vector<1x1xf32>
    %c7_i32 = arith.constant 7 : i32
    %289 = vector.broadcast %c7_i32 : i32 to vector<1x16xi32>
    %290 = arith.cmpi eq, %182, %289 : vector<1x16xi32>
    %cst_107 = arith.constant 0.000000e+00 : f32
    %291 = vector.shape_cast %288 : vector<1x1xf32> to vector<1x1xf32>
    %292 = vector.broadcast %291 : vector<1x1xf32> to vector<1x16xf32>
    %293 = vector.broadcast %cst_107 : f32 to vector<1x16xf32>
    %294 = arith.select %290, %292, %293 : vector<1x16xi1>, vector<1x16xf32>
    %295 = arith.addf %281, %294 : vector<1x16xf32>
    %c8 = arith.constant 8 : index
    %c0_108 = arith.constant 0 : index
    %c0_109 = arith.constant 0 : index
    %296 = vector.load %arg12[%c8, %c0_108, %c0_109] : memref<16x128x16xf32, #tpu.memory_space<vmem>>, vector<1x128x16xf32>
    %297 = vector.shape_cast %296 : vector<1x128x16xf32> to vector<128x16xf32>
    %298 = arith.mulf %181, %297 : vector<128x16xf32>
    %cst_110 = arith.constant dense<0.000000e+00> : vector<128xf32>
    %299 = vector.multi_reduction <add>, %298, %cst_110 [1] : vector<128x16xf32> to vector<128xf32>
    %300 = vector.shape_cast %299 : vector<128xf32> to vector<128x1xf32>
    %cst_111 = arith.constant dense<0.000000e+00> : vector<1xf32>
    %301 = vector.multi_reduction <add>, %300, %cst_111 [0] : vector<128x1xf32> to vector<1xf32>
    %302 = vector.shape_cast %301 : vector<1xf32> to vector<1x1xf32>
    %c8_i32_112 = arith.constant 8 : i32
    %303 = vector.broadcast %c8_i32_112 : i32 to vector<1x16xi32>
    %304 = arith.cmpi eq, %182, %303 : vector<1x16xi32>
    %cst_113 = arith.constant 0.000000e+00 : f32
    %305 = vector.shape_cast %302 : vector<1x1xf32> to vector<1x1xf32>
    %306 = vector.broadcast %305 : vector<1x1xf32> to vector<1x16xf32>
    %307 = vector.broadcast %cst_113 : f32 to vector<1x16xf32>
    %308 = arith.select %304, %306, %307 : vector<1x16xi1>, vector<1x16xf32>
    %309 = arith.addf %295, %308 : vector<1x16xf32>
    %c9 = arith.constant 9 : index
    %c0_114 = arith.constant 0 : index
    %c0_115 = arith.constant 0 : index
    %310 = vector.load %arg12[%c9, %c0_114, %c0_115] : memref<16x128x16xf32, #tpu.memory_space<vmem>>, vector<1x128x16xf32>
    %311 = vector.shape_cast %310 : vector<1x128x16xf32> to vector<128x16xf32>
    %312 = arith.mulf %181, %311 : vector<128x16xf32>
    %cst_116 = arith.constant dense<0.000000e+00> : vector<128xf32>
    %313 = vector.multi_reduction <add>, %312, %cst_116 [1] : vector<128x16xf32> to vector<128xf32>
    %314 = vector.shape_cast %313 : vector<128xf32> to vector<128x1xf32>
    %cst_117 = arith.constant dense<0.000000e+00> : vector<1xf32>
    %315 = vector.multi_reduction <add>, %314, %cst_117 [0] : vector<128x1xf32> to vector<1xf32>
    %316 = vector.shape_cast %315 : vector<1xf32> to vector<1x1xf32>
    %c9_i32 = arith.constant 9 : i32
    %317 = vector.broadcast %c9_i32 : i32 to vector<1x16xi32>
    %318 = arith.cmpi eq, %182, %317 : vector<1x16xi32>
    %cst_118 = arith.constant 0.000000e+00 : f32
    %319 = vector.shape_cast %316 : vector<1x1xf32> to vector<1x1xf32>
    %320 = vector.broadcast %319 : vector<1x1xf32> to vector<1x16xf32>
    %321 = vector.broadcast %cst_118 : f32 to vector<1x16xf32>
    %322 = arith.select %318, %320, %321 : vector<1x16xi1>, vector<1x16xf32>
    %323 = arith.addf %309, %322 : vector<1x16xf32>
    %c10 = arith.constant 10 : index
    %c0_119 = arith.constant 0 : index
    %c0_120 = arith.constant 0 : index
    %324 = vector.load %arg12[%c10, %c0_119, %c0_120] : memref<16x128x16xf32, #tpu.memory_space<vmem>>, vector<1x128x16xf32>
    %325 = vector.shape_cast %324 : vector<1x128x16xf32> to vector<128x16xf32>
    %326 = arith.mulf %181, %325 : vector<128x16xf32>
    %cst_121 = arith.constant dense<0.000000e+00> : vector<128xf32>
    %327 = vector.multi_reduction <add>, %326, %cst_121 [1] : vector<128x16xf32> to vector<128xf32>
    %328 = vector.shape_cast %327 : vector<128xf32> to vector<128x1xf32>
    %cst_122 = arith.constant dense<0.000000e+00> : vector<1xf32>
    %329 = vector.multi_reduction <add>, %328, %cst_122 [0] : vector<128x1xf32> to vector<1xf32>
    %330 = vector.shape_cast %329 : vector<1xf32> to vector<1x1xf32>
    %c10_i32 = arith.constant 10 : i32
    %331 = vector.broadcast %c10_i32 : i32 to vector<1x16xi32>
    %332 = arith.cmpi eq, %182, %331 : vector<1x16xi32>
    %cst_123 = arith.constant 0.000000e+00 : f32
    %333 = vector.shape_cast %330 : vector<1x1xf32> to vector<1x1xf32>
    %334 = vector.broadcast %333 : vector<1x1xf32> to vector<1x16xf32>
    %335 = vector.broadcast %cst_123 : f32 to vector<1x16xf32>
    %336 = arith.select %332, %334, %335 : vector<1x16xi1>, vector<1x16xf32>
    %337 = arith.addf %323, %336 : vector<1x16xf32>
    %c11 = arith.constant 11 : index
    %c0_124 = arith.constant 0 : index
    %c0_125 = arith.constant 0 : index
    %338 = vector.load %arg12[%c11, %c0_124, %c0_125] : memref<16x128x16xf32, #tpu.memory_space<vmem>>, vector<1x128x16xf32>
    %339 = vector.shape_cast %338 : vector<1x128x16xf32> to vector<128x16xf32>
    %340 = arith.mulf %181, %339 : vector<128x16xf32>
    %cst_126 = arith.constant dense<0.000000e+00> : vector<128xf32>
    %341 = vector.multi_reduction <add>, %340, %cst_126 [1] : vector<128x16xf32> to vector<128xf32>
    %342 = vector.shape_cast %341 : vector<128xf32> to vector<128x1xf32>
    %cst_127 = arith.constant dense<0.000000e+00> : vector<1xf32>
    %343 = vector.multi_reduction <add>, %342, %cst_127 [0] : vector<128x1xf32> to vector<1xf32>
    %344 = vector.shape_cast %343 : vector<1xf32> to vector<1x1xf32>
    %c11_i32 = arith.constant 11 : i32
    %345 = vector.broadcast %c11_i32 : i32 to vector<1x16xi32>
    %346 = arith.cmpi eq, %182, %345 : vector<1x16xi32>
    %cst_128 = arith.constant 0.000000e+00 : f32
    %347 = vector.shape_cast %344 : vector<1x1xf32> to vector<1x1xf32>
    %348 = vector.broadcast %347 : vector<1x1xf32> to vector<1x16xf32>
    %349 = vector.broadcast %cst_128 : f32 to vector<1x16xf32>
    %350 = arith.select %346, %348, %349 : vector<1x16xi1>, vector<1x16xf32>
    %351 = arith.addf %337, %350 : vector<1x16xf32>
    %c12 = arith.constant 12 : index
    %c0_129 = arith.constant 0 : index
    %c0_130 = arith.constant 0 : index
    %352 = vector.load %arg12[%c12, %c0_129, %c0_130] : memref<16x128x16xf32, #tpu.memory_space<vmem>>, vector<1x128x16xf32>
    %353 = vector.shape_cast %352 : vector<1x128x16xf32> to vector<128x16xf32>
    %354 = arith.mulf %181, %353 : vector<128x16xf32>
    %cst_131 = arith.constant dense<0.000000e+00> : vector<128xf32>
    %355 = vector.multi_reduction <add>, %354, %cst_131 [1] : vector<128x16xf32> to vector<128xf32>
    %356 = vector.shape_cast %355 : vector<128xf32> to vector<128x1xf32>
    %cst_132 = arith.constant dense<0.000000e+00> : vector<1xf32>
    %357 = vector.multi_reduction <add>, %356, %cst_132 [0] : vector<128x1xf32> to vector<1xf32>
    %358 = vector.shape_cast %357 : vector<1xf32> to vector<1x1xf32>
    %c12_i32_133 = arith.constant 12 : i32
    %359 = vector.broadcast %c12_i32_133 : i32 to vector<1x16xi32>
    %360 = arith.cmpi eq, %182, %359 : vector<1x16xi32>
    %cst_134 = arith.constant 0.000000e+00 : f32
    %361 = vector.shape_cast %358 : vector<1x1xf32> to vector<1x1xf32>
    %362 = vector.broadcast %361 : vector<1x1xf32> to vector<1x16xf32>
    %363 = vector.broadcast %cst_134 : f32 to vector<1x16xf32>
    %364 = arith.select %360, %362, %363 : vector<1x16xi1>, vector<1x16xf32>
    %365 = arith.addf %351, %364 : vector<1x16xf32>
    %c13 = arith.constant 13 : index
    %c0_135 = arith.constant 0 : index
    %c0_136 = arith.constant 0 : index
    %366 = vector.load %arg12[%c13, %c0_135, %c0_136] : memref<16x128x16xf32, #tpu.memory_space<vmem>>, vector<1x128x16xf32>
    %367 = vector.shape_cast %366 : vector<1x128x16xf32> to vector<128x16xf32>
    %368 = arith.mulf %181, %367 : vector<128x16xf32>
    %cst_137 = arith.constant dense<0.000000e+00> : vector<128xf32>
    %369 = vector.multi_reduction <add>, %368, %cst_137 [1] : vector<128x16xf32> to vector<128xf32>
    %370 = vector.shape_cast %369 : vector<128xf32> to vector<128x1xf32>
    %cst_138 = arith.constant dense<0.000000e+00> : vector<1xf32>
    %371 = vector.multi_reduction <add>, %370, %cst_138 [0] : vector<128x1xf32> to vector<1xf32>
    %372 = vector.shape_cast %371 : vector<1xf32> to vector<1x1xf32>
    %c13_i32 = arith.constant 13 : i32
    %373 = vector.broadcast %c13_i32 : i32 to vector<1x16xi32>
    %374 = arith.cmpi eq, %182, %373 : vector<1x16xi32>
    %cst_139 = arith.constant 0.000000e+00 : f32
    %375 = vector.shape_cast %372 : vector<1x1xf32> to vector<1x1xf32>
    %376 = vector.broadcast %375 : vector<1x1xf32> to vector<1x16xf32>
    %377 = vector.broadcast %cst_139 : f32 to vector<1x16xf32>
    %378 = arith.select %374, %376, %377 : vector<1x16xi1>, vector<1x16xf32>
    %379 = arith.addf %365, %378 : vector<1x16xf32>
    %c14 = arith.constant 14 : index
    %c0_140 = arith.constant 0 : index
    %c0_141 = arith.constant 0 : index
    %380 = vector.load %arg12[%c14, %c0_140, %c0_141] : memref<16x128x16xf32, #tpu.memory_space<vmem>>, vector<1x128x16xf32>
    %381 = vector.shape_cast %380 : vector<1x128x16xf32> to vector<128x16xf32>
    %382 = arith.mulf %181, %381 : vector<128x16xf32>
    %cst_142 = arith.constant dense<0.000000e+00> : vector<128xf32>
    %383 = vector.multi_reduction <add>, %382, %cst_142 [1] : vector<128x16xf32> to vector<128xf32>
    %384 = vector.shape_cast %383 : vector<128xf32> to vector<128x1xf32>
    %cst_143 = arith.constant dense<0.000000e+00> : vector<1xf32>
    %385 = vector.multi_reduction <add>, %384, %cst_143 [0] : vector<128x1xf32> to vector<1xf32>
    %386 = vector.shape_cast %385 : vector<1xf32> to vector<1x1xf32>
    %c14_i32 = arith.constant 14 : i32
    %387 = vector.broadcast %c14_i32 : i32 to vector<1x16xi32>
    %388 = arith.cmpi eq, %182, %387 : vector<1x16xi32>
    %cst_144 = arith.constant 0.000000e+00 : f32
    %389 = vector.shape_cast %386 : vector<1x1xf32> to vector<1x1xf32>
    %390 = vector.broadcast %389 : vector<1x1xf32> to vector<1x16xf32>
    %391 = vector.broadcast %cst_144 : f32 to vector<1x16xf32>
    %392 = arith.select %388, %390, %391 : vector<1x16xi1>, vector<1x16xf32>
    %393 = arith.addf %379, %392 : vector<1x16xf32>
    %c15 = arith.constant 15 : index
    %c0_145 = arith.constant 0 : index
    %c0_146 = arith.constant 0 : index
    %394 = vector.load %arg12[%c15, %c0_145, %c0_146] : memref<16x128x16xf32, #tpu.memory_space<vmem>>, vector<1x128x16xf32>
    %395 = vector.shape_cast %394 : vector<1x128x16xf32> to vector<128x16xf32>
    %396 = arith.mulf %181, %395 : vector<128x16xf32>
    %cst_147 = arith.constant dense<0.000000e+00> : vector<128xf32>
    %397 = vector.multi_reduction <add>, %396, %cst_147 [1] : vector<128x16xf32> to vector<128xf32>
    %398 = vector.shape_cast %397 : vector<128xf32> to vector<128x1xf32>
    %cst_148 = arith.constant dense<0.000000e+00> : vector<1xf32>
    %399 = vector.multi_reduction <add>, %398, %cst_148 [0] : vector<128x1xf32> to vector<1xf32>
    %400 = vector.shape_cast %399 : vector<1xf32> to vector<1x1xf32>
    %c15_i32 = arith.constant 15 : i32
    %401 = vector.broadcast %c15_i32 : i32 to vector<1x16xi32>
    %402 = arith.cmpi eq, %182, %401 : vector<1x16xi32>
    %cst_149 = arith.constant 0.000000e+00 : f32
    %403 = vector.shape_cast %400 : vector<1x1xf32> to vector<1x1xf32>
    %404 = vector.broadcast %403 : vector<1x1xf32> to vector<1x16xf32>
    %405 = vector.broadcast %cst_149 : f32 to vector<1x16xf32>
    %406 = arith.select %402, %404, %405 : vector<1x16xi1>, vector<1x16xf32>
    %407 = arith.addf %393, %406 : vector<1x16xf32>
    %c0_150 = arith.constant 0 : index
    %c0_151 = arith.constant 0 : index
    %408 = vector.load %arg17[%c0_150, %c0_151] : memref<1x16xf32, #tpu.memory_space<vmem>>, vector<1x16xf32>
    tpu.vector_store %arg17[%c0_150, %c0_151], %407 {strides = array<i32>} : memref<1x16xf32, #tpu.memory_space<vmem>>, vector<1x16xf32>,
    %c0_152 = arith.constant 0 : index
    %c0_153 = arith.constant 0 : index
    %409 = vector.load %arg14[%c0_152, %c0_153] : memref<16x16xf32, #tpu.memory_space<vmem>>, vector<16x16xf32>
    %cst_154 = arith.constant dense<0.000000e+00> : vector<1x16xf32>
    %410 = tpu.matmul %407, %409, %cst_154 {dimension_numbers = #tpu.dot_dimension_numbers<[1], [0], [0], [1], [0, 0, 1, 1], [], []>} : vector<1x16xf32>, vector<16x16xf32>, vector<1x16xf32> -> vector<1x16xf32>
    %c0_155 = arith.constant 0 : index
    %c0_156 = arith.constant 0 : index
    %411 = vector.load %arg15[%c0_155, %c0_156] : memref<1x16xf32, #tpu.memory_space<vmem>>, vector<1x16xf32>
    %412 = arith.addf %410, %411 : vector<1x16xf32>
    %413 = math.absf %412 : vector<1x16xf32>
    %c0_157 = arith.constant 0 : index
    %c0_158 = arith.constant 0 : index
    %414 = vector.load %arg16[%c0_157, %c0_158] : memref<1x16xf32, #tpu.memory_space<vmem>>, vector<1x16xf32>
    tpu.vector_store %arg16[%c0_157, %c0_158], %413 {strides = array<i32>} : memref<1x16xf32, #tpu.memory_space<vmem>>, vector<1x16xf32>,
    return
  }
}

</mosaic_0001>

<llo_original>
// kernel: tpu_custom_call.1
$region0: #{tpu_custom_call.1}
  #allocation0 [shape = 'u32[]', space=smem, size = 0x4, offset = 0x4, fixed_abs, tag = 'smem constant byte address 0x4 - core index']
  #allocation1 [shape = 'u32[144,128]{1,0:T(1,128)}', space=vmem, size = 0x12000, scoped, tag = 'internal scratch']
  %s0 = inlined_call_operand.vmem [shape: f32[128,16], index: 0, kind: input, shape index: {}]
  %s1 = inlined_call_operand.vmem [shape: f32[16,48], index: 1, kind: input, shape index: {}]
  %s2 = inlined_call_operand.vmem [shape: f32[1,48], index: 2, kind: input, shape index: {}]
  %s3 = inlined_call_operand.vmem [shape: f32[128,128], index: 3, kind: input, shape index: {}]
  %s4 = inlined_call_operand.vmem [shape: f32[1,16], index: 4, kind: input, shape index: {}]
  %s5 = inlined_call_operand.vmem [shape: f32[1,16], index: 5, kind: input, shape index: {}]
  %s6 = inlined_call_operand.vmem [shape: f32[16,64], index: 6, kind: input, shape index: {}]
  %s7 = inlined_call_operand.vmem [shape: f32[1,64], index: 7, kind: input, shape index: {}]
  %s8 = inlined_call_operand.vmem [shape: f32[64,16], index: 8, kind: input, shape index: {}]
  %s9 = inlined_call_operand.vmem [shape: f32[1,16], index: 9, kind: input, shape index: {}]
  %s10 = inlined_call_operand.vmem [shape: f32[1,16], index: 10, kind: input, shape index: {}]
  %s11 = inlined_call_operand.vmem [shape: f32[1,16], index: 11, kind: input, shape index: {}]
  %s12 = inlined_call_operand.vmem [shape: f32[16,128,16], index: 12, kind: input, shape index: {}]
  %s13 = inlined_call_operand.vmem [shape: f32[1,16], index: 13, kind: input, shape index: {}]
  %s14 = inlined_call_operand.vmem [shape: f32[16,16], index: 14, kind: input, shape index: {}]
  %s15 = inlined_call_operand.vmem [shape: f32[1,16], index: 15, kind: input, shape index: {}]
  %s16 = inlined_call_operand.hbm [shape: f32[1,16], index: 16, kind: output, shape index: {0}]
  %s17 = inlined_call_operand.hbm [shape: f32[1,16], index: 17, kind: output, shape index: {1}]
  %18 = xla_tuple %s16, %s17
  %s19 = sld [smem:[#allocation0]]
  $region82: #{tpu_custom_call.1} parent=0
    _
  %s21 = ssub.s32 1, %s19
  %s22 = scalar_select 0, %s21, %s19
  $region1: #{tpu_custom_call.1} parent=0
    #allocation2 [shape = 'u8[512]{0}', space=vmem, size = 0x400, scoped, tag = 'output window, operand 0, single buffered']
    #allocation3 [shape = 's32[1]{0}', space=sflag, size = 0x4, scoped, tag = 'scoped memory for tpu_custom_call.1']
    #allocation4 [shape = 'u8[512]{0}', space=vmem, size = 0x400, scoped, tag = 'output window, operand 1, single buffered']
    #allocation5 [shape = 's32[1]{0}', space=sflag, size = 0x4, scoped, tag = 'scoped memory for tpu_custom_call.1']
    %23 = vsyncpa [#allocation3], 0
    %24 = vsyncpa [#allocation5], 0
    // Predicated region
    $region2: #{tpu_custom_call.1} parent=1 // pred_check
      _
    $region3: #{tpu_custom_call.1} parent=1 // pred_check_branch
      %26 = sbr.rel (0) target = $region5
    $region4: #{tpu_custom_call.1} parent=1 // pred_region
      _
    $region5: #{tpu_custom_call.1} parent=1 // pred_fallthru
      _
    // Predicated region
    $region6: #{tpu_custom_call.1} parent=1 // pred_check
      _
    $region7: #{tpu_custom_call.1} parent=1 // pred_check_branch
      %28 = sbr.rel (0) target = $region9
    $region8: #{tpu_custom_call.1} parent=1 // pred_region
      _
    $region9: #{tpu_custom_call.1} parent=1 // pred_fallthru
      _
    // Predicated region
    $region10: #{tpu_custom_call.1} parent=1 // pred_check
      _
    $region11: #{tpu_custom_call.1} parent=1 // pred_check_branch
      %30 = sbr.rel (0) target = $region13
    $region12: #{tpu_custom_call.1} parent=1 // pred_region
      _
    $region13: #{tpu_custom_call.1} parent=1 // pred_fallthru
      _
    // Predicated region
    $region14: #{tpu_custom_call.1} parent=1 // pred_check
      _
    $region15: #{tpu_custom_call.1} parent=1 // pred_check_branch
      %32 = sbr.rel (0) target = $region17
    $region16: #{tpu_custom_call.1} parent=1 // pred_region
      _
    $region17: #{tpu_custom_call.1} parent=1 // pred_fallthru
      _
    // Predicated region
    $region18: #{tpu_custom_call.1} parent=1 // pred_check
      _
    $region19: #{tpu_custom_call.1} parent=1 // pred_check_branch
      %34 = sbr.rel (0) target = $region21
    $region20: #{tpu_custom_call.1} parent=1 // pred_region
      _
    $region21: #{tpu_custom_call.1} parent=1 // pred_fallthru
      _
    // Predicated region
    $region22: #{tpu_custom_call.1} parent=1 // pred_check
      _
    $region23: #{tpu_custom_call.1} parent=1 // pred_check_branch
      %36 = sbr.rel (0) target = $region25
    $region24: #{tpu_custom_call.1} parent=1 // pred_region
      _
    $region25: #{tpu_custom_call.1} parent=1 // pred_fallthru
      _
    // Predicated region
    $region26: #{tpu_custom_call.1} parent=1 // pred_check
      _
    $region27: #{tpu_custom_call.1} parent=1 // pred_check_branch
      %38 = sbr.rel (0) target = $region29
    $region28: #{tpu_custom_call.1} parent=1 // pred_region
      _
    $region29: #{tpu_custom_call.1} parent=1 // pred_fallthru
      _
    // Predicated region
    $region30: #{tpu_custom_call.1} parent=1 // pred_check
      _
    $region31: #{tpu_custom_call.1} parent=1 // pred_check_branch
      %40 = sbr.rel (0) target = $region33
    $region32: #{tpu_custom_call.1} parent=1 // pred_region
      _
    $region33: #{tpu_custom_call.1} parent=1 // pred_fallthru
      _
    // Predicated region
    $region34: #{tpu_custom_call.1} parent=1 // pred_check
      _
    $region35: #{tpu_custom_call.1} parent=1 // pred_check_branch
      %42 = sbr.rel (0) target = $region37
    $region36: #{tpu_custom_call.1} parent=1 // pred_region
      _
    $region37: #{tpu_custom_call.1} parent=1 // pred_fallthru
      _
    // Predicated region
    $region38: #{tpu_custom_call.1} parent=1 // pred_check
      _
    $region39: #{tpu_custom_call.1} parent=1 // pred_check_branch
      %44 = sbr.rel (0) target = $region41
    $region40: #{tpu_custom_call.1} parent=1 // pred_region
      _
    $region41: #{tpu_custom_call.1} parent=1 // pred_fallthru
      _
    // Predicated region
    $region42: #{tpu_custom_call.1} parent=1 // pred_check
      _
    $region43: #{tpu_custom_call.1} parent=1 // pred_check_branch
      %46 = sbr.rel (0) target = $region45
    $region44: #{tpu_custom_call.1} parent=1 // pred_region
      _
    $region45: #{tpu_custom_call.1} parent=1 // pred_fallthru
      _
    // Predicated region
    $region46: #{tpu_custom_call.1} parent=1 // pred_check
      _
    $region47: #{tpu_custom_call.1} parent=1 // pred_check_branch
      %48 = sbr.rel (0) target = $region49
    $region48: #{tpu_custom_call.1} parent=1 // pred_region
      _
    $region49: #{tpu_custom_call.1} parent=1 // pred_fallthru
      _
    // Predicated region
    $region50: #{tpu_custom_call.1} parent=1 // pred_check
      _
    $region51: #{tpu_custom_call.1} parent=1 // pred_check_branch
      %50 = sbr.rel (0) target = $region53
    $region52: #{tpu_custom_call.1} parent=1 // pred_region
      _
    $region53: #{tpu_custom_call.1} parent=1 // pred_fallthru
      _
    // Predicated region
    $region54: #{tpu_custom_call.1} parent=1 // pred_check
      _
    $region55: #{tpu_custom_call.1} parent=1 // pred_check_branch
      %52 = sbr.rel (0) target = $region57
    $region56: #{tpu_custom_call.1} parent=1 // pred_region
      _
    $region57: #{tpu_custom_call.1} parent=1 // pred_fallthru
      _
    // Predicated region
    $region58: #{tpu_custom_call.1} parent=1 // pred_check
      _
    $region59: #{tpu_custom_call.1} parent=1 // pred_check_branch
      %54 = sbr.rel (0) target = $region61
    $region60: #{tpu_custom_call.1} parent=1 // pred_region
      _
    $region61: #{tpu_custom_call.1} parent=1 // pred_fallthru
      _
    // Predicated region
    $region62: #{tpu_custom_call.1} parent=1 // pred_check
      _
    $region63: #{tpu_custom_call.1} parent=1 // pred_check_branch
      %56 = sbr.rel (0) target = $region65
    $region64: #{tpu_custom_call.1} parent=1 // pred_region
      _
    $region65: #{tpu_custom_call.1} parent=1 // pred_fallthru
      _
    %v57 = vld [vmem:[%s0] sm:$0xff]
    %v58 = vld [vmem:[%s0 + $0x8] sm:$0xff]
    %v59 = vld [vmem:[%s0 + $0x10] sm:$0xff]
    %v60 = vld [vmem:[%s0 + $0x18] sm:$0xff]
    %v61 = vld [vmem:[%s0 + $0x20] sm:$0xff]
    %v62 = vld [vmem:[%s0 + $0x28] sm:$0xff]
    %v63 = vld [vmem:[%s0 + $0x30] sm:$0xff]
    %v64 = vld [vmem:[%s0 + $0x38] sm:$0xff]
    %v65 = vld [vmem:[%s0 + $0x40] sm:$0xff]
    %v66 = vld [vmem:[%s0 + $0x48] sm:$0xff]
    %v67 = vld [vmem:[%s0 + $0x50] sm:$0xff]
    %v68 = vld [vmem:[%s0 + $0x58] sm:$0xff]
    %v69 = vld [vmem:[%s0 + $0x60] sm:$0xff]
    %v70 = vld [vmem:[%s0 + $0x68] sm:$0xff]
    %v71 = vld [vmem:[%s0 + $0x70] sm:$0xff]
    %v72 = vld [vmem:[%s0 + $0x78] sm:$0xff]
    %v73 = vld [vmem:[%s1] sm:$0xff]
    %v74 = vld [vmem:[%s1 + $0x8] sm:$0xff]
    %v75 = vld [vmem:[%s2] sm:$0x1]
    %v77 = vlaneseq
    %v78 = vshrl.u32 %v77, 7
    %v79 = vsub.s32 0, %v78
    %v80 = vrot.slane %v75, %v79
    %vm82 = vcmask 130048
    %v84 = vsel %vm82, %v57, 0
    %v87 = vsel %vm82, %v58, 0
    %v90 = vsel %vm82, %v59, 0
    %v93 = vsel %vm82, %v60, 0
    %v96 = vsel %vm82, %v61, 0
    %v99 = vsel %vm82, %v62, 0
    %v102 = vsel %vm82, %v63, 0
    %v105 = vsel %vm82, %v64, 0
    %v108 = vsel %vm82, %v65, 0
    %v111 = vsel %vm82, %v66, 0
    %v114 = vsel %vm82, %v67, 0
    %v117 = vsel %vm82, %v68, 0
    %v120 = vsel %vm82, %v69, 0
    %v123 = vsel %vm82, %v70, 0
    %v126 = vsel %vm82, %v71, 0
    %v129 = vsel %vm82, %v72, 0
    %131 = vmatprep.subr.mxu0 0.0
    %132 = vmatpush1.msra.mxu0 %v73
    %133 = vmatprep.subr.mxu0 0.0
    %134 = vmatpush1.msra.mxu0 %v74
    %135 = vmatprep.subr.mxu0 0.0
    %136 = vmatpush1.msra.mxu0 0.0
    %137 = vmatprep.subr.mxu0 0.0
    %138 = vmatpush1.msra.mxu0 0.0
    %139 = vmatprep.subr.mxu0 0.0
    %140 = vmatpush1.msra.mxu0 0.0
    %141 = vmatprep.subr.mxu0 0.0
    %142 = vmatpush1.msra.mxu0 0.0
    %143 = vmatprep.subr.mxu0 0.0
    %144 = vmatpush1.msra.mxu0 0.0
    %145 = vmatprep.subr.mxu0 0.0
    %146 = vmatpush1.msra.mxu0 0.0
    %147 = vmatprep.subr.mxu0 0.0
    %148 = vmatpush1.msra.mxu0 0.0
    %149 = vmatprep.subr.mxu0 0.0
    %150 = vmatpush1.msra.mxu0 0.0
    %151 = vmatprep.subr.mxu0 0.0
    %152 = vmatpush1.msra.mxu0 0.0
    %153 = vmatprep.subr.mxu0 0.0
    %154 = vmatpush1.msra.mxu0 0.0
    %155 = vmatprep.subr.mxu0 0.0
    %156 = vmatpush1.msra.mxu0 0.0
    %157 = vmatprep.subr.mxu0 0.0
    %158 = vmatpush1.msra.mxu0 0.0
    %159 = vmatprep.subr.mxu0 0.0
    %160 = vmatpush1.msra.mxu0 0.0
    %161 = vmatprep.subr.mxu0 0.0
    %162 = vmatpush1.msra.mxu0 0.0
    %163 = vmatprep.subr.mxu0 0.0
    %164 = vmatpush1.msra.mxu0 0.0
    %165 = vmatprep.subr.mxu0 0.0
    %166 = vmatpush1.msra.mxu0 0.0
    %167 = vmatprep.subr.mxu0 0.0
    %168 = vmatpush1.msra.mxu0 0.0
    %169 = vmatprep.subr.mxu0 0.0
    %170 = vmatpush1.msra.mxu0 0.0
    %171 = vmatprep.subr.mxu0 0.0
    %172 = vmatpush1.msra.mxu0 0.0
    %173 = vmatprep.subr.mxu0 0.0
    %174 = vmatpush1.msra.mxu0 0.0
    %175 = vmatprep.subr.mxu0 0.0
    %176 = vmatpush1.msra.mxu0 0.0
    %177 = vmatprep.subr.mxu0 0.0
    %178 = vmatpush1.msra.mxu0 0.0
    %179 = vmatprep.subr.mxu0 0.0
    %180 = vmatpush1.msra.mxu0 0.0
    %181 = vmatprep.subr.mxu0 0.0
    %182 = vmatpush1.msra.mxu0 0.0
    %183 = vmatprep.subr.mxu0 0.0
    %184 = vmatpush1.msra.mxu0 0.0
    %185 = vmatprep.subr.mxu0 0.0
    %186 = vmatpush1.msra.mxu0 0.0
    %187 = vmatprep.subr.mxu0 0.0
    %188 = vmatpush1.msra.mxu0 0.0
    %189 = vmatprep.subr.mxu0 0.0
    %190 = vmatpush1.msra.mxu0 0.0
    %191 = vmatprep.subr.mxu0 0.0
    %192 = vmatpush1.msra.mxu0 0.0
    %193 = vmatprep.subr.mxu0 0.0
    %194 = vmatpush1.msra.mxu0 0.0
    %195 = vmatprep.mubr.f32.mxu0 0.0
    %196 = vmatmul.mubr.f32.gmra.mrb[0].mxu0 %v84
    %v197 = vpop.f32.mrb[0].mxu0
    %v198 = vadd.f32 %v80, %v197
    %v199 = vpop.f32.mrb[0].mxu0
    %200 = vmatprep.mubr.f32.mxu0 0.0
    %201 = vmatmul.mubr.f32.gmra.mrb[0].mxu0 %v87
    %v202 = vpop.f32.mrb[0].mxu0
    %v203 = vadd.f32 %v80, %v202
    %v204 = vpop.f32.mrb[0].mxu0
    %205 = vmatprep.mubr.f32.mxu0 0.0
    %206 = vmatmul.mubr.f32.gmra.mrb[0].mxu0 %v90
    %v207 = vpop.f32.mrb[0].mxu0
    %v208 = vadd.f32 %v80, %v207
    %v209 = vpop.f32.mrb[0].mxu0
    %210 = vmatprep.mubr.f32.mxu0 0.0
    %211 = vmatmul.mubr.f32.gmra.mrb[0].mxu0 %v93
    %v212 = vpop.f32.mrb[0].mxu0
    %v213 = vadd.f32 %v80, %v212
    %v214 = vpop.f32.mrb[0].mxu0
    %215 = vmatprep.mubr.f32.mxu0 0.0
    %216 = vmatmul.mubr.f32.gmra.mrb[0].mxu0 %v96
    %v217 = vpop.f32.mrb[0].mxu0
    %v218 = vadd.f32 %v80, %v217
    %v219 = vpop.f32.mrb[0].mxu0
    %220 = vmatprep.mubr.f32.mxu0 0.0
    %221 = vmatmul.mubr.f32.gmra.mrb[0].mxu0 %v99
    %v222 = vpop.f32.mrb[0].mxu0
    %v223 = vadd.f32 %v80, %v222
    %v224 = vpop.f32.mrb[0].mxu0
    %225 = vmatprep.mubr.f32.mxu0 0.0
    %226 = vmatmul.mubr.f32.gmra.mrb[0].mxu0 %v102
    %v227 = vpop.f32.mrb[0].mxu0
    %v228 = vadd.f32 %v80, %v227
    %v229 = vpop.f32.mrb[0].mxu0
    %230 = vmatprep.mubr.f32.mxu0 0.0
    %231 = vmatmul.mubr.f32.gmra.mrb[0].mxu0 %v105
    %v232 = vpop.f32.mrb[0].mxu0
    %v233 = vadd.f32 %v80, %v232
    %v234 = vpop.f32.mrb[0].mxu0
    %235 = vmatprep.mubr.f32.mxu0 0.0
    %236 = vmatmul.mubr.f32.gmra.mrb[0].mxu0 %v108
    %v237 = vpop.f32.mrb[0].mxu0
    %v238 = vadd.f32 %v80, %v237
    %v239 = vpop.f32.mrb[0].mxu0
    %240 = vmatprep.mubr.f32.mxu0 0.0
    %241 = vmatmul.mubr.f32.gmra.mrb[0].mxu0 %v111
    %v242 = vpop.f32.mrb[0].mxu0
    %v243 = vadd.f32 %v80, %v242
    %v244 = vpop.f32.mrb[0].mxu0
    %245 = vmatprep.mubr.f32.mxu0 0.0
    %246 = vmatmul.mubr.f32.gmra.mrb[0].mxu0 %v114
    %v247 = vpop.f32.mrb[0].mxu0
    %v248 = vadd.f32 %v80, %v247
    %v249 = vpop.f32.mrb[0].mxu0
    %250 = vmatprep.mubr.f32.mxu0 0.0
    %251 = vmatmul.mubr.f32.gmra.mrb[0].mxu0 %v117
    %v252 = vpop.f32.mrb[0].mxu0
    %v253 = vadd.f32 %v80, %v252
    %v254 = vpop.f32.mrb[0].mxu0
    %255 = vmatprep.mubr.f32.mxu0 0.0
    %256 = vmatmul.mubr.f32.gmra.mrb[0].mxu0 %v120
    %v257 = vpop.f32.mrb[0].mxu0
    %v258 = vadd.f32 %v80, %v257
    %v259 = vpop.f32.mrb[0].mxu0
    %260 = vmatprep.mubr.f32.mxu0 0.0
    %261 = vmatmul.mubr.f32.gmra.mrb[0].mxu0 %v123
    %v262 = vpop.f32.mrb[0].mxu0
    %v263 = vadd.f32 %v80, %v262
    %v264 = vpop.f32.mrb[0].mxu0
    %265 = vmatprep.mubr.f32.mxu0 0.0
    %266 = vmatmul.mubr.f32.gmra.mrb[0].mxu0 %v126
    %v267 = vpop.f32.mrb[0].mxu0
    %v268 = vadd.f32 %v80, %v267
    %v269 = vpop.f32.mrb[0].mxu0
    %270 = vmatprep.mubr.f32.mxu0 0.0
    %271 = vmatmul.mubr.f32.gmra.mrb[0].mxu0 %v129
    %v272 = vpop.f32.mrb[0].mxu0
    %v273 = vadd.f32 %v80, %v272
    %v274 = vpop.f32.mrb[0].mxu0
    %275 = vdwg.mxu0
    %v276 = vld [vmem:[%s3] sm:$0xff]
    %v277 = vld [vmem:[%s3 + $0x8] sm:$0xff]
    %v278 = vld [vmem:[%s3 + $0x10] sm:$0xff]
    %v279 = vld [vmem:[%s3 + $0x18] sm:$0xff]
    %v280 = vld [vmem:[%s3 + $0x20] sm:$0xff]
    %v281 = vld [vmem:[%s3 + $0x28] sm:$0xff]
    %v282 = vld [vmem:[%s3 + $0x30] sm:$0xff]
    %v283 = vld [vmem:[%s3 + $0x38] sm:$0xff]
    %v284 = vld [vmem:[%s3 + $0x40] sm:$0xff]
    %v285 = vld [vmem:[%s3 + $0x48] sm:$0xff]
    %v286 = vld [vmem:[%s3 + $0x50] sm:$0xff]
    %v287 = vld [vmem:[%s3 + $0x58] sm:$0xff]
    %v288 = vld [vmem:[%s3 + $0x60] sm:$0xff]
    %v289 = vld [vmem:[%s3 + $0x68] sm:$0xff]
    %v290 = vld [vmem:[%s3 + $0x70] sm:$0xff]
    %v291 = vld [vmem:[%s3 + $0x78] sm:$0xff]
    %v292 = vlaneseq
    %v293 = vand.u32 %v292, 127
    %310 = vrot.lane.b32.xlu0 %v198, 112
    %v311 = vpop.permute.xlu0 %310
    %312 = vrot.lane.b32.xlu0 %v203, 112
    %v313 = vpop.permute.xlu0 %312
    %314 = vrot.lane.b32.xlu0 %v208, 112
    %v315 = vpop.permute.xlu0 %314
    %316 = vrot.lane.b32.xlu0 %v213, 112
    %v317 = vpop.permute.xlu0 %316
    %318 = vrot.lane.b32.xlu0 %v218, 112
    %v319 = vpop.permute.xlu0 %318
    %320 = vrot.lane.b32.xlu0 %v223, 112
    %v321 = vpop.permute.xlu0 %320
    %322 = vrot.lane.b32.xlu0 %v228, 112
    %v323 = vpop.permute.xlu0 %322
    %324 = vrot.lane.b32.xlu0 %v233, 112
    %v325 = vpop.permute.xlu0 %324
    %326 = vrot.lane.b32.xlu0 %v238, 112
    %v327 = vpop.permute.xlu0 %326
    %328 = vrot.lane.b32.xlu0 %v243, 112
    %v329 = vpop.permute.xlu0 %328
    %330 = vrot.lane.b32.xlu0 %v248, 112
    %v331 = vpop.permute.xlu0 %330
    %332 = vrot.lane.b32.xlu0 %v253, 112
    %v333 = vpop.permute.xlu0 %332
    %334 = vrot.lane.b32.xlu0 %v258, 112
    %v335 = vpop.permute.xlu0 %334
    %336 = vrot.lane.b32.xlu0 %v263, 112
    %v337 = vpop.permute.xlu0 %336
    %338 = vrot.lane.b32.xlu0 %v268, 112
    %v339 = vpop.permute.xlu0 %338
    %340 = vrot.lane.b32.xlu0 %v273, 112
    %v341 = vpop.permute.xlu0 %340
    %vm342 = vcmask 31744
    %v343 = vsel %vm342, %v198, 0
    %v345 = vsel %vm342, %v203, 0
    %v347 = vsel %vm342, %v208, 0
    %v349 = vsel %vm342, %v213, 0
    %v351 = vsel %vm342, %v218, 0
    %v353 = vsel %vm342, %v223, 0
    %v355 = vsel %vm342, %v228, 0
    %v357 = vsel %vm342, %v233, 0
    %v359 = vsel %vm342, %v238, 0
    %v361 = vsel %vm342, %v243, 0
    %v363 = vsel %vm342, %v248, 0
    %v365 = vsel %vm342, %v253, 0
    %v367 = vsel %vm342, %v258, 0
    %v369 = vsel %vm342, %v263, 0
    %v371 = vsel %vm342, %v268, 0
    %v373 = vsel %vm342, %v273, 0
    %v375 = vsel %vm342, %v311, 0
    %v377 = vsel %vm342, %v313, 0
    %v379 = vsel %vm342, %v315, 0
    %v381 = vsel %vm342, %v317, 0
    %v383 = vsel %vm342, %v319, 0
    %v385 = vsel %vm342, %v321, 0
    %v387 = vsel %vm342, %v323, 0
    %v389 = vsel %vm342, %v325, 0
    %v391 = vsel %vm342, %v327, 0
    %v393 = vsel %vm342, %v329, 0
    %v395 = vsel %vm342, %v331, 0
    %v397 = vsel %vm342, %v333, 0
    %v399 = vsel %vm342, %v335, 0
    %v401 = vsel %vm342, %v337, 0
    %v403 = vsel %vm342, %v339, 0
    %v405 = vsel %vm342, %v341, 0
    %407 = vmatprep.subr.mxu0 0.0
    %408 = vmatpush1.xpose.msra.mxu0 %v375
    %409 = vmatprep.subr.mxu0 0.0
    %410 = vmatpush1.xpose.msra.mxu0 %v377
    %411 = vmatprep.subr.mxu0 0.0
    %412 = vmatpush1.xpose.msra.mxu0 %v379
    %413 = vmatprep.subr.mxu0 0.0
    %414 = vmatpush1.xpose.msra.mxu0 %v381
    %415 = vmatprep.subr.mxu0 0.0
    %416 = vmatpush1.xpose.msra.mxu0 %v383
    %417 = vmatprep.subr.mxu0 0.0
    %418 = vmatpush1.xpose.msra.mxu0 %v385
    %419 = vmatprep.subr.mxu0 0.0
    %420 = vmatpush1.xpose.msra.mxu0 %v387
    %421 = vmatprep.subr.mxu0 0.0
    %422 = vmatpush1.xpose.msra.mxu0 %v389
    %423 = vmatprep.subr.mxu0 0.0
    %424 = vmatpush1.xpose.msra.mxu0 %v391
    %425 = vmatprep.subr.mxu0 0.0
    %426 = vmatpush1.xpose.msra.mxu0 %v393
    %427 = vmatprep.subr.mxu0 0.0
    %428 = vmatpush1.xpose.msra.mxu0 %v395
    %429 = vmatprep.subr.mxu0 0.0
    %430 = vmatpush1.xpose.msra.mxu0 %v397
    %431 = vmatprep.subr.mxu0 0.0
    %432 = vmatpush1.xpose.msra.mxu0 %v399
    %433 = vmatprep.subr.mxu0 0.0
    %434 = vmatpush1.xpose.msra.mxu0 %v401
    %435 = vmatprep.subr.mxu0 0.0
    %436 = vmatpush1.xpose.msra.mxu0 %v403
    %437 = vmatprep.subr.mxu0 0.0
    %438 = vmatpush1.xpose.msra.mxu0 %v405
    %439 = vmatprep.subr.mxu0 0.0
    %440 = vmatpush1.xpose.msra.mxu0 0.0
    %441 = vmatprep.subr.mxu0 0.0
    %442 = vmatpush1.xpose.msra.mxu0 0.0
    %443 = vmatprep.subr.mxu0 0.0
    %444 = vmatpush1.xpose.msra.mxu0 0.0
    %445 = vmatprep.subr.mxu0 0.0
    %446 = vmatpush1.xpose.msra.mxu0 0.0
    %447 = vmatprep.subr.mxu0 0.0
    %448 = vmatpush1.xpose.msra.mxu0 0.0
    %449 = vmatprep.subr.mxu0 0.0
    %450 = vmatpush1.xpose.msra.mxu0 0.0
    %451 = vmatprep.subr.mxu0 0.0
    %452 = vmatpush1.xpose.msra.mxu0 0.0
    %453 = vmatprep.subr.mxu0 0.0
    %454 = vmatpush1.xpose.msra.mxu0 0.0
    %455 = vmatprep.subr.mxu0 0.0
    %456 = vmatpush1.xpose.msra.mxu0 0.0
    %457 = vmatprep.subr.mxu0 0.0
    %458 = vmatpush1.xpose.msra.mxu0 0.0
    %459 = vmatprep.subr.mxu0 0.0
    %460 = vmatpush1.xpose.msra.mxu0 0.0
    %461 = vmatprep.subr.mxu0 0.0
    %462 = vmatpush1.xpose.msra.mxu0 0.0
    %463 = vmatprep.subr.mxu0 0.0
    %464 = vmatpush1.xpose.msra.mxu0 0.0
    %465 = vmatprep.subr.mxu0 0.0
    %466 = vmatpush1.xpose.msra.mxu0 0.0
    %467 = vmatprep.subr.mxu0 0.0
    %468 = vmatpush1.xpose.msra.mxu0 0.0
    %469 = vmatprep.subr.mxu0 0.0
    %470 = vmatpush1.xpose.msra.mxu0 0.0
    %471 = vmatprep.mubr.f32.mxu0 0.0
    %472 = vmatmul.mubr.f32.gmra.mrb[0].mxu0 %v343
    %v473 = vpop.f32.mrb[0].mxu0
    %v474 = vadd.f32 %v276, %v473
    %v475 = vpop.f32.mrb[0].mxu0
    %476 = vmatprep.mubr.f32.mxu0 0.0
    %477 = vmatmul.mubr.f32.gmra.mrb[0].mxu0 %v345
    %v478 = vpop.f32.mrb[0].mxu0
    %v479 = vadd.f32 %v277, %v478
    %v480 = vpop.f32.mrb[0].mxu0
    %481 = vmatprep.mubr.f32.mxu0 0.0
    %482 = vmatmul.mubr.f32.gmra.mrb[0].mxu0 %v347
    %v483 = vpop.f32.mrb[0].mxu0
    %v484 = vadd.f32 %v278, %v483
    %v485 = vpop.f32.mrb[0].mxu0
    %486 = vmatprep.mubr.f32.mxu0 0.0
    %487 = vmatmul.mubr.f32.gmra.mrb[0].mxu0 %v349
    %v488 = vpop.f32.mrb[0].mxu0
    %v489 = vadd.f32 %v279, %v488
    %v490 = vpop.f32.mrb[0].mxu0
    %491 = vmatprep.mubr.f32.mxu0 0.0
    %492 = vmatmul.mubr.f32.gmra.mrb[0].mxu0 %v351
    %v493 = vpop.f32.mrb[0].mxu0
    %v494 = vadd.f32 %v280, %v493
    %v495 = vpop.f32.mrb[0].mxu0
    %496 = vmatprep.mubr.f32.mxu0 0.0
    %497 = vmatmul.mubr.f32.gmra.mrb[0].mxu0 %v353
    %v498 = vpop.f32.mrb[0].mxu0
    %v499 = vadd.f32 %v281, %v498
    %v500 = vpop.f32.mrb[0].mxu0
    %501 = vmatprep.mubr.f32.mxu0 0.0
    %502 = vmatmul.mubr.f32.gmra.mrb[0].mxu0 %v355
    %v503 = vpop.f32.mrb[0].mxu0
    %v504 = vadd.f32 %v282, %v503
    %v505 = vpop.f32.mrb[0].mxu0
    %506 = vmatprep.mubr.f32.mxu0 0.0
    %507 = vmatmul.mubr.f32.gmra.mrb[0].mxu0 %v357
    %v508 = vpop.f32.mrb[0].mxu0
    %v509 = vadd.f32 %v283, %v508
    %v510 = vpop.f32.mrb[0].mxu0
    %511 = vmatprep.mubr.f32.mxu0 0.0
    %512 = vmatmul.mubr.f32.gmra.mrb[0].mxu0 %v359
    %v513 = vpop.f32.mrb[0].mxu0
    %v514 = vadd.f32 %v284, %v513
    %v515 = vpop.f32.mrb[0].mxu0
    %516 = vmatprep.mubr.f32.mxu0 0.0
    %517 = vmatmul.mubr.f32.gmra.mrb[0].mxu0 %v361
    %v518 = vpop.f32.mrb[0].mxu0
    %v519 = vadd.f32 %v285, %v518
    %v520 = vpop.f32.mrb[0].mxu0
    %521 = vmatprep.mubr.f32.mxu0 0.0
    %522 = vmatmul.mubr.f32.gmra.mrb[0].mxu0 %v363
    %v523 = vpop.f32.mrb[0].mxu0
    %v524 = vadd.f32 %v286, %v523
    %v525 = vpop.f32.mrb[0].mxu0
    %526 = vmatprep.mubr.f32.mxu0 0.0
    %527 = vmatmul.mubr.f32.gmra.mrb[0].mxu0 %v365
    %v528 = vpop.f32.mrb[0].mxu0
    %v529 = vadd.f32 %v287, %v528
    %v530 = vpop.f32.mrb[0].mxu0
    %531 = vmatprep.mubr.f32.mxu0 0.0
    %532 = vmatmul.mubr.f32.gmra.mrb[0].mxu0 %v367
    %v533 = vpop.f32.mrb[0].mxu0
    %v534 = vadd.f32 %v288, %v533
    %v535 = vpop.f32.mrb[0].mxu0
    %536 = vmatprep.mubr.f32.mxu0 0.0
    %537 = vmatmul.mubr.f32.gmra.mrb[0].mxu0 %v369
    %v538 = vpop.f32.mrb[0].mxu0
    %v539 = vadd.f32 %v289, %v538
    %v540 = vpop.f32.mrb[0].mxu0
    %541 = vmatprep.mubr.f32.mxu0 0.0
    %542 = vmatmul.mubr.f32.gmra.mrb[0].mxu0 %v371
    %v543 = vpop.f32.mrb[0].mxu0
    %v544 = vadd.f32 %v290, %v543
    %v545 = vpop.f32.mrb[0].mxu0
    %546 = vmatprep.mubr.f32.mxu0 0.0
    %547 = vmatmul.mubr.f32.gmra.mrb[0].mxu0 %v373
    %v548 = vpop.f32.mrb[0].mxu0
    %v549 = vadd.f32 %v291, %v548
    %v550 = vpop.f32.mrb[0].mxu0
    %551 = vdwg.mxu0
    %552 = vmax.xlane.f32.xlu0 %v474
    %v553 = vpop.xlane.xlu0 %552
    %554 = vmax.xlane.f32.xlu0 %v479
    %v555 = vpop.xlane.xlu0 %554
    %556 = vmax.xlane.f32.xlu0 %v484
    %v557 = vpop.xlane.xlu0 %556
    %558 = vmax.xlane.f32.xlu0 %v489
    %v559 = vpop.xlane.xlu0 %558
    %560 = vmax.xlane.f32.xlu0 %v494
    %v561 = vpop.xlane.xlu0 %560
    %562 = vmax.xlane.f32.xlu0 %v499
    %v563 = vpop.xlane.xlu0 %562
    %564 = vmax.xlane.f32.xlu0 %v504
    %v565 = vpop.xlane.xlu0 %564
    %566 = vmax.xlane.f32.xlu0 %v509
    %v567 = vpop.xlane.xlu0 %566
    %568 = vmax.xlane.f32.xlu0 %v514
    %v569 = vpop.xlane.xlu0 %568
    %570 = vmax.xlane.f32.xlu0 %v519
    %v571 = vpop.xlane.xlu0 %570
    %572 = vmax.xlane.f32.xlu0 %v524
    %v573 = vpop.xlane.xlu0 %572
    %574 = vmax.xlane.f32.xlu0 %v529
    %v575 = vpop.xlane.xlu0 %574
    %576 = vmax.xlane.f32.xlu0 %v534
    %v577 = vpop.xlane.xlu0 %576
    %578 = vmax.xlane.f32.xlu0 %v539
    %v579 = vpop.xlane.xlu0 %578
    %580 = vmax.xlane.f32.xlu0 %v544
    %v581 = vpop.xlane.xlu0 %580
    %582 = vmax.xlane.f32.xlu0 %v549
    %v583 = vpop.xlane.xlu0 %582
    %v584 = vsub.f32 %v474, %v553
    %v585 = vsub.f32 %v479, %v555
    %v586 = vsub.f32 %v484, %v557
    %v587 = vsub.f32 %v489, %v559
    %v588 = vsub.f32 %v494, %v561
    %v589 = vsub.f32 %v499, %v563
    %v590 = vsub.f32 %v504, %v565
    %v591 = vsub.f32 %v509, %v567
    %v592 = vsub.f32 %v514, %v569
    %v593 = vsub.f32 %v519, %v571
    %v594 = vsub.f32 %v524, %v573
    %v595 = vsub.f32 %v529, %v575
    %v596 = vsub.f32 %v534, %v577
    %v597 = vsub.f32 %v539, %v579
    %v598 = vsub.f32 %v544, %v581
    %v599 = vsub.f32 %v549, %v583
    %v600 = vmul.f32 %v584, 1.442695
    %v601 = vpow.pop %v600
    %v602 = vmul.f32 %v585, 1.442695
    %v603 = vpow.pop %v602
    %v604 = vmul.f32 %v586, 1.442695
    %v605 = vpow.pop %v604
    %v606 = vmul.f32 %v587, 1.442695
    %v607 = vpow.pop %v606
    %v608 = vmul.f32 %v588, 1.442695
    %v609 = vpow.pop %v608
    %v610 = vmul.f32 %v589, 1.442695
    %v611 = vpow.pop %v610
    %v612 = vmul.f32 %v590, 1.442695
    %v613 = vpow.pop %v612
    %v614 = vmul.f32 %v591, 1.442695
    %v615 = vpow.pop %v614
    %v616 = vmul.f32 %v592, 1.442695
    %v617 = vpow.pop %v616
    %v618 = vmul.f32 %v593, 1.442695
    %v619 = vpow.pop %v618
    %v620 = vmul.f32 %v594, 1.442695
    %v621 = vpow.pop %v620
    %v622 = vmul.f32 %v595, 1.442695
    %v623 = vpow.pop %v622
    %v624 = vmul.f32 %v596, 1.442695
    %v625 = vpow.pop %v624
    %v626 = vmul.f32 %v597, 1.442695
    %v627 = vpow.pop %v626
    %v628 = vmul.f32 %v598, 1.442695
    %v629 = vpow.pop %v628
    %v630 = vmul.f32 %v599, 1.442695
    %v631 = vpow.pop %v630
    %632 = vadd.xlane.f32.xlu0 %v601
    %v633 = vpop.xlane.xlu0 %632
    %634 = vadd.xlane.f32.xlu0 %v603
    %v635 = vpop.xlane.xlu0 %634
    %636 = vadd.xlane.f32.xlu0 %v605
    %v637 = vpop.xlane.xlu0 %636
    %638 = vadd.xlane.f32.xlu0 %v607
    %v639 = vpop.xlane.xlu0 %638
    %640 = vadd.xlane.f32.xlu0 %v609
    %v641 = vpop.xlane.xlu0 %640
    %642 = vadd.xlane.f32.xlu0 %v611
    %v643 = vpop.xlane.xlu0 %642
    %644 = vadd.xlane.f32.xlu0 %v613
    %v645 = vpop.xlane.xlu0 %644
    %646 = vadd.xlane.f32.xlu0 %v615
    %v647 = vpop.xlane.xlu0 %646
    %648 = vadd.xlane.f32.xlu0 %v617
    %v649 = vpop.xlane.xlu0 %648
    %650 = vadd.xlane.f32.xlu0 %v619
    %v651 = vpop.xlane.xlu0 %650
    %652 = vadd.xlane.f32.xlu0 %v621
    %v653 = vpop.xlane.xlu0 %652
    %654 = vadd.xlane.f32.xlu0 %v623
    %v655 = vpop.xlane.xlu0 %654
    %656 = vadd.xlane.f32.xlu0 %v625
    %v657 = vpop.xlane.xlu0 %656
    %658 = vadd.xlane.f32.xlu0 %v627
    %v659 = vpop.xlane.xlu0 %658
    %660 = vadd.xlane.f32.xlu0 %v629
    %v661 = vpop.xlane.xlu0 %660
    %662 = vadd.xlane.f32.xlu0 %v631
    %v663 = vpop.xlane.xlu0 %662
    %v664 = vrcp.pop %v633
    %v665 = vrcp.pop %v635
    %v666 = vrcp.pop %v637
    %v667 = vrcp.pop %v639
    %v668 = vrcp.pop %v641
    %v669 = vrcp.pop %v643
    %v670 = vrcp.pop %v645
    %v671 = vrcp.pop %v647
    %v672 = vrcp.pop %v649
    %v673 = vrcp.pop %v651
    %v674 = vrcp.pop %v653
    %v675 = vrcp.pop %v655
    %v676 = vrcp.pop %v657
    %v677 = vrcp.pop %v659
    %v678 = vrcp.pop %v661
    %v679 = vrcp.pop %v663
    %v680 = vmul.f32 %v601, %v664
    %v681 = vmul.f32 %v603, %v665
    %v682 = vmul.f32 %v605, %v666
    %v683 = vmul.f32 %v607, %v667
    %v684 = vmul.f32 %v609, %v668
    %v685 = vmul.f32 %v611, %v669
    %v686 = vmul.f32 %v613, %v670
    %v687 = vmul.f32 %v615, %v671
    %v688 = vmul.f32 %v617, %v672
    %v689 = vmul.f32 %v619, %v673
    %v690 = vmul.f32 %v621, %v674
    %v691 = vmul.f32 %v623, %v675
    %v692 = vmul.f32 %v625, %v676
    %v693 = vmul.f32 %v627, %v677
    %v694 = vmul.f32 %v629, %v678
    %v695 = vmul.f32 %v631, %v679
    %vm696 = vcmp.ge.s32.totalorder %v293, 0
    %vm697 = vcmp.lt.s32.totalorder %v293, 4
    %vm698 = vmand %vm696, %vm697
    %v699 = vsel %vm698, 1, 0
    %vm700 = vcmp.eq.s32.totalorder %v699, 1
    %701 = vrot.lane.b32.xlu0 %v198, 96
    %v702 = vpop.permute.xlu0 %701
    %703 = vrot.lane.b32.xlu0 %v203, 96
    %v704 = vpop.permute.xlu0 %703
    %705 = vrot.lane.b32.xlu0 %v208, 96
    %v706 = vpop.permute.xlu0 %705
    %707 = vrot.lane.b32.xlu0 %v213, 96
    %v708 = vpop.permute.xlu0 %707
    %709 = vrot.lane.b32.xlu0 %v218, 96
    %v710 = vpop.permute.xlu0 %709
    %711 = vrot.lane.b32.xlu0 %v223, 96
    %v712 = vpop.permute.xlu0 %711
    %713 = vrot.lane.b32.xlu0 %v228, 96
    %v714 = vpop.permute.xlu0 %713
    %715 = vrot.lane.b32.xlu0 %v233, 96
    %v716 = vpop.permute.xlu0 %715
    %717 = vrot.lane.b32.xlu0 %v238, 96
    %v718 = vpop.permute.xlu0 %717
    %719 = vrot.lane.b32.xlu0 %v243, 96
    %v720 = vpop.permute.xlu0 %719
    %721 = vrot.lane.b32.xlu0 %v248, 96
    %v722 = vpop.permute.xlu0 %721
    %723 = vrot.lane.b32.xlu0 %v253, 96
    %v724 = vpop.permute.xlu0 %723
    %725 = vrot.lane.b32.xlu0 %v258, 96
    %v726 = vpop.permute.xlu0 %725
    %727 = vrot.lane.b32.xlu0 %v263, 96
    %v728 = vpop.permute.xlu0 %727
    %729 = vrot.lane.b32.xlu0 %v268, 96
    %v730 = vpop.permute.xlu0 %729
    %731 = vrot.lane.b32.xlu0 %v273, 96
    %v732 = vpop.permute.xlu0 %731
    %v749 = vsel %vm700, %v702, 0.0
    %v750 = vsel %vm700, %v704, 0.0
    %v751 = vsel %vm700, %v706, 0.0
    %v752 = vsel %vm700, %v708, 0.0
    %v753 = vsel %vm700, %v710, 0.0
    %v754 = vsel %vm700, %v712, 0.0
    %v755 = vsel %vm700, %v714, 0.0
    %v756 = vsel %vm700, %v716, 0.0
    %v757 = vsel %vm700, %v718, 0.0
    %v758 = vsel %vm700, %v720, 0.0
    %v759 = vsel %vm700, %v722, 0.0
    %v760 = vsel %vm700, %v724, 0.0
    %v761 = vsel %vm700, %v726, 0.0
    %v762 = vsel %vm700, %v728, 0.0
    %v763 = vsel %vm700, %v730, 0.0
    %v764 = vsel %vm700, %v732, 0.0
    %765 = vrot.lane.b32.xlu0 %v198, 124
    %v766 = vpop.permute.xlu0 %765
    %767 = vrot.lane.b32.xlu0 %v203, 124
    %v768 = vpop.permute.xlu0 %767
    %769 = vrot.lane.b32.xlu0 %v208, 124
    %v770 = vpop.permute.xlu0 %769
    %771 = vrot.lane.b32.xlu0 %v213, 124
    %v772 = vpop.permute.xlu0 %771
    %773 = vrot.lane.b32.xlu0 %v218, 124
    %v774 = vpop.permute.xlu0 %773
    %775 = vrot.lane.b32.xlu0 %v223, 124
    %v776 = vpop.permute.xlu0 %775
    %777 = vrot.lane.b32.xlu0 %v228, 124
    %v778 = vpop.permute.xlu0 %777
    %779 = vrot.lane.b32.xlu0 %v233, 124
    %v780 = vpop.permute.xlu0 %779
    %781 = vrot.lane.b32.xlu0 %v238, 124
    %v782 = vpop.permute.xlu0 %781
    %783 = vrot.lane.b32.xlu0 %v243, 124
    %v784 = vpop.permute.xlu0 %783
    %785 = vrot.lane.b32.xlu0 %v248, 124
    %v786 = vpop.permute.xlu0 %785
    %787 = vrot.lane.b32.xlu0 %v253, 124
    %v788 = vpop.permute.xlu0 %787
    %789 = vrot.lane.b32.xlu0 %v258, 124
    %v790 = vpop.permute.xlu0 %789
    %791 = vrot.lane.b32.xlu0 %v263, 124
    %v792 = vpop.permute.xlu0 %791
    %793 = vrot.lane.b32.xlu0 %v268, 124
    %v794 = vpop.permute.xlu0 %793
    %795 = vrot.lane.b32.xlu0 %v273, 124
    %v796 = vpop.permute.xlu0 %795
    %797 = vrot.lane.b32.xlu0 %v198, 108
    %v798 = vpop.permute.xlu0 %797
    %799 = vrot.lane.b32.xlu0 %v203, 108
    %v800 = vpop.permute.xlu0 %799
    %801 = vrot.lane.b32.xlu0 %v208, 108
    %v802 = vpop.permute.xlu0 %801
    %803 = vrot.lane.b32.xlu0 %v213, 108
    %v804 = vpop.permute.xlu0 %803
    %805 = vrot.lane.b32.xlu0 %v218, 108
    %v806 = vpop.permute.xlu0 %805
    %807 = vrot.lane.b32.xlu0 %v223, 108
    %v808 = vpop.permute.xlu0 %807
    %809 = vrot.lane.b32.xlu0 %v228, 108
    %v810 = vpop.permute.xlu0 %809
    %811 = vrot.lane.b32.xlu0 %v233, 108
    %v812 = vpop.permute.xlu0 %811
    %813 = vrot.lane.b32.xlu0 %v238, 108
    %v814 = vpop.permute.xlu0 %813
    %815 = vrot.lane.b32.xlu0 %v243, 108
    %v816 = vpop.permute.xlu0 %815
    %817 = vrot.lane.b32.xlu0 %v248, 108
    %v818 = vpop.permute.xlu0 %817
    %819 = vrot.lane.b32.xlu0 %v253, 108
    %v820 = vpop.permute.xlu0 %819
    %821 = vrot.lane.b32.xlu0 %v258, 108
    %v822 = vpop.permute.xlu0 %821
    %823 = vrot.lane.b32.xlu0 %v263, 108
    %v824 = vpop.permute.xlu0 %823
    %825 = vrot.lane.b32.xlu0 %v268, 108
    %v826 = vpop.permute.xlu0 %825
    %827 = vrot.lane.b32.xlu0 %v273, 108
    %v828 = vpop.permute.xlu0 %827
    %v829 = vsel %vm342, %v766, 0
    %v831 = vsel %vm342, %v768, 0
    %v833 = vsel %vm342, %v770, 0
    %v835 = vsel %vm342, %v772, 0
    %v837 = vsel %vm342, %v774, 0
    %v839 = vsel %vm342, %v776, 0
    %v841 = vsel %vm342, %v778, 0
    %v843 = vsel %vm342, %v780, 0
    %v845 = vsel %vm342, %v782, 0
    %v847 = vsel %vm342, %v784, 0
    %v849 = vsel %vm342, %v786, 0
    %v851 = vsel %vm342, %v788, 0
    %v853 = vsel %vm342, %v790, 0
    %v855 = vsel %vm342, %v792, 0
    %v857 = vsel %vm342, %v794, 0
    %v859 = vsel %vm342, %v796, 0
    %v861 = vsel %vm342, %v798, 0
    %v863 = vsel %vm342, %v800, 0
    %v865 = vsel %vm342, %v802, 0
    %v867 = vsel %vm342, %v804, 0
    %v869 = vsel %vm342, %v806, 0
    %v871 = vsel %vm342, %v808, 0
    %v873 = vsel %vm342, %v810, 0
    %v875 = vsel %vm342, %v812, 0
    %v877 = vsel %vm342, %v814, 0
    %v879 = vsel %vm342, %v816, 0
    %v881 = vsel %vm342, %v818, 0
    %v883 = vsel %vm342, %v820, 0
    %v885 = vsel %vm342, %v822, 0
    %v887 = vsel %vm342, %v824, 0
    %v889 = vsel %vm342, %v826, 0
    %v891 = vsel %vm342, %v828, 0
    %893 = vmatprep.subr.mxu0 0.0
    %894 = vmatpush1.xpose.msra.mxu0 %v861
    %895 = vmatprep.subr.mxu0 0.0
    %896 = vmatpush1.xpose.msra.mxu0 %v863
    %897 = vmatprep.subr.mxu0 0.0
    %898 = vmatpush1.xpose.msra.mxu0 %v865
    %899 = vmatprep.subr.mxu0 0.0
    %900 = vmatpush1.xpose.msra.mxu0 %v867
    %901 = vmatprep.subr.mxu0 0.0
    %902 = vmatpush1.xpose.msra.mxu0 %v869
    %903 = vmatprep.subr.mxu0 0.0
    %904 = vmatpush1.xpose.msra.mxu0 %v871
    %905 = vmatprep.subr.mxu0 0.0
    %906 = vmatpush1.xpose.msra.mxu0 %v873
    %907 = vmatprep.subr.mxu0 0.0
    %908 = vmatpush1.xpose.msra.mxu0 %v875
    %909 = vmatprep.subr.mxu0 0.0
    %910 = vmatpush1.xpose.msra.mxu0 %v877
    %911 = vmatprep.subr.mxu0 0.0
    %912 = vmatpush1.xpose.msra.mxu0 %v879
    %913 = vmatprep.subr.mxu0 0.0
    %914 = vmatpush1.xpose.msra.mxu0 %v881
    %915 = vmatprep.subr.mxu0 0.0
    %916 = vmatpush1.xpose.msra.mxu0 %v883
    %917 = vmatprep.subr.mxu0 0.0
    %918 = vmatpush1.xpose.msra.mxu0 %v885
    %919 = vmatprep.subr.mxu0 0.0
    %920 = vmatpush1.xpose.msra.mxu0 %v887
    %921 = vmatprep.subr.mxu0 0.0
    %922 = vmatpush1.xpose.msra.mxu0 %v889
    %923 = vmatprep.subr.mxu0 0.0
    %924 = vmatpush1.xpose.msra.mxu0 %v891
    %925 = vmatprep.subr.mxu0 0.0
    %926 = vmatpush1.xpose.msra.mxu0 0.0
    %927 = vmatprep.subr.mxu0 0.0
    %928 = vmatpush1.xpose.msra.mxu0 0.0
    %929 = vmatprep.subr.mxu0 0.0
    %930 = vmatpush1.xpose.msra.mxu0 0.0
    %931 = vmatprep.subr.mxu0 0.0
    %932 = vmatpush1.xpose.msra.mxu0 0.0
    %933 = vmatprep.subr.mxu0 0.0
    %934 = vmatpush1.xpose.msra.mxu0 0.0
    %935 = vmatprep.subr.mxu0 0.0
    %936 = vmatpush1.xpose.msra.mxu0 0.0
    %937 = vmatprep.subr.mxu0 0.0
    %938 = vmatpush1.xpose.msra.mxu0 0.0
    %939 = vmatprep.subr.mxu0 0.0
    %940 = vmatpush1.xpose.msra.mxu0 0.0
    %941 = vmatprep.subr.mxu0 0.0
    %942 = vmatpush1.xpose.msra.mxu0 0.0
    %943 = vmatprep.subr.mxu0 0.0
    %944 = vmatpush1.xpose.msra.mxu0 0.0
    %945 = vmatprep.subr.mxu0 0.0
    %946 = vmatpush1.xpose.msra.mxu0 0.0
    %947 = vmatprep.subr.mxu0 0.0
    %948 = vmatpush1.xpose.msra.mxu0 0.0
    %949 = vmatprep.subr.mxu0 0.0
    %950 = vmatpush1.xpose.msra.mxu0 0.0
    %951 = vmatprep.subr.mxu0 0.0
    %952 = vmatpush1.xpose.msra.mxu0 0.0
    %953 = vmatprep.subr.mxu0 0.0
    %954 = vmatpush1.xpose.msra.mxu0 0.0
    %955 = vmatprep.subr.mxu0 0.0
    %956 = vmatpush1.xpose.msra.mxu0 0.0
    %957 = vmatprep.mubr.f32.mxu0 0.0
    %958 = vmatmul.mubr.f32.gmra.mrb[0].mxu0 %v829
    %v959 = vpop.f32.mrb[0].mxu0
    %v960 = vadd.f32 %v276, %v959
    %v961 = vpop.f32.mrb[0].mxu0
    %962 = vmatprep.mubr.f32.mxu0 0.0
    %963 = vmatmul.mubr.f32.gmra.mrb[0].mxu0 %v831
    %v964 = vpop.f32.mrb[0].mxu0
    %v965 = vadd.f32 %v277, %v964
    %v966 = vpop.f32.mrb[0].mxu0
    %967 = vmatprep.mubr.f32.mxu0 0.0
    %968 = vmatmul.mubr.f32.gmra.mrb[0].mxu0 %v833
    %v969 = vpop.f32.mrb[0].mxu0
    %v970 = vadd.f32 %v278, %v969
    %v971 = vpop.f32.mrb[0].mxu0
    %972 = vmatprep.mubr.f32.mxu0 0.0
    %973 = vmatmul.mubr.f32.gmra.mrb[0].mxu0 %v835
    %v974 = vpop.f32.mrb[0].mxu0
    %v975 = vadd.f32 %v279, %v974
    %v976 = vpop.f32.mrb[0].mxu0
    %977 = vmatprep.mubr.f32.mxu0 0.0
    %978 = vmatmul.mubr.f32.gmra.mrb[0].mxu0 %v837
    %v979 = vpop.f32.mrb[0].mxu0
    %v980 = vadd.f32 %v280, %v979
    %v981 = vpop.f32.mrb[0].mxu0
    %982 = vmatprep.mubr.f32.mxu0 0.0
    %983 = vmatmul.mubr.f32.gmra.mrb[0].mxu0 %v839
    %v984 = vpop.f32.mrb[0].mxu0
    %v985 = vadd.f32 %v281, %v984
    %v986 = vpop.f32.mrb[0].mxu0
    %987 = vmatprep.mubr.f32.mxu0 0.0
    %988 = vmatmul.mubr.f32.gmra.mrb[0].mxu0 %v841
    %v989 = vpop.f32.mrb[0].mxu0
    %v990 = vadd.f32 %v282, %v989
    %v991 = vpop.f32.mrb[0].mxu0
    %992 = vmatprep.mubr.f32.mxu0 0.0
    %993 = vmatmul.mubr.f32.gmra.mrb[0].mxu0 %v843
    %v994 = vpop.f32.mrb[0].mxu0
    %v995 = vadd.f32 %v283, %v994
    %v996 = vpop.f32.mrb[0].mxu0
    %997 = vmatprep.mubr.f32.mxu0 0.0
    %998 = vmatmul.mubr.f32.gmra.mrb[0].mxu0 %v845
    %v999 = vpop.f32.mrb[0].mxu0
    %v1000 = vadd.f32 %v284, %v999
    %v1001 = vpop.f32.mrb[0].mxu0
    %1002 = vmatprep.mubr.f32.mxu0 0.0
    %1003 = vmatmul.mubr.f32.gmra.mrb[0].mxu0 %v847
    %v1004 = vpop.f32.mrb[0].mxu0
    %v1005 = vadd.f32 %v285, %v1004
    %v1006 = vpop.f32.mrb[0].mxu0
    %1007 = vmatprep.mubr.f32.mxu0 0.0
    %1008 = vmatmul.mubr.f32.gmra.mrb[0].mxu0 %v849
    %v1009 = vpop.f32.mrb[0].mxu0
    %v1010 = vadd.f32 %v286, %v1009
    %v1011 = vpop.f32.mrb[0].mxu0
    %1012 = vmatprep.mubr.f32.mxu0 0.0
    %1013 = vmatmul.mubr.f32.gmra.mrb[0].mxu0 %v851
    %v1014 = vpop.f32.mrb[0].mxu0
    %v1015 = vadd.f32 %v287, %v1014
    %v1016 = vpop.f32.mrb[0].mxu0
    %1017 = vmatprep.mubr.f32.mxu0 0.0
    %1018 = vmatmul.mubr.f32.gmra.mrb[0].mxu0 %v853
    %v1019 = vpop.f32.mrb[0].mxu0
    %v1020 = vadd.f32 %v288, %v1019
    %v1021 = vpop.f32.mrb[0].mxu0
    %1022 = vmatprep.mubr.f32.mxu0 0.0
    %1023 = vmatmul.mubr.f32.gmra.mrb[0].mxu0 %v855
    %v1024 = vpop.f32.mrb[0].mxu0
    %v1025 = vadd.f32 %v289, %v1024
    %v1026 = vpop.f32.mrb[0].mxu0
    %1027 = vmatprep.mubr.f32.mxu0 0.0
    %1028 = vmatmul.mubr.f32.gmra.mrb[0].mxu0 %v857
    %v1029 = vpop.f32.mrb[0].mxu0
    %v1030 = vadd.f32 %v290, %v1029
    %v1031 = vpop.f32.mrb[0].mxu0
    %1032 = vmatprep.mubr.f32.mxu0 0.0
    %1033 = vmatmul.mubr.f32.gmra.mrb[0].mxu0 %v859
    %v1034 = vpop.f32.mrb[0].mxu0
    %v1035 = vadd.f32 %v291, %v1034
    %v1036 = vpop.f32.mrb[0].mxu0
    %1037 = vdwg.mxu0
    %1038 = vmax.xlane.f32.xlu0 %v960
    %v1039 = vpop.xlane.xlu0 %1038
    %1040 = vmax.xlane.f32.xlu0 %v965
    %v1041 = vpop.xlane.xlu0 %1040
    %1042 = vmax.xlane.f32.xlu0 %v970
    %v1043 = vpop.xlane.xlu0 %1042
    %1044 = vmax.xlane.f32.xlu0 %v975
    %v1045 = vpop.xlane.xlu0 %1044
    %1046 = vmax.xlane.f32.xlu0 %v980
    %v1047 = vpop.xlane.xlu0 %1046
    %1048 = vmax.xlane.f32.xlu0 %v985
    %v1049 = vpop.xlane.xlu0 %1048
    %1050 = vmax.xlane.f32.xlu0 %v990
    %v1051 = vpop.xlane.xlu0 %1050
    %1052 = vmax.xlane.f32.xlu0 %v995
    %v1053 = vpop.xlane.xlu0 %1052
    %1054 = vmax.xlane.f32.xlu0 %v1000
    %v1055 = vpop.xlane.xlu0 %1054
    %1056 = vmax.xlane.f32.xlu0 %v1005
    %v1057 = vpop.xlane.xlu0 %1056
    %1058 = vmax.xlane.f32.xlu0 %v1010
    %v1059 = vpop.xlane.xlu0 %1058
    %1060 = vmax.xlane.f32.xlu0 %v1015
    %v1061 = vpop.xlane.xlu0 %1060
    %1062 = vmax.xlane.f32.xlu0 %v1020
    %v1063 = vpop.xlane.xlu0 %1062
    %1064 = vmax.xlane.f32.xlu0 %v1025
    %v1065 = vpop.xlane.xlu0 %1064
    %1066 = vmax.xlane.f32.xlu0 %v1030
    %v1067 = vpop.xlane.xlu0 %1066
    %1068 = vmax.xlane.f32.xlu0 %v1035
    %v1069 = vpop.xlane.xlu0 %1068
    %v1070 = vsub.f32 %v960, %v1039
    %v1071 = vsub.f32 %v965, %v1041
    %v1072 = vsub.f32 %v970, %v1043
    %v1073 = vsub.f32 %v975, %v1045
    %v1074 = vsub.f32 %v980, %v1047
    %v1075 = vsub.f32 %v985, %v1049
    %v1076 = vsub.f32 %v990, %v1051
    %v1077 = vsub.f32 %v995, %v1053
    %v1078 = vsub.f32 %v1000, %v1055
    %v1079 = vsub.f32 %v1005, %v1057
    %v1080 = vsub.f32 %v1010, %v1059
    %v1081 = vsub.f32 %v1015, %v1061
    %v1082 = vsub.f32 %v1020, %v1063
    %v1083 = vsub.f32 %v1025, %v1065
    %v1084 = vsub.f32 %v1030, %v1067
    %v1085 = vsub.f32 %v1035, %v1069
    %v1086 = vmul.f32 %v1070, 1.442695
    %v1087 = vpow.pop %v1086
    %v1088 = vmul.f32 %v1071, 1.442695
    %v1089 = vpow.pop %v1088
    %v1090 = vmul.f32 %v1072, 1.442695
    %v1091 = vpow.pop %v1090
    %v1092 = vmul.f32 %v1073, 1.442695
    %v1093 = vpow.pop %v1092
    %v1094 = vmul.f32 %v1074, 1.442695
    %v1095 = vpow.pop %v1094
    %v1096 = vmul.f32 %v1075, 1.442695
    %v1097 = vpow.pop %v1096
    %v1098 = vmul.f32 %v1076, 1.442695
    %v1099 = vpow.pop %v1098
    %v1100 = vmul.f32 %v1077, 1.442695
    %v1101 = vpow.pop %v1100
    %v1102 = vmul.f32 %v1078, 1.442695
    %v1103 = vpow.pop %v1102
    %v1104 = vmul.f32 %v1079, 1.442695
    %v1105 = vpow.pop %v1104
    %v1106 = vmul.f32 %v1080, 1.442695
    %v1107 = vpow.pop %v1106
    %v1108 = vmul.f32 %v1081, 1.442695
    %v1109 = vpow.pop %v1108
    %v1110 = vmul.f32 %v1082, 1.442695
    %v1111 = vpow.pop %v1110
    %v1112 = vmul.f32 %v1083, 1.442695
    %v1113 = vpow.pop %v1112
    %v1114 = vmul.f32 %v1084, 1.442695
    %v1115 = vpow.pop %v1114
    %v1116 = vmul.f32 %v1085, 1.442695
    %v1117 = vpow.pop %v1116
    %1118 = vadd.xlane.f32.xlu0 %v1087
    %v1119 = vpop.xlane.xlu0 %1118
    %1120 = vadd.xlane.f32.xlu0 %v1089
    %v1121 = vpop.xlane.xlu0 %1120
    %1122 = vadd.xlane.f32.xlu0 %v1091
    %v1123 = vpop.xlane.xlu0 %1122
    %1124 = vadd.xlane.f32.xlu0 %v1093
    %v1125 = vpop.xlane.xlu0 %1124
    %1126 = vadd.xlane.f32.xlu0 %v1095
    %v1127 = vpop.xlane.xlu0 %1126
    %1128 = vadd.xlane.f32.xlu0 %v1097
    %v1129 = vpop.xlane.xlu0 %1128
    %1130 = vadd.xlane.f32.xlu0 %v1099
    %v1131 = vpop.xlane.xlu0 %1130
    %1132 = vadd.xlane.f32.xlu0 %v1101
    %v1133 = vpop.xlane.xlu0 %1132
    %1134 = vadd.xlane.f32.xlu0 %v1103
    %v1135 = vpop.xlane.xlu0 %1134
    %1136 = vadd.xlane.f32.xlu0 %v1105
    %v1137 = vpop.xlane.xlu0 %1136
    %1138 = vadd.xlane.f32.xlu0 %v1107
    %v1139 = vpop.xlane.xlu0 %1138
    %1140 = vadd.xlane.f32.xlu0 %v1109
    %v1141 = vpop.xlane.xlu0 %1140
    %1142 = vadd.xlane.f32.xlu0 %v1111
    %v1143 = vpop.xlane.xlu0 %1142
    %1144 = vadd.xlane.f32.xlu0 %v1113
    %v1145 = vpop.xlane.xlu0 %1144
    %1146 = vadd.xlane.f32.xlu0 %v1115
    %v1147 = vpop.xlane.xlu0 %1146
    %1148 = vadd.xlane.f32.xlu0 %v1117
    %v1149 = vpop.xlane.xlu0 %1148
    %v1150 = vrcp.pop %v1119
    %v1151 = vrcp.pop %v1121
    %v1152 = vrcp.pop %v1123
    %v1153 = vrcp.pop %v1125
    %v1154 = vrcp.pop %v1127
    %v1155 = vrcp.pop %v1129
    %v1156 = vrcp.pop %v1131
    %v1157 = vrcp.pop %v1133
    %v1158 = vrcp.pop %v1135
    %v1159 = vrcp.pop %v1137
    %v1160 = vrcp.pop %v1139
    %v1161 = vrcp.pop %v1141
    %v1162 = vrcp.pop %v1143
    %v1163 = vrcp.pop %v1145
    %v1164 = vrcp.pop %v1147
    %v1165 = vrcp.pop %v1149
    %v1166 = vmul.f32 %v1087, %v1150
    %v1167 = vmul.f32 %v1089, %v1151
    %v1168 = vmul.f32 %v1091, %v1152
    %v1169 = vmul.f32 %v1093, %v1153
    %v1170 = vmul.f32 %v1095, %v1154
    %v1171 = vmul.f32 %v1097, %v1155
    %v1172 = vmul.f32 %v1099, %v1156
    %v1173 = vmul.f32 %v1101, %v1157
    %v1174 = vmul.f32 %v1103, %v1158
    %v1175 = vmul.f32 %v1105, %v1159
    %v1176 = vmul.f32 %v1107, %v1160
    %v1177 = vmul.f32 %v1109, %v1161
    %v1178 = vmul.f32 %v1111, %v1162
    %v1179 = vmul.f32 %v1113, %v1163
    %v1180 = vmul.f32 %v1115, %v1164
    %v1181 = vmul.f32 %v1117, %v1165
    %vm1182 = vcmp.ge.s32.totalorder %v293, 4
    %vm1183 = vcmp.lt.s32.totalorder %v293, 8
    %vm1184 = vmand %vm1182, %vm1183
    %v1185 = vsel %vm1184, 1, 0
    %vm1186 = vcmp.eq.s32.totalorder %v1185, 1
    %v1187 = vsel %vm1186, %v702, 0.0
    %v1188 = vsel %vm1186, %v704, 0.0
    %v1189 = vsel %vm1186, %v706, 0.0
    %v1190 = vsel %vm1186, %v708, 0.0
    %v1191 = vsel %vm1186, %v710, 0.0
    %v1192 = vsel %vm1186, %v712, 0.0
    %v1193 = vsel %vm1186, %v714, 0.0
    %v1194 = vsel %vm1186, %v716, 0.0
    %v1195 = vsel %vm1186, %v718, 0.0
    %v1196 = vsel %vm1186, %v720, 0.0
    %v1197 = vsel %vm1186, %v722, 0.0
    %v1198 = vsel %vm1186, %v724, 0.0
    %v1199 = vsel %vm1186, %v726, 0.0
    %v1200 = vsel %vm1186, %v728, 0.0
    %v1201 = vsel %vm1186, %v730, 0.0
    %v1202 = vsel %vm1186, %v732, 0.0
    %1203 = vmatprep.subr.mxu0 0.0
    %1204 = vmatpush1.msra.mxu0 %v1187
    %1205 = vmatprep.subr.mxu0 0.0
    %1206 = vmatpush1.msra.mxu0 %v1188
    %1207 = vmatprep.subr.mxu0 0.0
    %1208 = vmatpush1.msra.mxu0 %v1189
    %1209 = vmatprep.subr.mxu0 0.0
    %1210 = vmatpush1.msra.mxu0 %v1190
    %1211 = vmatprep.subr.mxu0 0.0
    %1212 = vmatpush1.msra.mxu0 %v1191
    %1213 = vmatprep.subr.mxu0 0.0
    %1214 = vmatpush1.msra.mxu0 %v1192
    %1215 = vmatprep.subr.mxu0 0.0
    %1216 = vmatpush1.msra.mxu0 %v1193
    %1217 = vmatprep.subr.mxu0 0.0
    %1218 = vmatpush1.msra.mxu0 %v1194
    %1219 = vmatprep.subr.mxu0 0.0
    %1220 = vmatpush1.msra.mxu0 %v1195
    %1221 = vmatprep.subr.mxu0 0.0
    %1222 = vmatpush1.msra.mxu0 %v1196
    %1223 = vmatprep.subr.mxu0 0.0
    %1224 = vmatpush1.msra.mxu0 %v1197
    %1225 = vmatprep.subr.mxu0 0.0
    %1226 = vmatpush1.msra.mxu0 %v1198
    %1227 = vmatprep.subr.mxu0 0.0
    %1228 = vmatpush1.msra.mxu0 %v1199
    %1229 = vmatprep.subr.mxu0 0.0
    %1230 = vmatpush1.msra.mxu0 %v1200
    %1231 = vmatprep.subr.mxu0 0.0
    %1232 = vmatpush1.msra.mxu0 %v1201
    %1233 = vmatprep.subr.mxu0 0.0
    %1234 = vmatpush1.msra.mxu0 %v1202
    %1235 = vmatprep.subr.mxu0 0.0
    %1236 = vmatpush1.msra.mxu0 0.0
    %1237 = vmatprep.subr.mxu0 0.0
    %1238 = vmatpush1.msra.mxu0 0.0
    %1239 = vmatprep.subr.mxu0 0.0
    %1240 = vmatpush1.msra.mxu0 0.0
    %1241 = vmatprep.subr.mxu0 0.0
    %1242 = vmatpush1.msra.mxu0 0.0
    %1243 = vmatprep.subr.mxu0 0.0
    %1244 = vmatpush1.msra.mxu0 0.0
    %1245 = vmatprep.subr.mxu0 0.0
    %1246 = vmatpush1.msra.mxu0 0.0
    %1247 = vmatprep.subr.mxu0 0.0
    %1248 = vmatpush1.msra.mxu0 0.0
    %1249 = vmatprep.subr.mxu0 0.0
    %1250 = vmatpush1.msra.mxu0 0.0
    %1251 = vmatprep.subr.mxu0 0.0
    %1252 = vmatpush1.msra.mxu0 0.0
    %1253 = vmatprep.subr.mxu0 0.0
    %1254 = vmatpush1.msra.mxu0 0.0
    %1255 = vmatprep.subr.mxu0 0.0
    %1256 = vmatpush1.msra.mxu0 0.0
    %1257 = vmatprep.subr.mxu0 0.0
    %1258 = vmatpush1.msra.mxu0 0.0
    %1259 = vmatprep.subr.mxu0 0.0
    %1260 = vmatpush1.msra.mxu0 0.0
    %1261 = vmatprep.subr.mxu0 0.0
    %1262 = vmatpush1.msra.mxu0 0.0
    %1263 = vmatprep.subr.mxu0 0.0
    %1264 = vmatpush1.msra.mxu0 0.0
    %1265 = vmatprep.subr.mxu0 0.0
    %1266 = vmatpush1.msra.mxu0 0.0
    %1267 = vmatprep.mubr.f32.mxu0 0.0
    %1268 = vmatmul.mubr.f32.gmra.mrb[0].mxu0 %v1166
    %v1269 = vpop.f32.mrb[0].mxu0
    %v1270 = vadd.f32 0.0, %v1269
    %v1271 = vpop.f32.mrb[0].mxu0
    %1272 = vmatprep.mubr.f32.mxu0 0.0
    %1273 = vmatmul.mubr.f32.gmra.mrb[0].mxu0 %v1167
    %v1274 = vpop.f32.mrb[0].mxu0
    %v1275 = vadd.f32 0.0, %v1274
    %v1276 = vpop.f32.mrb[0].mxu0
    %1277 = vmatprep.mubr.f32.mxu0 0.0
    %1278 = vmatmul.mubr.f32.gmra.mrb[0].mxu0 %v1168
    %v1279 = vpop.f32.mrb[0].mxu0
    %v1280 = vadd.f32 0.0, %v1279
    %v1281 = vpop.f32.mrb[0].mxu0
    %1282 = vmatprep.mubr.f32.mxu0 0.0
    %1283 = vmatmul.mubr.f32.gmra.mrb[0].mxu0 %v1169
    %v1284 = vpop.f32.mrb[0].mxu0
    %v1285 = vadd.f32 0.0, %v1284
    %v1286 = vpop.f32.mrb[0].mxu0
    %1287 = vmatprep.mubr.f32.mxu0 0.0
    %1288 = vmatmul.mubr.f32.gmra.mrb[0].mxu0 %v1170
    %v1289 = vpop.f32.mrb[0].mxu0
    %v1290 = vadd.f32 0.0, %v1289
    %v1291 = vpop.f32.mrb[0].mxu0
    %1292 = vmatprep.mubr.f32.mxu0 0.0
    %1293 = vmatmul.mubr.f32.gmra.mrb[0].mxu0 %v1171
    %v1294 = vpop.f32.mrb[0].mxu0
    %v1295 = vadd.f32 0.0, %v1294
    %v1296 = vpop.f32.mrb[0].mxu0
    %1297 = vmatprep.mubr.f32.mxu0 0.0
    %1298 = vmatmul.mubr.f32.gmra.mrb[0].mxu0 %v1172
    %v1299 = vpop.f32.mrb[0].mxu0
    %v1300 = vadd.f32 0.0, %v1299
    %v1301 = vpop.f32.mrb[0].mxu0
    %1302 = vmatprep.mubr.f32.mxu0 0.0
    %1303 = vmatmul.mubr.f32.gmra.mrb[0].mxu0 %v1173
    %v1304 = vpop.f32.mrb[0].mxu0
    %v1305 = vadd.f32 0.0, %v1304
    %v1306 = vpop.f32.mrb[0].mxu0
    %1307 = vmatprep.mubr.f32.mxu0 0.0
    %1308 = vmatmul.mubr.f32.gmra.mrb[0].mxu0 %v1174
    %v1309 = vpop.f32.mrb[0].mxu0
    %v1310 = vadd.f32 0.0, %v1309
    %v1311 = vpop.f32.mrb[0].mxu0
    %1312 = vmatprep.mubr.f32.mxu0 0.0
    %1313 = vmatmul.mubr.f32.gmra.mrb[0].mxu0 %v1175
    %v1314 = vpop.f32.mrb[0].mxu0
    %v1315 = vadd.f32 0.0, %v1314
    %v1316 = vpop.f32.mrb[0].mxu0
    %1317 = vmatprep.mubr.f32.mxu0 0.0
    %1318 = vmatmul.mubr.f32.gmra.mrb[0].mxu0 %v1176
    %v1319 = vpop.f32.mrb[0].mxu0
    %v1320 = vadd.f32 0.0, %v1319
    %v1321 = vpop.f32.mrb[0].mxu0
    %1322 = vmatprep.mubr.f32.mxu0 0.0
    %1323 = vmatmul.mubr.f32.gmra.mrb[0].mxu0 %v1177
    %v1324 = vpop.f32.mrb[0].mxu0
    %v1325 = vadd.f32 0.0, %v1324
    %v1326 = vpop.f32.mrb[0].mxu0
    %1327 = vmatprep.mubr.f32.mxu0 0.0
    %1328 = vmatmul.mubr.f32.gmra.mrb[0].mxu0 %v1178
    %v1329 = vpop.f32.mrb[0].mxu0
    %v1330 = vadd.f32 0.0, %v1329
    %v1331 = vpop.f32.mrb[0].mxu0
    %1332 = vmatprep.mubr.f32.mxu0 0.0
    %1333 = vmatmul.mubr.f32.gmra.mrb[0].mxu0 %v1179
    %v1334 = vpop.f32.mrb[0].mxu0
    %v1335 = vadd.f32 0.0, %v1334
    %v1336 = vpop.f32.mrb[0].mxu0
    %1337 = vmatprep.mubr.f32.mxu0 0.0
    %1338 = vmatmul.mubr.f32.gmra.mrb[0].mxu0 %v1180
    %v1339 = vpop.f32.mrb[0].mxu0
    %v1340 = vadd.f32 0.0, %v1339
    %v1341 = vpop.f32.mrb[0].mxu0
    %1342 = vmatprep.mubr.f32.mxu0 0.0
    %1343 = vmatmul.mubr.f32.gmra.mrb[0].mxu0 %v1181
    %v1344 = vpop.f32.mrb[0].mxu0
    %v1345 = vadd.f32 0.0, %v1344
    %v1346 = vpop.f32.mrb[0].mxu0
    %1347 = vdwg.mxu0
    %1348 = vmatprep.subr.mxu0 0.0
    %1349 = vmatpush1.msra.mxu0 %v749
    %1350 = vmatprep.subr.mxu0 0.0
    %1351 = vmatpush1.msra.mxu0 %v750
    %1352 = vmatprep.subr.mxu0 0.0
    %1353 = vmatpush1.msra.mxu0 %v751
    %1354 = vmatprep.subr.mxu0 0.0
    %1355 = vmatpush1.msra.mxu0 %v752
    %1356 = vmatprep.subr.mxu0 0.0
    %1357 = vmatpush1.msra.mxu0 %v753
    %1358 = vmatprep.subr.mxu0 0.0
    %1359 = vmatpush1.msra.mxu0 %v754
    %1360 = vmatprep.subr.mxu0 0.0
    %1361 = vmatpush1.msra.mxu0 %v755
    %1362 = vmatprep.subr.mxu0 0.0
    %1363 = vmatpush1.msra.mxu0 %v756
    %1364 = vmatprep.subr.mxu0 0.0
    %1365 = vmatpush1.msra.mxu0 %v757
    %1366 = vmatprep.subr.mxu0 0.0
    %1367 = vmatpush1.msra.mxu0 %v758
    %1368 = vmatprep.subr.mxu0 0.0
    %1369 = vmatpush1.msra.mxu0 %v759
    %1370 = vmatprep.subr.mxu0 0.0
    %1371 = vmatpush1.msra.mxu0 %v760
    %1372 = vmatprep.subr.mxu0 0.0
    %1373 = vmatpush1.msra.mxu0 %v761
    %1374 = vmatprep.subr.mxu0 0.0
    %1375 = vmatpush1.msra.mxu0 %v762
    %1376 = vmatprep.subr.mxu0 0.0
    %1377 = vmatpush1.msra.mxu0 %v763
    %1378 = vmatprep.subr.mxu0 0.0
    %1379 = vmatpush1.msra.mxu0 %v764
    %1380 = vmatprep.subr.mxu0 0.0
    %1381 = vmatpush1.msra.mxu0 0.0
    %1382 = vmatprep.subr.mxu0 0.0
    %1383 = vmatpush1.msra.mxu0 0.0
    %1384 = vmatprep.subr.mxu0 0.0
    %1385 = vmatpush1.msra.mxu0 0.0
    %1386 = vmatprep.subr.mxu0 0.0
    %1387 = vmatpush1.msra.mxu0 0.0
    %1388 = vmatprep.subr.mxu0 0.0
    %1389 = vmatpush1.msra.mxu0 0.0
    %1390 = vmatprep.subr.mxu0 0.0
    %1391 = vmatpush1.msra.mxu0 0.0
    %1392 = vmatprep.subr.mxu0 0.0
    %1393 = vmatpush1.msra.mxu0 0.0
    %1394 = vmatprep.subr.mxu0 0.0
    %1395 = vmatpush1.msra.mxu0 0.0
    %1396 = vmatprep.subr.mxu0 0.0
    %1397 = vmatpush1.msra.mxu0 0.0
    %1398 = vmatprep.subr.mxu0 0.0
    %1399 = vmatpush1.msra.mxu0 0.0
    %1400 = vmatprep.subr.mxu0 0.0
    %1401 = vmatpush1.msra.mxu0 0.0
    %1402 = vmatprep.subr.mxu0 0.0
    %1403 = vmatpush1.msra.mxu0 0.0
    %1404 = vmatprep.subr.mxu0 0.0
    %1405 = vmatpush1.msra.mxu0 0.0
    %1406 = vmatprep.subr.mxu0 0.0
    %1407 = vmatpush1.msra.mxu0 0.0
    %1408 = vmatprep.subr.mxu0 0.0
    %1409 = vmatpush1.msra.mxu0 0.0
    %1410 = vmatprep.subr.mxu0 0.0
    %1411 = vmatpush1.msra.mxu0 0.0
    %1412 = vmatprep.mubr.f32.mxu0 0.0
    %1413 = vmatmul.mubr.f32.gmra.mrb[0].mxu0 %v680
    %v1414 = vpop.f32.mrb[0].mxu0
    %v1415 = vadd.f32 %v1270, %v1414
    %v1416 = vpop.f32.mrb[0].mxu0
    %1417 = vmatprep.mubr.f32.mxu0 0.0
    %1418 = vmatmul.mubr.f32.gmra.mrb[0].mxu0 %v681
    %v1419 = vpop.f32.mrb[0].mxu0
    %v1420 = vadd.f32 %v1275, %v1419
    %v1421 = vpop.f32.mrb[0].mxu0
    %1422 = vmatprep.mubr.f32.mxu0 0.0
    %1423 = vmatmul.mubr.f32.gmra.mrb[0].mxu0 %v682
    %v1424 = vpop.f32.mrb[0].mxu0
    %v1425 = vadd.f32 %v1280, %v1424
    %v1426 = vpop.f32.mrb[0].mxu0
    %1427 = vmatprep.mubr.f32.mxu0 0.0
    %1428 = vmatmul.mubr.f32.gmra.mrb[0].mxu0 %v683
    %v1429 = vpop.f32.mrb[0].mxu0
    %v1430 = vadd.f32 %v1285, %v1429
    %v1431 = vpop.f32.mrb[0].mxu0
    %1432 = vmatprep.mubr.f32.mxu0 0.0
    %1433 = vmatmul.mubr.f32.gmra.mrb[0].mxu0 %v684
    %v1434 = vpop.f32.mrb[0].mxu0
    %v1435 = vadd.f32 %v1290, %v1434
    %v1436 = vpop.f32.mrb[0].mxu0
    %1437 = vmatprep.mubr.f32.mxu0 0.0
    %1438 = vmatmul.mubr.f32.gmra.mrb[0].mxu0 %v685
    %v1439 = vpop.f32.mrb[0].mxu0
    %v1440 = vadd.f32 %v1295, %v1439
    %v1441 = vpop.f32.mrb[0].mxu0
    %1442 = vmatprep.mubr.f32.mxu0 0.0
    %1443 = vmatmul.mubr.f32.gmra.mrb[0].mxu0 %v686
    %v1444 = vpop.f32.mrb[0].mxu0
    %v1445 = vadd.f32 %v1300, %v1444
    %v1446 = vpop.f32.mrb[0].mxu0
    %1447 = vmatprep.mubr.f32.mxu0 0.0
    %1448 = vmatmul.mubr.f32.gmra.mrb[0].mxu0 %v687
    %v1449 = vpop.f32.mrb[0].mxu0
    %v1450 = vadd.f32 %v1305, %v1449
    %v1451 = vpop.f32.mrb[0].mxu0
    %1452 = vmatprep.mubr.f32.mxu0 0.0
    %1453 = vmatmul.mubr.f32.gmra.mrb[0].mxu0 %v688
    %v1454 = vpop.f32.mrb[0].mxu0
    %v1455 = vadd.f32 %v1310, %v1454
    %v1456 = vpop.f32.mrb[0].mxu0
    %1457 = vmatprep.mubr.f32.mxu0 0.0
    %1458 = vmatmul.mubr.f32.gmra.mrb[0].mxu0 %v689
    %v1459 = vpop.f32.mrb[0].mxu0
    %v1460 = vadd.f32 %v1315, %v1459
    %v1461 = vpop.f32.mrb[0].mxu0
    %1462 = vmatprep.mubr.f32.mxu0 0.0
    %1463 = vmatmul.mubr.f32.gmra.mrb[0].mxu0 %v690
    %v1464 = vpop.f32.mrb[0].mxu0
    %v1465 = vadd.f32 %v1320, %v1464
    %v1466 = vpop.f32.mrb[0].mxu0
    %1467 = vmatprep.mubr.f32.mxu0 0.0
    %1468 = vmatmul.mubr.f32.gmra.mrb[0].mxu0 %v691
    %v1469 = vpop.f32.mrb[0].mxu0
    %v1470 = vadd.f32 %v1325, %v1469
    %v1471 = vpop.f32.mrb[0].mxu0
    %1472 = vmatprep.mubr.f32.mxu0 0.0
    %1473 = vmatmul.mubr.f32.gmra.mrb[0].mxu0 %v692
    %v1474 = vpop.f32.mrb[0].mxu0
    %v1475 = vadd.f32 %v1330, %v1474
    %v1476 = vpop.f32.mrb[0].mxu0
    %1477 = vmatprep.mubr.f32.mxu0 0.0
    %1478 = vmatmul.mubr.f32.gmra.mrb[0].mxu0 %v693
    %v1479 = vpop.f32.mrb[0].mxu0
    %v1480 = vadd.f32 %v1335, %v1479
    %v1481 = vpop.f32.mrb[0].mxu0
    %1482 = vmatprep.mubr.f32.mxu0 0.0
    %1483 = vmatmul.mubr.f32.gmra.mrb[0].mxu0 %v694
    %v1484 = vpop.f32.mrb[0].mxu0
    %v1485 = vadd.f32 %v1340, %v1484
    %v1486 = vpop.f32.mrb[0].mxu0
    %1487 = vmatprep.mubr.f32.mxu0 0.0
    %1488 = vmatmul.mubr.f32.gmra.mrb[0].mxu0 %v695
    %v1489 = vpop.f32.mrb[0].mxu0
    %v1490 = vadd.f32 %v1345, %v1489
    %v1491 = vpop.f32.mrb[0].mxu0
    %1492 = vdwg.mxu0
    %1493 = vrot.lane.b32.xlu0 %v198, 120
    %v1494 = vpop.permute.xlu0 %1493
    %1495 = vrot.lane.b32.xlu0 %v203, 120
    %v1496 = vpop.permute.xlu0 %1495
    %1497 = vrot.lane.b32.xlu0 %v208, 120
    %v1498 = vpop.permute.xlu0 %1497
    %1499 = vrot.lane.b32.xlu0 %v213, 120
    %v1500 = vpop.permute.xlu0 %1499
    %1501 = vrot.lane.b32.xlu0 %v218, 120
    %v1502 = vpop.permute.xlu0 %1501
    %1503 = vrot.lane.b32.xlu0 %v223, 120
    %v1504 = vpop.permute.xlu0 %1503
    %1505 = vrot.lane.b32.xlu0 %v228, 120
    %v1506 = vpop.permute.xlu0 %1505
    %1507 = vrot.lane.b32.xlu0 %v233, 120
    %v1508 = vpop.permute.xlu0 %1507
    %1509 = vrot.lane.b32.xlu0 %v238, 120
    %v1510 = vpop.permute.xlu0 %1509
    %1511 = vrot.lane.b32.xlu0 %v243, 120
    %v1512 = vpop.permute.xlu0 %1511
    %1513 = vrot.lane.b32.xlu0 %v248, 120
    %v1514 = vpop.permute.xlu0 %1513
    %1515 = vrot.lane.b32.xlu0 %v253, 120
    %v1516 = vpop.permute.xlu0 %1515
    %1517 = vrot.lane.b32.xlu0 %v258, 120
    %v1518 = vpop.permute.xlu0 %1517
    %1519 = vrot.lane.b32.xlu0 %v263, 120
    %v1520 = vpop.permute.xlu0 %1519
    %1521 = vrot.lane.b32.xlu0 %v268, 120
    %v1522 = vpop.permute.xlu0 %1521
    %1523 = vrot.lane.b32.xlu0 %v273, 120
    %v1524 = vpop.permute.xlu0 %1523
    %1525 = vrot.lane.b32.xlu0 %v198, 104
    %v1526 = vpop.permute.xlu0 %1525
    %1527 = vrot.lane.b32.xlu0 %v203, 104
    %v1528 = vpop.permute.xlu0 %1527
    %1529 = vrot.lane.b32.xlu0 %v208, 104
    %v1530 = vpop.permute.xlu0 %1529
    %1531 = vrot.lane.b32.xlu0 %v213, 104
    %v1532 = vpop.permute.xlu0 %1531
    %1533 = vrot.lane.b32.xlu0 %v218, 104
    %v1534 = vpop.permute.xlu0 %1533
    %1535 = vrot.lane.b32.xlu0 %v223, 104
    %v1536 = vpop.permute.xlu0 %1535
    %1537 = vrot.lane.b32.xlu0 %v228, 104
    %v1538 = vpop.permute.xlu0 %1537
    %1539 = vrot.lane.b32.xlu0 %v233, 104
    %v1540 = vpop.permute.xlu0 %1539
    %1541 = vrot.lane.b32.xlu0 %v238, 104
    %v1542 = vpop.permute.xlu0 %1541
    %1543 = vrot.lane.b32.xlu0 %v243, 104
    %v1544 = vpop.permute.xlu0 %1543
    %1545 = vrot.lane.b32.xlu0 %v248, 104
    %v1546 = vpop.permute.xlu0 %1545
    %1547 = vrot.lane.b32.xlu0 %v253, 104
    %v1548 = vpop.permute.xlu0 %1547
    %1549 = vrot.lane.b32.xlu0 %v258, 104
    %v1550 = vpop.permute.xlu0 %1549
    %1551 = vrot.lane.b32.xlu0 %v263, 104
    %v1552 = vpop.permute.xlu0 %1551
    %1553 = vrot.lane.b32.xlu0 %v268, 104
    %v1554 = vpop.permute.xlu0 %1553
    %1555 = vrot.lane.b32.xlu0 %v273, 104
    %v1556 = vpop.permute.xlu0 %1555
    %v1557 = vsel %vm342, %v1494, 0
    %v1559 = vsel %vm342, %v1496, 0
    %v1561 = vsel %vm342, %v1498, 0
    %v1563 = vsel %vm342, %v1500, 0
    %v1565 = vsel %vm342, %v1502, 0
    %v1567 = vsel %vm342, %v1504, 0
    %v1569 = vsel %vm342, %v1506, 0
    %v1571 = vsel %vm342, %v1508, 0
    %v1573 = vsel %vm342, %v1510, 0
    %v1575 = vsel %vm342, %v1512, 0
    %v1577 = vsel %vm342, %v1514, 0
    %v1579 = vsel %vm342, %v1516, 0
    %v1581 = vsel %vm342, %v1518, 0
    %v1583 = vsel %vm342, %v1520, 0
    %v1585 = vsel %vm342, %v1522, 0
    %v1587 = vsel %vm342, %v1524, 0
    %v1589 = vsel %vm342, %v1526, 0
    %v1591 = vsel %vm342, %v1528, 0
    %v1593 = vsel %vm342, %v1530, 0
    %v1595 = vsel %vm342, %v1532, 0
    %v1597 = vsel %vm342, %v1534, 0
    %v1599 = vsel %vm342, %v1536, 0
    %v1601 = vsel %vm342, %v1538, 0
    %v1603 = vsel %vm342, %v1540, 0
    %v1605 = vsel %vm342, %v1542, 0
    %v1607 = vsel %vm342, %v1544, 0
    %v1609 = vsel %vm342, %v1546, 0
    %v1611 = vsel %vm342, %v1548, 0
    %v1613 = vsel %vm342, %v1550, 0
    %v1615 = vsel %vm342, %v1552, 0
    %v1617 = vsel %vm342, %v1554, 0
    %v1619 = vsel %vm342, %v1556, 0
    %1621 = vmatprep.subr.mxu0 0.0
    %1622 = vmatpush1.xpose.msra.mxu0 %v1589
    %1623 = vmatprep.subr.mxu0 0.0
    %1624 = vmatpush1.xpose.msra.mxu0 %v1591
    %1625 = vmatprep.subr.mxu0 0.0
    %1626 = vmatpush1.xpose.msra.mxu0 %v1593
    %1627 = vmatprep.subr.mxu0 0.0
    %1628 = vmatpush1.xpose.msra.mxu0 %v1595
    %1629 = vmatprep.subr.mxu0 0.0
    %1630 = vmatpush1.xpose.msra.mxu0 %v1597
    %1631 = vmatprep.subr.mxu0 0.0
    %1632 = vmatpush1.xpose.msra.mxu0 %v1599
    %1633 = vmatprep.subr.mxu0 0.0
    %1634 = vmatpush1.xpose.msra.mxu0 %v1601
    %1635 = vmatprep.subr.mxu0 0.0
    %1636 = vmatpush1.xpose.msra.mxu0 %v1603
    %1637 = vmatprep.subr.mxu0 0.0
    %1638 = vmatpush1.xpose.msra.mxu0 %v1605
    %1639 = vmatprep.subr.mxu0 0.0
    %1640 = vmatpush1.xpose.msra.mxu0 %v1607
    %1641 = vmatprep.subr.mxu0 0.0
    %1642 = vmatpush1.xpose.msra.mxu0 %v1609
    %1643 = vmatprep.subr.mxu0 0.0
    %1644 = vmatpush1.xpose.msra.mxu0 %v1611
    %1645 = vmatprep.subr.mxu0 0.0
    %1646 = vmatpush1.xpose.msra.mxu0 %v1613
    %1647 = vmatprep.subr.mxu0 0.0
    %1648 = vmatpush1.xpose.msra.mxu0 %v1615
    %1649 = vmatprep.subr.mxu0 0.0
    %1650 = vmatpush1.xpose.msra.mxu0 %v1617
    %1651 = vmatprep.subr.mxu0 0.0
    %1652 = vmatpush1.xpose.msra.mxu0 %v1619
    %1653 = vmatprep.subr.mxu0 0.0
    %1654 = vmatpush1.xpose.msra.mxu0 0.0
    %1655 = vmatprep.subr.mxu0 0.0
    %1656 = vmatpush1.xpose.msra.mxu0 0.0
    %1657 = vmatprep.subr.mxu0 0.0
    %1658 = vmatpush1.xpose.msra.mxu0 0.0
    %1659 = vmatprep.subr.mxu0 0.0
    %1660 = vmatpush1.xpose.msra.mxu0 0.0
    %1661 = vmatprep.subr.mxu0 0.0
    %1662 = vmatpush1.xpose.msra.mxu0 0.0
    %1663 = vmatprep.subr.mxu0 0.0
    %1664 = vmatpush1.xpose.msra.mxu0 0.0
    %1665 = vmatprep.subr.mxu0 0.0
    %1666 = vmatpush1.xpose.msra.mxu0 0.0
    %1667 = vmatprep.subr.mxu0 0.0
    %1668 = vmatpush1.xpose.msra.mxu0 0.0
    %1669 = vmatprep.subr.mxu0 0.0
    %1670 = vmatpush1.xpose.msra.mxu0 0.0
    %1671 = vmatprep.subr.mxu0 0.0
    %1672 = vmatpush1.xpose.msra.mxu0 0.0
    %1673 = vmatprep.subr.mxu0 0.0
    %1674 = vmatpush1.xpose.msra.mxu0 0.0
    %1675 = vmatprep.subr.mxu0 0.0
    %1676 = vmatpush1.xpose.msra.mxu0 0.0
    %1677 = vmatprep.subr.mxu0 0.0
    %1678 = vmatpush1.xpose.msra.mxu0 0.0
    %1679 = vmatprep.subr.mxu0 0.0
    %1680 = vmatpush1.xpose.msra.mxu0 0.0
    %1681 = vmatprep.subr.mxu0 0.0
    %1682 = vmatpush1.xpose.msra.mxu0 0.0
    %1683 = vmatprep.subr.mxu0 0.0
    %1684 = vmatpush1.xpose.msra.mxu0 0.0
    %1685 = vmatprep.mubr.f32.mxu0 0.0
    %1686 = vmatmul.mubr.f32.gmra.mrb[0].mxu0 %v1557
    %v1687 = vpop.f32.mrb[0].mxu0
    %v1688 = vadd.f32 %v276, %v1687
    %v1689 = vpop.f32.mrb[0].mxu0
    %1690 = vmatprep.mubr.f32.mxu0 0.0
    %1691 = vmatmul.mubr.f32.gmra.mrb[0].mxu0 %v1559
    %v1692 = vpop.f32.mrb[0].mxu0
    %v1693 = vadd.f32 %v277, %v1692
    %v1694 = vpop.f32.mrb[0].mxu0
    %1695 = vmatprep.mubr.f32.mxu0 0.0
    %1696 = vmatmul.mubr.f32.gmra.mrb[0].mxu0 %v1561
    %v1697 = vpop.f32.mrb[0].mxu0
    %v1698 = vadd.f32 %v278, %v1697
    %v1699 = vpop.f32.mrb[0].mxu0
    %1700 = vmatprep.mubr.f32.mxu0 0.0
    %1701 = vmatmul.mubr.f32.gmra.mrb[0].mxu0 %v1563
    %v1702 = vpop.f32.mrb[0].mxu0
    %v1703 = vadd.f32 %v279, %v1702
    %v1704 = vpop.f32.mrb[0].mxu0
    %1705 = vmatprep.mubr.f32.mxu0 0.0
    %1706 = vmatmul.mubr.f32.gmra.mrb[0].mxu0 %v1565
    %v1707 = vpop.f32.mrb[0].mxu0
    %v1708 = vadd.f32 %v280, %v1707
    %v1709 = vpop.f32.mrb[0].mxu0
    %1710 = vmatprep.mubr.f32.mxu0 0.0
    %1711 = vmatmul.mubr.f32.gmra.mrb[0].mxu0 %v1567
    %v1712 = vpop.f32.mrb[0].mxu0
    %v1713 = vadd.f32 %v281, %v1712
    %v1714 = vpop.f32.mrb[0].mxu0
    %1715 = vmatprep.mubr.f32.mxu0 0.0
    %1716 = vmatmul.mubr.f32.gmra.mrb[0].mxu0 %v1569
    %v1717 = vpop.f32.mrb[0].mxu0
    %v1718 = vadd.f32 %v282, %v1717
    %v1719 = vpop.f32.mrb[0].mxu0
    %1720 = vmatprep.mubr.f32.mxu0 0.0
    %1721 = vmatmul.mubr.f32.gmra.mrb[0].mxu0 %v1571
    %v1722 = vpop.f32.mrb[0].mxu0
    %v1723 = vadd.f32 %v283, %v1722
    %v1724 = vpop.f32.mrb[0].mxu0
    %1725 = vmatprep.mubr.f32.mxu0 0.0
    %1726 = vmatmul.mubr.f32.gmra.mrb[0].mxu0 %v1573
    %v1727 = vpop.f32.mrb[0].mxu0
    %v1728 = vadd.f32 %v284, %v1727
    %v1729 = vpop.f32.mrb[0].mxu0
    %1730 = vmatprep.mubr.f32.mxu0 0.0
    %1731 = vmatmul.mubr.f32.gmra.mrb[0].mxu0 %v1575
    %v1732 = vpop.f32.mrb[0].mxu0
    %v1733 = vadd.f32 %v285, %v1732
    %v1734 = vpop.f32.mrb[0].mxu0
    %1735 = vmatprep.mubr.f32.mxu0 0.0
    %1736 = vmatmul.mubr.f32.gmra.mrb[0].mxu0 %v1577
    %v1737 = vpop.f32.mrb[0].mxu0
    %v1738 = vadd.f32 %v286, %v1737
    %v1739 = vpop.f32.mrb[0].mxu0
    %1740 = vmatprep.mubr.f32.mxu0 0.0
    %1741 = vmatmul.mubr.f32.gmra.mrb[0].mxu0 %v1579
    %v1742 = vpop.f32.mrb[0].mxu0
    %v1743 = vadd.f32 %v287, %v1742
    %v1744 = vpop.f32.mrb[0].mxu0
    %1745 = vmatprep.mubr.f32.mxu0 0.0
    %1746 = vmatmul.mubr.f32.gmra.mrb[0].mxu0 %v1581
    %v1747 = vpop.f32.mrb[0].mxu0
    %v1748 = vadd.f32 %v288, %v1747
    %v1749 = vpop.f32.mrb[0].mxu0
    %1750 = vmatprep.mubr.f32.mxu0 0.0
    %1751 = vmatmul.mubr.f32.gmra.mrb[0].mxu0 %v1583
    %v1752 = vpop.f32.mrb[0].mxu0
    %v1753 = vadd.f32 %v289, %v1752
    %v1754 = vpop.f32.mrb[0].mxu0
    %1755 = vmatprep.mubr.f32.mxu0 0.0
    %1756 = vmatmul.mubr.f32.gmra.mrb[0].mxu0 %v1585
    %v1757 = vpop.f32.mrb[0].mxu0
    %v1758 = vadd.f32 %v290, %v1757
    %v1759 = vpop.f32.mrb[0].mxu0
    %1760 = vmatprep.mubr.f32.mxu0 0.0
    %1761 = vmatmul.mubr.f32.gmra.mrb[0].mxu0 %v1587
    %v1762 = vpop.f32.mrb[0].mxu0
    %v1763 = vadd.f32 %v291, %v1762
    %v1764 = vpop.f32.mrb[0].mxu0
    %1765 = vdwg.mxu0
    %1766 = vmax.xlane.f32.xlu0 %v1688
    %v1767 = vpop.xlane.xlu0 %1766
    %1768 = vmax.xlane.f32.xlu0 %v1693
    %v1769 = vpop.xlane.xlu0 %1768
    %1770 = vmax.xlane.f32.xlu0 %v1698
    %v1771 = vpop.xlane.xlu0 %1770
    %1772 = vmax.xlane.f32.xlu0 %v1703
    %v1773 = vpop.xlane.xlu0 %1772
    %1774 = vmax.xlane.f32.xlu0 %v1708
    %v1775 = vpop.xlane.xlu0 %1774
    %1776 = vmax.xlane.f32.xlu0 %v1713
    %v1777 = vpop.xlane.xlu0 %1776
    %1778 = vmax.xlane.f32.xlu0 %v1718
    %v1779 = vpop.xlane.xlu0 %1778
    %1780 = vmax.xlane.f32.xlu0 %v1723
    %v1781 = vpop.xlane.xlu0 %1780
    %1782 = vmax.xlane.f32.xlu0 %v1728
    %v1783 = vpop.xlane.xlu0 %1782
    %1784 = vmax.xlane.f32.xlu0 %v1733
    %v1785 = vpop.xlane.xlu0 %1784
    %1786 = vmax.xlane.f32.xlu0 %v1738
    %v1787 = vpop.xlane.xlu0 %1786
    %1788 = vmax.xlane.f32.xlu0 %v1743
    %v1789 = vpop.xlane.xlu0 %1788
    %1790 = vmax.xlane.f32.xlu0 %v1748
    %v1791 = vpop.xlane.xlu0 %1790
    %1792 = vmax.xlane.f32.xlu0 %v1753
    %v1793 = vpop.xlane.xlu0 %1792
    %1794 = vmax.xlane.f32.xlu0 %v1758
    %v1795 = vpop.xlane.xlu0 %1794
    %1796 = vmax.xlane.f32.xlu0 %v1763
    %v1797 = vpop.xlane.xlu0 %1796
    %v1798 = vsub.f32 %v1688, %v1767
    %v1799 = vsub.f32 %v1693, %v1769
    %v1800 = vsub.f32 %v1698, %v1771
    %v1801 = vsub.f32 %v1703, %v1773
    %v1802 = vsub.f32 %v1708, %v1775
    %v1803 = vsub.f32 %v1713, %v1777
    %v1804 = vsub.f32 %v1718, %v1779
    %v1805 = vsub.f32 %v1723, %v1781
    %v1806 = vsub.f32 %v1728, %v1783
    %v1807 = vsub.f32 %v1733, %v1785
    %v1808 = vsub.f32 %v1738, %v1787
    %v1809 = vsub.f32 %v1743, %v1789
    %v1810 = vsub.f32 %v1748, %v1791
    %v1811 = vsub.f32 %v1753, %v1793
    %v1812 = vsub.f32 %v1758, %v1795
    %v1813 = vsub.f32 %v1763, %v1797
    %v1814 = vmul.f32 %v1798, 1.442695
    %v1815 = vpow.pop %v1814
    %v1816 = vmul.f32 %v1799, 1.442695
    %v1817 = vpow.pop %v1816
    %v1818 = vmul.f32 %v1800, 1.442695
    %v1819 = vpow.pop %v1818
    %v1820 = vmul.f32 %v1801, 1.442695
    %v1821 = vpow.pop %v1820
    %v1822 = vmul.f32 %v1802, 1.442695
    %v1823 = vpow.pop %v1822
    %v1824 = vmul.f32 %v1803, 1.442695
    %v1825 = vpow.pop %v1824
    %v1826 = vmul.f32 %v1804, 1.442695
    %v1827 = vpow.pop %v1826
    %v1828 = vmul.f32 %v1805, 1.442695
    %v1829 = vpow.pop %v1828
    %v1830 = vmul.f32 %v1806, 1.442695
    %v1831 = vpow.pop %v1830
    %v1832 = vmul.f32 %v1807, 1.442695
    %v1833 = vpow.pop %v1832
    %v1834 = vmul.f32 %v1808, 1.442695
    %v1835 = vpow.pop %v1834
    %v1836 = vmul.f32 %v1809, 1.442695
    %v1837 = vpow.pop %v1836
    %v1838 = vmul.f32 %v1810, 1.442695
    %v1839 = vpow.pop %v1838
    %v1840 = vmul.f32 %v1811, 1.442695
    %v1841 = vpow.pop %v1840
    %v1842 = vmul.f32 %v1812, 1.442695
    %v1843 = vpow.pop %v1842
    %v1844 = vmul.f32 %v1813, 1.442695
    %v1845 = vpow.pop %v1844
    %1846 = vadd.xlane.f32.xlu0 %v1815
    %v1847 = vpop.xlane.xlu0 %1846
    %1848 = vadd.xlane.f32.xlu0 %v1817
    %v1849 = vpop.xlane.xlu0 %1848
    %1850 = vadd.xlane.f32.xlu0 %v1819
    %v1851 = vpop.xlane.xlu0 %1850
    %1852 = vadd.xlane.f32.xlu0 %v1821
    %v1853 = vpop.xlane.xlu0 %1852
    %1854 = vadd.xlane.f32.xlu0 %v1823
    %v1855 = vpop.xlane.xlu0 %1854
    %1856 = vadd.xlane.f32.xlu0 %v1825
    %v1857 = vpop.xlane.xlu0 %1856
    %1858 = vadd.xlane.f32.xlu0 %v1827
    %v1859 = vpop.xlane.xlu0 %1858
    %1860 = vadd.xlane.f32.xlu0 %v1829
    %v1861 = vpop.xlane.xlu0 %1860
    %1862 = vadd.xlane.f32.xlu0 %v1831
    %v1863 = vpop.xlane.xlu0 %1862
    %1864 = vadd.xlane.f32.xlu0 %v1833
    %v1865 = vpop.xlane.xlu0 %1864
    %1866 = vadd.xlane.f32.xlu0 %v1835
    %v1867 = vpop.xlane.xlu0 %1866
    %1868 = vadd.xlane.f32.xlu0 %v1837
    %v1869 = vpop.xlane.xlu0 %1868
    %1870 = vadd.xlane.f32.xlu0 %v1839
    %v1871 = vpop.xlane.xlu0 %1870
    %1872 = vadd.xlane.f32.xlu0 %v1841
    %v1873 = vpop.xlane.xlu0 %1872
    %1874 = vadd.xlane.f32.xlu0 %v1843
    %v1875 = vpop.xlane.xlu0 %1874
    %1876 = vadd.xlane.f32.xlu0 %v1845
    %v1877 = vpop.xlane.xlu0 %1876
    %v1878 = vrcp.pop %v1847
    %v1879 = vrcp.pop %v1849
    %v1880 = vrcp.pop %v1851
    %v1881 = vrcp.pop %v1853
    %v1882 = vrcp.pop %v1855
    %v1883 = vrcp.pop %v1857
    %v1884 = vrcp.pop %v1859
    %v1885 = vrcp.pop %v1861
    %v1886 = vrcp.pop %v1863
    %v1887 = vrcp.pop %v1865
    %v1888 = vrcp.pop %v1867
    %v1889 = vrcp.pop %v1869
    %v1890 = vrcp.pop %v1871
    %v1891 = vrcp.pop %v1873
    %v1892 = vrcp.pop %v1875
    %v1893 = vrcp.pop %v1877
    %v1894 = vmul.f32 %v1815, %v1878
    %v1895 = vmul.f32 %v1817, %v1879
    %v1896 = vmul.f32 %v1819, %v1880
    %v1897 = vmul.f32 %v1821, %v1881
    %v1898 = vmul.f32 %v1823, %v1882
    %v1899 = vmul.f32 %v1825, %v1883
    %v1900 = vmul.f32 %v1827, %v1884
    %v1901 = vmul.f32 %v1829, %v1885
    %v1902 = vmul.f32 %v1831, %v1886
    %v1903 = vmul.f32 %v1833, %v1887
    %v1904 = vmul.f32 %v1835, %v1888
    %v1905 = vmul.f32 %v1837, %v1889
    %v1906 = vmul.f32 %v1839, %v1890
    %v1907 = vmul.f32 %v1841, %v1891
    %v1908 = vmul.f32 %v1843, %v1892
    %v1909 = vmul.f32 %v1845, %v1893
    %vm1910 = vcmp.ge.s32.totalorder %v293, 8
    %vm1911 = vcmp.lt.s32.totalorder %v293, 12
    %vm1912 = vmand %vm1910, %vm1911
    %v1913 = vsel %vm1912, 1, 0
    %vm1914 = vcmp.eq.s32.totalorder %v1913, 1
    %v1915 = vsel %vm1914, %v702, 0.0
    %v1916 = vsel %vm1914, %v704, 0.0
    %v1917 = vsel %vm1914, %v706, 0.0
    %v1918 = vsel %vm1914, %v708, 0.0
    %v1919 = vsel %vm1914, %v710, 0.0
    %v1920 = vsel %vm1914, %v712, 0.0
    %v1921 = vsel %vm1914, %v714, 0.0
    %v1922 = vsel %vm1914, %v716, 0.0
    %v1923 = vsel %vm1914, %v718, 0.0
    %v1924 = vsel %vm1914, %v720, 0.0
    %v1925 = vsel %vm1914, %v722, 0.0
    %v1926 = vsel %vm1914, %v724, 0.0
    %v1927 = vsel %vm1914, %v726, 0.0
    %v1928 = vsel %vm1914, %v728, 0.0
    %v1929 = vsel %vm1914, %v730, 0.0
    %v1930 = vsel %vm1914, %v732, 0.0
    %1931 = vmatprep.subr.mxu0 0.0
    %1932 = vmatpush1.msra.mxu0 %v1915
    %1933 = vmatprep.subr.mxu0 0.0
    %1934 = vmatpush1.msra.mxu0 %v1916
    %1935 = vmatprep.subr.mxu0 0.0
    %1936 = vmatpush1.msra.mxu0 %v1917
    %1937 = vmatprep.subr.mxu0 0.0
    %1938 = vmatpush1.msra.mxu0 %v1918
    %1939 = vmatprep.subr.mxu0 0.0
    %1940 = vmatpush1.msra.mxu0 %v1919
    %1941 = vmatprep.subr.mxu0 0.0
    %1942 = vmatpush1.msra.mxu0 %v1920
    %1943 = vmatprep.subr.mxu0 0.0
    %1944 = vmatpush1.msra.mxu0 %v1921
    %1945 = vmatprep.subr.mxu0 0.0
    %1946 = vmatpush1.msra.mxu0 %v1922
    %1947 = vmatprep.subr.mxu0 0.0
    %1948 = vmatpush1.msra.mxu0 %v1923
    %1949 = vmatprep.subr.mxu0 0.0
    %1950 = vmatpush1.msra.mxu0 %v1924
    %1951 = vmatprep.subr.mxu0 0.0
    %1952 = vmatpush1.msra.mxu0 %v1925
    %1953 = vmatprep.subr.mxu0 0.0
    %1954 = vmatpush1.msra.mxu0 %v1926
    %1955 = vmatprep.subr.mxu0 0.0
    %1956 = vmatpush1.msra.mxu0 %v1927
    %1957 = vmatprep.subr.mxu0 0.0
    %1958 = vmatpush1.msra.mxu0 %v1928
    %1959 = vmatprep.subr.mxu0 0.0
    %1960 = vmatpush1.msra.mxu0 %v1929
    %1961 = vmatprep.subr.mxu0 0.0
    %1962 = vmatpush1.msra.mxu0 %v1930
    %1963 = vmatprep.subr.mxu0 0.0
    %1964 = vmatpush1.msra.mxu0 0.0
    %1965 = vmatprep.subr.mxu0 0.0
    %1966 = vmatpush1.msra.mxu0 0.0
    %1967 = vmatprep.subr.mxu0 0.0
    %1968 = vmatpush1.msra.mxu0 0.0
    %1969 = vmatprep.subr.mxu0 0.0
    %1970 = vmatpush1.msra.mxu0 0.0
    %1971 = vmatprep.subr.mxu0 0.0
    %1972 = vmatpush1.msra.mxu0 0.0
    %1973 = vmatprep.subr.mxu0 0.0
    %1974 = vmatpush1.msra.mxu0 0.0
    %1975 = vmatprep.subr.mxu0 0.0
    %1976 = vmatpush1.msra.mxu0 0.0
    %1977 = vmatprep.subr.mxu0 0.0
    %1978 = vmatpush1.msra.mxu0 0.0
    %1979 = vmatprep.subr.mxu0 0.0
    %1980 = vmatpush1.msra.mxu0 0.0
    %1981 = vmatprep.subr.mxu0 0.0
    %1982 = vmatpush1.msra.mxu0 0.0
    %1983 = vmatprep.subr.mxu0 0.0
    %1984 = vmatpush1.msra.mxu0 0.0
    %1985 = vmatprep.subr.mxu0 0.0
    %1986 = vmatpush1.msra.mxu0 0.0
    %1987 = vmatprep.subr.mxu0 0.0
    %1988 = vmatpush1.msra.mxu0 0.0
    %1989 = vmatprep.subr.mxu0 0.0
    %1990 = vmatpush1.msra.mxu0 0.0
    %1991 = vmatprep.subr.mxu0 0.0
    %1992 = vmatpush1.msra.mxu0 0.0
    %1993 = vmatprep.subr.mxu0 0.0
    %1994 = vmatpush1.msra.mxu0 0.0
    %1995 = vmatprep.mubr.f32.mxu0 0.0
    %1996 = vmatmul.mubr.f32.gmra.mrb[0].mxu0 %v1894
    %v1997 = vpop.f32.mrb[0].mxu0
    %v1998 = vadd.f32 0.0, %v1997
    %v1999 = vpop.f32.mrb[0].mxu0
    %2000 = vmatprep.mubr.f32.mxu0 0.0
    %2001 = vmatmul.mubr.f32.gmra.mrb[0].mxu0 %v1895
    %v2002 = vpop.f32.mrb[0].mxu0
    %v2003 = vadd.f32 0.0, %v2002
    %v2004 = vpop.f32.mrb[0].mxu0
    %2005 = vmatprep.mubr.f32.mxu0 0.0
    %2006 = vmatmul.mubr.f32.gmra.mrb[0].mxu0 %v1896
    %v2007 = vpop.f32.mrb[0].mxu0
    %v2008 = vadd.f32 0.0, %v2007
    %v2009 = vpop.f32.mrb[0].mxu0
    %2010 = vmatprep.mubr.f32.mxu0 0.0
    %2011 = vmatmul.mubr.f32.gmra.mrb[0].mxu0 %v1897
    %v2012 = vpop.f32.mrb[0].mxu0
    %v2013 = vadd.f32 0.0, %v2012
    %v2014 = vpop.f32.mrb[0].mxu0
    %2015 = vmatprep.mubr.f32.mxu0 0.0
    %2016 = vmatmul.mubr.f32.gmra.mrb[0].mxu0 %v1898
    %v2017 = vpop.f32.mrb[0].mxu0
    %v2018 = vadd.f32 0.0, %v2017
    %v2019 = vpop.f32.mrb[0].mxu0
    %2020 = vmatprep.mubr.f32.mxu0 0.0
    %2021 = vmatmul.mubr.f32.gmra.mrb[0].mxu0 %v1899
    %v2022 = vpop.f32.mrb[0].mxu0
    %v2023 = vadd.f32 0.0, %v2022
    %v2024 = vpop.f32.mrb[0].mxu0
    %2025 = vmatprep.mubr.f32.mxu0 0.0
    %2026 = vmatmul.mubr.f32.gmra.mrb[0].mxu0 %v1900
    %v2027 = vpop.f32.mrb[0].mxu0
    %v2028 = vadd.f32 0.0, %v2027
    %v2029 = vpop.f32.mrb[0].mxu0
    %2030 = vmatprep.mubr.f32.mxu0 0.0
    %2031 = vmatmul.mubr.f32.gmra.mrb[0].mxu0 %v1901
    %v2032 = vpop.f32.mrb[0].mxu0
    %v2033 = vadd.f32 0.0, %v2032
    %v2034 = vpop.f32.mrb[0].mxu0
    %2035 = vmatprep.mubr.f32.mxu0 0.0
    %2036 = vmatmul.mubr.f32.gmra.mrb[0].mxu0 %v1902
    %v2037 = vpop.f32.mrb[0].mxu0
    %v2038 = vadd.f32 0.0, %v2037
    %v2039 = vpop.f32.mrb[0].mxu0
    %2040 = vmatprep.mubr.f32.mxu0 0.0
    %2041 = vmatmul.mubr.f32.gmra.mrb[0].mxu0 %v1903
    %v2042 = vpop.f32.mrb[0].mxu0
    %v2043 = vadd.f32 0.0, %v2042
    %v2044 = vpop.f32.mrb[0].mxu0
    %2045 = vmatprep.mubr.f32.mxu0 0.0
    %2046 = vmatmul.mubr.f32.gmra.mrb[0].mxu0 %v1904
    %v2047 = vpop.f32.mrb[0].mxu0
    %v2048 = vadd.f32 0.0, %v2047
    %v2049 = vpop.f32.mrb[0].mxu0
    %2050 = vmatprep.mubr.f32.mxu0 0.0
    %2051 = vmatmul.mubr.f32.gmra.mrb[0].mxu0 %v1905
    %v2052 = vpop.f32.mrb[0].mxu0
    %v2053 = vadd.f32 0.0, %v2052
    %v2054 = vpop.f32.mrb[0].mxu0
    %2055 = vmatprep.mubr.f32.mxu0 0.0
    %2056 = vmatmul.mubr.f32.gmra.mrb[0].mxu0 %v1906
    %v2057 = vpop.f32.mrb[0].mxu0
    %v2058 = vadd.f32 0.0, %v2057
    %v2059 = vpop.f32.mrb[0].mxu0
    %2060 = vmatprep.mubr.f32.mxu0 0.0
    %2061 = vmatmul.mubr.f32.gmra.mrb[0].mxu0 %v1907
    %v2062 = vpop.f32.mrb[0].mxu0
    %v2063 = vadd.f32 0.0, %v2062
    %v2064 = vpop.f32.mrb[0].mxu0
    %2065 = vmatprep.mubr.f32.mxu0 0.0
    %2066 = vmatmul.mubr.f32.gmra.mrb[0].mxu0 %v1908
    %v2067 = vpop.f32.mrb[0].mxu0
    %v2068 = vadd.f32 0.0, %v2067
    %v2069 = vpop.f32.mrb[0].mxu0
    %2070 = vmatprep.mubr.f32.mxu0 0.0
    %2071 = vmatmul.mubr.f32.gmra.mrb[0].mxu0 %v1909
    %v2072 = vpop.f32.mrb[0].mxu0
    %v2073 = vadd.f32 0.0, %v2072
    %v2074 = vpop.f32.mrb[0].mxu0
    %2075 = vdwg.mxu0
    %v2076 = vadd.f32 %v1415, %v1998
    %v2077 = vadd.f32 %v1420, %v2003
    %v2078 = vadd.f32 %v1425, %v2008
    %v2079 = vadd.f32 %v1430, %v2013
    %v2080 = vadd.f32 %v1435, %v2018
    %v2081 = vadd.f32 %v1440, %v2023
    %v2082 = vadd.f32 %v1445, %v2028
    %v2083 = vadd.f32 %v1450, %v2033
    %v2084 = vadd.f32 %v1455, %v2038
    %v2085 = vadd.f32 %v1460, %v2043
    %v2086 = vadd.f32 %v1465, %v2048
    %v2087 = vadd.f32 %v1470, %v2053
    %v2088 = vadd.f32 %v1475, %v2058
    %v2089 = vadd.f32 %v1480, %v2063
    %v2090 = vadd.f32 %v1485, %v2068
    %v2091 = vadd.f32 %v1490, %v2073
    %2092 = vrot.lane.b32.xlu0 %v198, 116
    %v2093 = vpop.permute.xlu0 %2092
    %2094 = vrot.lane.b32.xlu0 %v203, 116
    %v2095 = vpop.permute.xlu0 %2094
    %2096 = vrot.lane.b32.xlu0 %v208, 116
    %v2097 = vpop.permute.xlu0 %2096
    %2098 = vrot.lane.b32.xlu0 %v213, 116
    %v2099 = vpop.permute.xlu0 %2098
    %2100 = vrot.lane.b32.xlu0 %v218, 116
    %v2101 = vpop.permute.xlu0 %2100
    %2102 = vrot.lane.b32.xlu0 %v223, 116
    %v2103 = vpop.permute.xlu0 %2102
    %2104 = vrot.lane.b32.xlu0 %v228, 116
    %v2105 = vpop.permute.xlu0 %2104
    %2106 = vrot.lane.b32.xlu0 %v233, 116
    %v2107 = vpop.permute.xlu0 %2106
    %2108 = vrot.lane.b32.xlu0 %v238, 116
    %v2109 = vpop.permute.xlu0 %2108
    %2110 = vrot.lane.b32.xlu0 %v243, 116
    %v2111 = vpop.permute.xlu0 %2110
    %2112 = vrot.lane.b32.xlu0 %v248, 116
    %v2113 = vpop.permute.xlu0 %2112
    %2114 = vrot.lane.b32.xlu0 %v253, 116
    %v2115 = vpop.permute.xlu0 %2114
    %2116 = vrot.lane.b32.xlu0 %v258, 116
    %v2117 = vpop.permute.xlu0 %2116
    %2118 = vrot.lane.b32.xlu0 %v263, 116
    %v2119 = vpop.permute.xlu0 %2118
    %2120 = vrot.lane.b32.xlu0 %v268, 116
    %v2121 = vpop.permute.xlu0 %2120
    %2122 = vrot.lane.b32.xlu0 %v273, 116
    %v2123 = vpop.permute.xlu0 %2122
    %2124 = vrot.lane.b32.xlu0 %v198, 100
    %v2125 = vpop.permute.xlu0 %2124
    %2126 = vrot.lane.b32.xlu0 %v203, 100
    %v2127 = vpop.permute.xlu0 %2126
    %2128 = vrot.lane.b32.xlu0 %v208, 100
    %v2129 = vpop.permute.xlu0 %2128
    %2130 = vrot.lane.b32.xlu0 %v213, 100
    %v2131 = vpop.permute.xlu0 %2130
    %2132 = vrot.lane.b32.xlu0 %v218, 100
    %v2133 = vpop.permute.xlu0 %2132
    %2134 = vrot.lane.b32.xlu0 %v223, 100
    %v2135 = vpop.permute.xlu0 %2134
    %2136 = vrot.lane.b32.xlu0 %v228, 100
    %v2137 = vpop.permute.xlu0 %2136
    %2138 = vrot.lane.b32.xlu0 %v233, 100
    %v2139 = vpop.permute.xlu0 %2138
    %2140 = vrot.lane.b32.xlu0 %v238, 100
    %v2141 = vpop.permute.xlu0 %2140
    %2142 = vrot.lane.b32.xlu0 %v243, 100
    %v2143 = vpop.permute.xlu0 %2142
    %2144 = vrot.lane.b32.xlu0 %v248, 100
    %v2145 = vpop.permute.xlu0 %2144
    %2146 = vrot.lane.b32.xlu0 %v253, 100
    %v2147 = vpop.permute.xlu0 %2146
    %2148 = vrot.lane.b32.xlu0 %v258, 100
    %v2149 = vpop.permute.xlu0 %2148
    %2150 = vrot.lane.b32.xlu0 %v263, 100
    %v2151 = vpop.permute.xlu0 %2150
    %2152 = vrot.lane.b32.xlu0 %v268, 100
    %v2153 = vpop.permute.xlu0 %2152
    %2154 = vrot.lane.b32.xlu0 %v273, 100
    %v2155 = vpop.permute.xlu0 %2154
    %v2156 = vsel %vm342, %v2093, 0
    %v2158 = vsel %vm342, %v2095, 0
    %v2160 = vsel %vm342, %v2097, 0
    %v2162 = vsel %vm342, %v2099, 0
    %v2164 = vsel %vm342, %v2101, 0
    %v2166 = vsel %vm342, %v2103, 0
    %v2168 = vsel %vm342, %v2105, 0
    %v2170 = vsel %vm342, %v2107, 0
    %v2172 = vsel %vm342, %v2109, 0
    %v2174 = vsel %vm342, %v2111, 0
    %v2176 = vsel %vm342, %v2113, 0
    %v2178 = vsel %vm342, %v2115, 0
    %v2180 = vsel %vm342, %v2117, 0
    %v2182 = vsel %vm342, %v2119, 0
    %v2184 = vsel %vm342, %v2121, 0
    %v2186 = vsel %vm342, %v2123, 0
    %v2188 = vsel %vm342, %v2125, 0
    %v2190 = vsel %vm342, %v2127, 0
    %v2192 = vsel %vm342, %v2129, 0
    %v2194 = vsel %vm342, %v2131, 0
    %v2196 = vsel %vm342, %v2133, 0
    %v2198 = vsel %vm342, %v2135, 0
    %v2200 = vsel %vm342, %v2137, 0
    %v2202 = vsel %vm342, %v2139, 0
    %v2204 = vsel %vm342, %v2141, 0
    %v2206 = vsel %vm342, %v2143, 0
    %v2208 = vsel %vm342, %v2145, 0
    %v2210 = vsel %vm342, %v2147, 0
    %v2212 = vsel %vm342, %v2149, 0
    %v2214 = vsel %vm342, %v2151, 0
    %v2216 = vsel %vm342, %v2153, 0
    %v2218 = vsel %vm342, %v2155, 0
    %2220 = vmatprep.subr.mxu0 0.0
    %2221 = vmatpush1.xpose.msra.mxu0 %v2188
    %2222 = vmatprep.subr.mxu0 0.0
    %2223 = vmatpush1.xpose.msra.mxu0 %v2190
    %2224 = vmatprep.subr.mxu0 0.0
    %2225 = vmatpush1.xpose.msra.mxu0 %v2192
    %2226 = vmatprep.subr.mxu0 0.0
    %2227 = vmatpush1.xpose.msra.mxu0 %v2194
    %2228 = vmatprep.subr.mxu0 0.0
    %2229 = vmatpush1.xpose.msra.mxu0 %v2196
    %2230 = vmatprep.subr.mxu0 0.0
    %2231 = vmatpush1.xpose.msra.mxu0 %v2198
    %2232 = vmatprep.subr.mxu0 0.0
    %2233 = vmatpush1.xpose.msra.mxu0 %v2200
    %2234 = vmatprep.subr.mxu0 0.0
    %2235 = vmatpush1.xpose.msra.mxu0 %v2202
    %2236 = vmatprep.subr.mxu0 0.0
    %2237 = vmatpush1.xpose.msra.mxu0 %v2204
    %2238 = vmatprep.subr.mxu0 0.0
    %2239 = vmatpush1.xpose.msra.mxu0 %v2206
    %2240 = vmatprep.subr.mxu0 0.0
    %2241 = vmatpush1.xpose.msra.mxu0 %v2208
    %2242 = vmatprep.subr.mxu0 0.0
    %2243 = vmatpush1.xpose.msra.mxu0 %v2210
    %2244 = vmatprep.subr.mxu0 0.0
    %2245 = vmatpush1.xpose.msra.mxu0 %v2212
    %2246 = vmatprep.subr.mxu0 0.0
    %2247 = vmatpush1.xpose.msra.mxu0 %v2214
    %2248 = vmatprep.subr.mxu0 0.0
    %2249 = vmatpush1.xpose.msra.mxu0 %v2216
    %2250 = vmatprep.subr.mxu0 0.0
    %2251 = vmatpush1.xpose.msra.mxu0 %v2218
    %2252 = vmatprep.subr.mxu0 0.0
    %2253 = vmatpush1.xpose.msra.mxu0 0.0
    %2254 = vmatprep.subr.mxu0 0.0
    %2255 = vmatpush1.xpose.msra.mxu0 0.0
    %2256 = vmatprep.subr.mxu0 0.0
    %2257 = vmatpush1.xpose.msra.mxu0 0.0
    %2258 = vmatprep.subr.mxu0 0.0
    %2259 = vmatpush1.xpose.msra.mxu0 0.0
    %2260 = vmatprep.subr.mxu0 0.0
    %2261 = vmatpush1.xpose.msra.mxu0 0.0
    %2262 = vmatprep.subr.mxu0 0.0
    %2263 = vmatpush1.xpose.msra.mxu0 0.0
    %2264 = vmatprep.subr.mxu0 0.0
    %2265 = vmatpush1.xpose.msra.mxu0 0.0
    %2266 = vmatprep.subr.mxu0 0.0
    %2267 = vmatpush1.xpose.msra.mxu0 0.0
    %2268 = vmatprep.subr.mxu0 0.0
    %2269 = vmatpush1.xpose.msra.mxu0 0.0
    %2270 = vmatprep.subr.mxu0 0.0
    %2271 = vmatpush1.xpose.msra.mxu0 0.0
    %2272 = vmatprep.subr.mxu0 0.0
    %2273 = vmatpush1.xpose.msra.mxu0 0.0
    %2274 = vmatprep.subr.mxu0 0.0
    %2275 = vmatpush1.xpose.msra.mxu0 0.0
    %2276 = vmatprep.subr.mxu0 0.0
    %2277 = vmatpush1.xpose.msra.mxu0 0.0
    %2278 = vmatprep.subr.mxu0 0.0
    %2279 = vmatpush1.xpose.msra.mxu0 0.0
    %2280 = vmatprep.subr.mxu0 0.0
    %2281 = vmatpush1.xpose.msra.mxu0 0.0
    %2282 = vmatprep.subr.mxu0 0.0
    %2283 = vmatpush1.xpose.msra.mxu0 0.0
    %2284 = vmatprep.mubr.f32.mxu0 0.0
    %2285 = vmatmul.mubr.f32.gmra.mrb[0].mxu0 %v2156
    %v2286 = vpop.f32.mrb[0].mxu0
    %v2287 = vadd.f32 %v276, %v2286
    %v2288 = vpop.f32.mrb[0].mxu0
    %2289 = vmatprep.mubr.f32.mxu0 0.0
    %2290 = vmatmul.mubr.f32.gmra.mrb[0].mxu0 %v2158
    %v2291 = vpop.f32.mrb[0].mxu0
    %v2292 = vadd.f32 %v277, %v2291
    %v2293 = vpop.f32.mrb[0].mxu0
    %2294 = vmatprep.mubr.f32.mxu0 0.0
    %2295 = vmatmul.mubr.f32.gmra.mrb[0].mxu0 %v2160
    %v2296 = vpop.f32.mrb[0].mxu0
    %v2297 = vadd.f32 %v278, %v2296
    %v2298 = vpop.f32.mrb[0].mxu0
    %2299 = vmatprep.mubr.f32.mxu0 0.0
    %2300 = vmatmul.mubr.f32.gmra.mrb[0].mxu0 %v2162
    %v2301 = vpop.f32.mrb[0].mxu0
    %v2302 = vadd.f32 %v279, %v2301
    %v2303 = vpop.f32.mrb[0].mxu0
    %2304 = vmatprep.mubr.f32.mxu0 0.0
    %2305 = vmatmul.mubr.f32.gmra.mrb[0].mxu0 %v2164
    %v2306 = vpop.f32.mrb[0].mxu0
    %v2307 = vadd.f32 %v280, %v2306
    %v2308 = vpop.f32.mrb[0].mxu0
    %2309 = vmatprep.mubr.f32.mxu0 0.0
    %2310 = vmatmul.mubr.f32.gmra.mrb[0].mxu0 %v2166
    %v2311 = vpop.f32.mrb[0].mxu0
    %v2312 = vadd.f32 %v281, %v2311
    %v2313 = vpop.f32.mrb[0].mxu0
    %2314 = vmatprep.mubr.f32.mxu0 0.0
    %2315 = vmatmul.mubr.f32.gmra.mrb[0].mxu0 %v2168
    %v2316 = vpop.f32.mrb[0].mxu0
    %v2317 = vadd.f32 %v282, %v2316
    %v2318 = vpop.f32.mrb[0].mxu0
    %2319 = vmatprep.mubr.f32.mxu0 0.0
    %2320 = vmatmul.mubr.f32.gmra.mrb[0].mxu0 %v2170
    %v2321 = vpop.f32.mrb[0].mxu0
    %v2322 = vadd.f32 %v283, %v2321
    %v2323 = vpop.f32.mrb[0].mxu0
    %2324 = vmatprep.mubr.f32.mxu0 0.0
    %2325 = vmatmul.mubr.f32.gmra.mrb[0].mxu0 %v2172
    %v2326 = vpop.f32.mrb[0].mxu0
    %v2327 = vadd.f32 %v284, %v2326
    %v2328 = vpop.f32.mrb[0].mxu0
    %2329 = vmatprep.mubr.f32.mxu0 0.0
    %2330 = vmatmul.mubr.f32.gmra.mrb[0].mxu0 %v2174
    %v2331 = vpop.f32.mrb[0].mxu0
    %v2332 = vadd.f32 %v285, %v2331
    %v2333 = vpop.f32.mrb[0].mxu0
    %2334 = vmatprep.mubr.f32.mxu0 0.0
    %2335 = vmatmul.mubr.f32.gmra.mrb[0].mxu0 %v2176
    %v2336 = vpop.f32.mrb[0].mxu0
    %v2337 = vadd.f32 %v286, %v2336
    %v2338 = vpop.f32.mrb[0].mxu0
    %2339 = vmatprep.mubr.f32.mxu0 0.0
    %2340 = vmatmul.mubr.f32.gmra.mrb[0].mxu0 %v2178
    %v2341 = vpop.f32.mrb[0].mxu0
    %v2342 = vadd.f32 %v287, %v2341
    %v2343 = vpop.f32.mrb[0].mxu0
    %2344 = vmatprep.mubr.f32.mxu0 0.0
    %2345 = vmatmul.mubr.f32.gmra.mrb[0].mxu0 %v2180
    %v2346 = vpop.f32.mrb[0].mxu0
    %v2347 = vadd.f32 %v288, %v2346
    %v2348 = vpop.f32.mrb[0].mxu0
    %2349 = vmatprep.mubr.f32.mxu0 0.0
    %2350 = vmatmul.mubr.f32.gmra.mrb[0].mxu0 %v2182
    %v2351 = vpop.f32.mrb[0].mxu0
    %v2352 = vadd.f32 %v289, %v2351
    %v2353 = vpop.f32.mrb[0].mxu0
    %2354 = vmatprep.mubr.f32.mxu0 0.0
    %2355 = vmatmul.mubr.f32.gmra.mrb[0].mxu0 %v2184
    %v2356 = vpop.f32.mrb[0].mxu0
    %v2357 = vadd.f32 %v290, %v2356
    %v2358 = vpop.f32.mrb[0].mxu0
    %2359 = vmatprep.mubr.f32.mxu0 0.0
    %2360 = vmatmul.mubr.f32.gmra.mrb[0].mxu0 %v2186
    %v2361 = vpop.f32.mrb[0].mxu0
    %v2362 = vadd.f32 %v291, %v2361
    %v2363 = vpop.f32.mrb[0].mxu0
    %2364 = vdwg.mxu0
    %2365 = vmax.xlane.f32.xlu0 %v2287
    %v2366 = vpop.xlane.xlu0 %2365
    %2367 = vmax.xlane.f32.xlu0 %v2292
    %v2368 = vpop.xlane.xlu0 %2367
    %2369 = vmax.xlane.f32.xlu0 %v2297
    %v2370 = vpop.xlane.xlu0 %2369
    %2371 = vmax.xlane.f32.xlu0 %v2302
    %v2372 = vpop.xlane.xlu0 %2371
    %2373 = vmax.xlane.f32.xlu0 %v2307
    %v2374 = vpop.xlane.xlu0 %2373
    %2375 = vmax.xlane.f32.xlu0 %v2312
    %v2376 = vpop.xlane.xlu0 %2375
    %2377 = vmax.xlane.f32.xlu0 %v2317
    %v2378 = vpop.xlane.xlu0 %2377
    %2379 = vmax.xlane.f32.xlu0 %v2322
    %v2380 = vpop.xlane.xlu0 %2379
    %2381 = vmax.xlane.f32.xlu0 %v2327
    %v2382 = vpop.xlane.xlu0 %2381
    %2383 = vmax.xlane.f32.xlu0 %v2332
    %v2384 = vpop.xlane.xlu0 %2383
    %2385 = vmax.xlane.f32.xlu0 %v2337
    %v2386 = vpop.xlane.xlu0 %2385
    %2387 = vmax.xlane.f32.xlu0 %v2342
    %v2388 = vpop.xlane.xlu0 %2387
    %2389 = vmax.xlane.f32.xlu0 %v2347
    %v2390 = vpop.xlane.xlu0 %2389
    %2391 = vmax.xlane.f32.xlu0 %v2352
    %v2392 = vpop.xlane.xlu0 %2391
    %2393 = vmax.xlane.f32.xlu0 %v2357
    %v2394 = vpop.xlane.xlu0 %2393
    %2395 = vmax.xlane.f32.xlu0 %v2362
    %v2396 = vpop.xlane.xlu0 %2395
    %v2397 = vsub.f32 %v2287, %v2366
    %v2398 = vsub.f32 %v2292, %v2368
    %v2399 = vsub.f32 %v2297, %v2370
    %v2400 = vsub.f32 %v2302, %v2372
    %v2401 = vsub.f32 %v2307, %v2374
    %v2402 = vsub.f32 %v2312, %v2376
    %v2403 = vsub.f32 %v2317, %v2378
    %v2404 = vsub.f32 %v2322, %v2380
    %v2405 = vsub.f32 %v2327, %v2382
    %v2406 = vsub.f32 %v2332, %v2384
    %v2407 = vsub.f32 %v2337, %v2386
    %v2408 = vsub.f32 %v2342, %v2388
    %v2409 = vsub.f32 %v2347, %v2390
    %v2410 = vsub.f32 %v2352, %v2392
    %v2411 = vsub.f32 %v2357, %v2394
    %v2412 = vsub.f32 %v2362, %v2396
    %v2413 = vmul.f32 %v2397, 1.442695
    %v2414 = vpow.pop %v2413
    %v2415 = vmul.f32 %v2398, 1.442695
    %v2416 = vpow.pop %v2415
    %v2417 = vmul.f32 %v2399, 1.442695
    %v2418 = vpow.pop %v2417
    %v2419 = vmul.f32 %v2400, 1.442695
    %v2420 = vpow.pop %v2419
    %v2421 = vmul.f32 %v2401, 1.442695
    %v2422 = vpow.pop %v2421
    %v2423 = vmul.f32 %v2402, 1.442695
    %v2424 = vpow.pop %v2423
    %v2425 = vmul.f32 %v2403, 1.442695
    %v2426 = vpow.pop %v2425
    %v2427 = vmul.f32 %v2404, 1.442695
    %v2428 = vpow.pop %v2427
    %v2429 = vmul.f32 %v2405, 1.442695
    %v2430 = vpow.pop %v2429
    %v2431 = vmul.f32 %v2406, 1.442695
    %v2432 = vpow.pop %v2431
    %v2433 = vmul.f32 %v2407, 1.442695
    %v2434 = vpow.pop %v2433
    %v2435 = vmul.f32 %v2408, 1.442695
    %v2436 = vpow.pop %v2435
    %v2437 = vmul.f32 %v2409, 1.442695
    %v2438 = vpow.pop %v2437
    %v2439 = vmul.f32 %v2410, 1.442695
    %v2440 = vpow.pop %v2439
    %v2441 = vmul.f32 %v2411, 1.442695
    %v2442 = vpow.pop %v2441
    %v2443 = vmul.f32 %v2412, 1.442695
    %v2444 = vpow.pop %v2443
    %2445 = vadd.xlane.f32.xlu0 %v2414
    %v2446 = vpop.xlane.xlu0 %2445
    %2447 = vadd.xlane.f32.xlu0 %v2416
    %v2448 = vpop.xlane.xlu0 %2447
    %2449 = vadd.xlane.f32.xlu0 %v2418
    %v2450 = vpop.xlane.xlu0 %2449
    %2451 = vadd.xlane.f32.xlu0 %v2420
    %v2452 = vpop.xlane.xlu0 %2451
    %2453 = vadd.xlane.f32.xlu0 %v2422
    %v2454 = vpop.xlane.xlu0 %2453
    %2455 = vadd.xlane.f32.xlu0 %v2424
    %v2456 = vpop.xlane.xlu0 %2455
    %2457 = vadd.xlane.f32.xlu0 %v2426
    %v2458 = vpop.xlane.xlu0 %2457
    %2459 = vadd.xlane.f32.xlu0 %v2428
    %v2460 = vpop.xlane.xlu0 %2459
    %2461 = vadd.xlane.f32.xlu0 %v2430
    %v2462 = vpop.xlane.xlu0 %2461
    %2463 = vadd.xlane.f32.xlu0 %v2432
    %v2464 = vpop.xlane.xlu0 %2463
    %2465 = vadd.xlane.f32.xlu0 %v2434
    %v2466 = vpop.xlane.xlu0 %2465
    %2467 = vadd.xlane.f32.xlu0 %v2436
    %v2468 = vpop.xlane.xlu0 %2467
    %2469 = vadd.xlane.f32.xlu0 %v2438
    %v2470 = vpop.xlane.xlu0 %2469
    %2471 = vadd.xlane.f32.xlu0 %v2440
    %v2472 = vpop.xlane.xlu0 %2471
    %2473 = vadd.xlane.f32.xlu0 %v2442
    %v2474 = vpop.xlane.xlu0 %2473
    %2475 = vadd.xlane.f32.xlu0 %v2444
    %v2476 = vpop.xlane.xlu0 %2475
    %v2477 = vrcp.pop %v2446
    %v2478 = vrcp.pop %v2448
    %v2479 = vrcp.pop %v2450
    %v2480 = vrcp.pop %v2452
    %v2481 = vrcp.pop %v2454
    %v2482 = vrcp.pop %v2456
    %v2483 = vrcp.pop %v2458
    %v2484 = vrcp.pop %v2460
    %v2485 = vrcp.pop %v2462
    %v2486 = vrcp.pop %v2464
    %v2487 = vrcp.pop %v2466
    %v2488 = vrcp.pop %v2468
    %v2489 = vrcp.pop %v2470
    %v2490 = vrcp.pop %v2472
    %v2491 = vrcp.pop %v2474
    %v2492 = vrcp.pop %v2476
    %v2493 = vmul.f32 %v2414, %v2477
    %v2494 = vmul.f32 %v2416, %v2478
    %v2495 = vmul.f32 %v2418, %v2479
    %v2496 = vmul.f32 %v2420, %v2480
    %v2497 = vmul.f32 %v2422, %v2481
    %v2498 = vmul.f32 %v2424, %v2482
    %v2499 = vmul.f32 %v2426, %v2483
    %v2500 = vmul.f32 %v2428, %v2484
    %v2501 = vmul.f32 %v2430, %v2485
    %v2502 = vmul.f32 %v2432, %v2486
    %v2503 = vmul.f32 %v2434, %v2487
    %v2504 = vmul.f32 %v2436, %v2488
    %v2505 = vmul.f32 %v2438, %v2489
    %v2506 = vmul.f32 %v2440, %v2490
    %v2507 = vmul.f32 %v2442, %v2491
    %v2508 = vmul.f32 %v2444, %v2492
    %vm2509 = vcmp.ge.s32.totalorder %v293, 12
    %vm2510 = vcmp.lt.s32.totalorder %v293, 16
    %vm2511 = vmand %vm2509, %vm2510
    %v2512 = vsel %vm2511, 1, 0
    %vm2513 = vcmp.eq.s32.totalorder %v2512, 1
    %v2514 = vsel %vm2513, %v702, 0.0
    %v2515 = vsel %vm2513, %v704, 0.0
    %v2516 = vsel %vm2513, %v706, 0.0
    %v2517 = vsel %vm2513, %v708, 0.0
    %v2518 = vsel %vm2513, %v710, 0.0
    %v2519 = vsel %vm2513, %v712, 0.0
    %v2520 = vsel %vm2513, %v714, 0.0
    %v2521 = vsel %vm2513, %v716, 0.0
    %v2522 = vsel %vm2513, %v718, 0.0
    %v2523 = vsel %vm2513, %v720, 0.0
    %v2524 = vsel %vm2513, %v722, 0.0
    %v2525 = vsel %vm2513, %v724, 0.0
    %v2526 = vsel %vm2513, %v726, 0.0
    %v2527 = vsel %vm2513, %v728, 0.0
    %v2528 = vsel %vm2513, %v730, 0.0
    %v2529 = vsel %vm2513, %v732, 0.0
    %2530 = vmatprep.subr.mxu0 0.0
    %2531 = vmatpush1.msra.mxu0 %v2514
    %2532 = vmatprep.subr.mxu0 0.0
    %2533 = vmatpush1.msra.mxu0 %v2515
    %2534 = vmatprep.subr.mxu0 0.0
    %2535 = vmatpush1.msra.mxu0 %v2516
    %2536 = vmatprep.subr.mxu0 0.0
    %2537 = vmatpush1.msra.mxu0 %v2517
    %2538 = vmatprep.subr.mxu0 0.0
    %2539 = vmatpush1.msra.mxu0 %v2518
    %2540 = vmatprep.subr.mxu0 0.0
    %2541 = vmatpush1.msra.mxu0 %v2519
    %2542 = vmatprep.subr.mxu0 0.0
    %2543 = vmatpush1.msra.mxu0 %v2520
    %2544 = vmatprep.subr.mxu0 0.0
    %2545 = vmatpush1.msra.mxu0 %v2521
    %2546 = vmatprep.subr.mxu0 0.0
    %2547 = vmatpush1.msra.mxu0 %v2522
    %2548 = vmatprep.subr.mxu0 0.0
    %2549 = vmatpush1.msra.mxu0 %v2523
    %2550 = vmatprep.subr.mxu0 0.0
    %2551 = vmatpush1.msra.mxu0 %v2524
    %2552 = vmatprep.subr.mxu0 0.0
    %2553 = vmatpush1.msra.mxu0 %v2525
    %2554 = vmatprep.subr.mxu0 0.0
    %2555 = vmatpush1.msra.mxu0 %v2526
    %2556 = vmatprep.subr.mxu0 0.0
    %2557 = vmatpush1.msra.mxu0 %v2527
    %2558 = vmatprep.subr.mxu0 0.0
    %2559 = vmatpush1.msra.mxu0 %v2528
    %2560 = vmatprep.subr.mxu0 0.0
    %2561 = vmatpush1.msra.mxu0 %v2529
    %2562 = vmatprep.subr.mxu0 0.0
    %2563 = vmatpush1.msra.mxu0 0.0
    %2564 = vmatprep.subr.mxu0 0.0
    %2565 = vmatpush1.msra.mxu0 0.0
    %2566 = vmatprep.subr.mxu0 0.0
    %2567 = vmatpush1.msra.mxu0 0.0
    %2568 = vmatprep.subr.mxu0 0.0
    %2569 = vmatpush1.msra.mxu0 0.0
    %2570 = vmatprep.subr.mxu0 0.0
    %2571 = vmatpush1.msra.mxu0 0.0
    %2572 = vmatprep.subr.mxu0 0.0
    %2573 = vmatpush1.msra.mxu0 0.0
    %2574 = vmatprep.subr.mxu0 0.0
    %2575 = vmatpush1.msra.mxu0 0.0
    %2576 = vmatprep.subr.mxu0 0.0
    %2577 = vmatpush1.msra.mxu0 0.0
    %2578 = vmatprep.subr.mxu0 0.0
    %2579 = vmatpush1.msra.mxu0 0.0
    %2580 = vmatprep.subr.mxu0 0.0
    %2581 = vmatpush1.msra.mxu0 0.0
    %2582 = vmatprep.subr.mxu0 0.0
    %2583 = vmatpush1.msra.mxu0 0.0
    %2584 = vmatprep.subr.mxu0 0.0
    %2585 = vmatpush1.msra.mxu0 0.0
    %2586 = vmatprep.subr.mxu0 0.0
    %2587 = vmatpush1.msra.mxu0 0.0
    %2588 = vmatprep.subr.mxu0 0.0
    %2589 = vmatpush1.msra.mxu0 0.0
    %2590 = vmatprep.subr.mxu0 0.0
    %2591 = vmatpush1.msra.mxu0 0.0
    %2592 = vmatprep.subr.mxu0 0.0
    %2593 = vmatpush1.msra.mxu0 0.0
    %2594 = vmatprep.mubr.f32.mxu0 0.0
    %2595 = vmatmul.mubr.f32.gmra.mrb[0].mxu0 %v2493
    %v2596 = vpop.f32.mrb[0].mxu0
    %v2597 = vadd.f32 0.0, %v2596
    %v2598 = vpop.f32.mrb[0].mxu0
    %2599 = vmatprep.mubr.f32.mxu0 0.0
    %2600 = vmatmul.mubr.f32.gmra.mrb[0].mxu0 %v2494
    %v2601 = vpop.f32.mrb[0].mxu0
    %v2602 = vadd.f32 0.0, %v2601
    %v2603 = vpop.f32.mrb[0].mxu0
    %2604 = vmatprep.mubr.f32.mxu0 0.0
    %2605 = vmatmul.mubr.f32.gmra.mrb[0].mxu0 %v2495
    %v2606 = vpop.f32.mrb[0].mxu0
    %v2607 = vadd.f32 0.0, %v2606
    %v2608 = vpop.f32.mrb[0].mxu0
    %2609 = vmatprep.mubr.f32.mxu0 0.0
    %2610 = vmatmul.mubr.f32.gmra.mrb[0].mxu0 %v2496
    %v2611 = vpop.f32.mrb[0].mxu0
    %v2612 = vadd.f32 0.0, %v2611
    %v2613 = vpop.f32.mrb[0].mxu0
    %2614 = vmatprep.mubr.f32.mxu0 0.0
    %2615 = vmatmul.mubr.f32.gmra.mrb[0].mxu0 %v2497
    %v2616 = vpop.f32.mrb[0].mxu0
    %v2617 = vadd.f32 0.0, %v2616
    %v2618 = vpop.f32.mrb[0].mxu0
    %2619 = vmatprep.mubr.f32.mxu0 0.0
    %2620 = vmatmul.mubr.f32.gmra.mrb[0].mxu0 %v2498
    %v2621 = vpop.f32.mrb[0].mxu0
    %v2622 = vadd.f32 0.0, %v2621
    %v2623 = vpop.f32.mrb[0].mxu0
    %2624 = vmatprep.mubr.f32.mxu0 0.0
    %2625 = vmatmul.mubr.f32.gmra.mrb[0].mxu0 %v2499
    %v2626 = vpop.f32.mrb[0].mxu0
    %v2627 = vadd.f32 0.0, %v2626
    %v2628 = vpop.f32.mrb[0].mxu0
    %2629 = vmatprep.mubr.f32.mxu0 0.0
    %2630 = vmatmul.mubr.f32.gmra.mrb[0].mxu0 %v2500
    %v2631 = vpop.f32.mrb[0].mxu0
    %v2632 = vadd.f32 0.0, %v2631
    %v2633 = vpop.f32.mrb[0].mxu0
    %2634 = vmatprep.mubr.f32.mxu0 0.0
    %2635 = vmatmul.mubr.f32.gmra.mrb[0].mxu0 %v2501
    %v2636 = vpop.f32.mrb[0].mxu0
    %v2637 = vadd.f32 0.0, %v2636
    %v2638 = vpop.f32.mrb[0].mxu0
    %2639 = vmatprep.mubr.f32.mxu0 0.0
    %2640 = vmatmul.mubr.f32.gmra.mrb[0].mxu0 %v2502
    %v2641 = vpop.f32.mrb[0].mxu0
    %v2642 = vadd.f32 0.0, %v2641
    %v2643 = vpop.f32.mrb[0].mxu0
    %2644 = vmatprep.mubr.f32.mxu0 0.0
    %2645 = vmatmul.mubr.f32.gmra.mrb[0].mxu0 %v2503
    %v2646 = vpop.f32.mrb[0].mxu0
    %v2647 = vadd.f32 0.0, %v2646
    %v2648 = vpop.f32.mrb[0].mxu0
    %2649 = vmatprep.mubr.f32.mxu0 0.0
    %2650 = vmatmul.mubr.f32.gmra.mrb[0].mxu0 %v2504
    %v2651 = vpop.f32.mrb[0].mxu0
    %v2652 = vadd.f32 0.0, %v2651
    %v2653 = vpop.f32.mrb[0].mxu0
    %2654 = vmatprep.mubr.f32.mxu0 0.0
    %2655 = vmatmul.mubr.f32.gmra.mrb[0].mxu0 %v2505
    %v2656 = vpop.f32.mrb[0].mxu0
    %v2657 = vadd.f32 0.0, %v2656
    %v2658 = vpop.f32.mrb[0].mxu0
    %2659 = vmatprep.mubr.f32.mxu0 0.0
    %2660 = vmatmul.mubr.f32.gmra.mrb[0].mxu0 %v2506
    %v2661 = vpop.f32.mrb[0].mxu0
    %v2662 = vadd.f32 0.0, %v2661
    %v2663 = vpop.f32.mrb[0].mxu0
    %2664 = vmatprep.mubr.f32.mxu0 0.0
    %2665 = vmatmul.mubr.f32.gmra.mrb[0].mxu0 %v2507
    %v2666 = vpop.f32.mrb[0].mxu0
    %v2667 = vadd.f32 0.0, %v2666
    %v2668 = vpop.f32.mrb[0].mxu0
    %2669 = vmatprep.mubr.f32.mxu0 0.0
    %2670 = vmatmul.mubr.f32.gmra.mrb[0].mxu0 %v2508
    %v2671 = vpop.f32.mrb[0].mxu0
    %v2672 = vadd.f32 0.0, %v2671
    %v2673 = vpop.f32.mrb[0].mxu0
    %2674 = vdwg.mxu0
    %v2675 = vadd.f32 %v2076, %v2597
    %v2676 = vadd.f32 %v2077, %v2602
    %v2677 = vadd.f32 %v2078, %v2607
    %v2678 = vadd.f32 %v2079, %v2612
    %v2679 = vadd.f32 %v2080, %v2617
    %v2680 = vadd.f32 %v2081, %v2622
    %v2681 = vadd.f32 %v2082, %v2627
    %v2682 = vadd.f32 %v2083, %v2632
    %v2683 = vadd.f32 %v2084, %v2637
    %v2684 = vadd.f32 %v2085, %v2642
    %v2685 = vadd.f32 %v2086, %v2647
    %v2686 = vadd.f32 %v2087, %v2652
    %v2687 = vadd.f32 %v2088, %v2657
    %v2688 = vadd.f32 %v2089, %v2662
    %v2689 = vadd.f32 %v2090, %v2667
    %v2690 = vadd.f32 %v2091, %v2672
    %v2691 = vld [vmem:[%s4] sm:$0x1]
    %v2692 = vld [vmem:[%s5] sm:$0x1]
    %v2693 = vsel %vm82, %v2675, 0.0
    %2694 = vadd.xlane.f32.xlu0 %v2693
    %v2695 = vpop.xlane.xlu0 %2694
    %v2696 = vsel %vm82, %v2676, 0.0
    %2697 = vadd.xlane.f32.xlu0 %v2696
    %v2698 = vpop.xlane.xlu0 %2697
    %v2699 = vsel %vm82, %v2677, 0.0
    %2700 = vadd.xlane.f32.xlu0 %v2699
    %v2701 = vpop.xlane.xlu0 %2700
    %v2702 = vsel %vm82, %v2678, 0.0
    %2703 = vadd.xlane.f32.xlu0 %v2702
    %v2704 = vpop.xlane.xlu0 %2703
    %v2705 = vsel %vm82, %v2679, 0.0
    %2706 = vadd.xlane.f32.xlu0 %v2705
    %v2707 = vpop.xlane.xlu0 %2706
    %v2708 = vsel %vm82, %v2680, 0.0
    %2709 = vadd.xlane.f32.xlu0 %v2708
    %v2710 = vpop.xlane.xlu0 %2709
    %v2711 = vsel %vm82, %v2681, 0.0
    %2712 = vadd.xlane.f32.xlu0 %v2711
    %v2713 = vpop.xlane.xlu0 %2712
    %v2714 = vsel %vm82, %v2682, 0.0
    %2715 = vadd.xlane.f32.xlu0 %v2714
    %v2716 = vpop.xlane.xlu0 %2715
    %v2717 = vsel %vm82, %v2683, 0.0
    %2718 = vadd.xlane.f32.xlu0 %v2717
    %v2719 = vpop.xlane.xlu0 %2718
    %v2720 = vsel %vm82, %v2684, 0.0
    %2721 = vadd.xlane.f32.xlu0 %v2720
    %v2722 = vpop.xlane.xlu0 %2721
    %v2723 = vsel %vm82, %v2685, 0.0
    %2724 = vadd.xlane.f32.xlu0 %v2723
    %v2725 = vpop.xlane.xlu0 %2724
    %v2726 = vsel %vm82, %v2686, 0.0
    %2727 = vadd.xlane.f32.xlu0 %v2726
    %v2728 = vpop.xlane.xlu0 %2727
    %v2729 = vsel %vm82, %v2687, 0.0
    %2730 = vadd.xlane.f32.xlu0 %v2729
    %v2731 = vpop.xlane.xlu0 %2730
    %v2732 = vsel %vm82, %v2688, 0.0
    %2733 = vadd.xlane.f32.xlu0 %v2732
    %v2734 = vpop.xlane.xlu0 %2733
    %v2735 = vsel %vm82, %v2689, 0.0
    %2736 = vadd.xlane.f32.xlu0 %v2735
    %v2737 = vpop.xlane.xlu0 %2736
    %v2738 = vsel %vm82, %v2690, 0.0
    %2739 = vadd.xlane.f32.xlu0 %v2738
    %v2740 = vpop.xlane.xlu0 %2739
    %v2741 = vrcp.pop 16.0
    %v2742 = vmul.f32 %v2695, %v2741
    %v2743 = vmul.f32 %v2698, %v2741
    %v2744 = vmul.f32 %v2701, %v2741
    %v2745 = vmul.f32 %v2704, %v2741
    %v2746 = vmul.f32 %v2707, %v2741
    %v2747 = vmul.f32 %v2710, %v2741
    %v2748 = vmul.f32 %v2713, %v2741
    %v2749 = vmul.f32 %v2716, %v2741
    %v2750 = vmul.f32 %v2719, %v2741
    %v2751 = vmul.f32 %v2722, %v2741
    %v2752 = vmul.f32 %v2725, %v2741
    %v2753 = vmul.f32 %v2728, %v2741
    %v2754 = vmul.f32 %v2731, %v2741
    %v2755 = vmul.f32 %v2734, %v2741
    %v2756 = vmul.f32 %v2737, %v2741
    %v2757 = vmul.f32 %v2740, %v2741
    %v2758 = vsub.f32 %v2675, %v2742
    %v2759 = vsub.f32 %v2676, %v2743
    %v2760 = vsub.f32 %v2677, %v2744
    %v2761 = vsub.f32 %v2678, %v2745
    %v2762 = vsub.f32 %v2679, %v2746
    %v2763 = vsub.f32 %v2680, %v2747
    %v2764 = vsub.f32 %v2681, %v2748
    %v2765 = vsub.f32 %v2682, %v2749
    %v2766 = vsub.f32 %v2683, %v2750
    %v2767 = vsub.f32 %v2684, %v2751
    %v2768 = vsub.f32 %v2685, %v2752
    %v2769 = vsub.f32 %v2686, %v2753
    %v2770 = vsub.f32 %v2687, %v2754
    %v2771 = vsub.f32 %v2688, %v2755
    %v2772 = vsub.f32 %v2689, %v2756
    %v2773 = vsub.f32 %v2690, %v2757
    %v2774 = vmul.f32 %v2758, %v2758
    %v2775 = vmul.f32 %v2759, %v2759
    %v2776 = vmul.f32 %v2760, %v2760
    %v2777 = vmul.f32 %v2761, %v2761
    %v2778 = vmul.f32 %v2762, %v2762
    %v2779 = vmul.f32 %v2763, %v2763
    %v2780 = vmul.f32 %v2764, %v2764
    %v2781 = vmul.f32 %v2765, %v2765
    %v2782 = vmul.f32 %v2766, %v2766
    %v2783 = vmul.f32 %v2767, %v2767
    %v2784 = vmul.f32 %v2768, %v2768
    %v2785 = vmul.f32 %v2769, %v2769
    %v2786 = vmul.f32 %v2770, %v2770
    %v2787 = vmul.f32 %v2771, %v2771
    %v2788 = vmul.f32 %v2772, %v2772
    %v2789 = vmul.f32 %v2773, %v2773
    %v2790 = vsel %vm82, %v2774, 0.0
    %2791 = vadd.xlane.f32.xlu0 %v2790
    %v2792 = vpop.xlane.xlu0 %2791
    %v2793 = vsel %vm82, %v2775, 0.0
    %2794 = vadd.xlane.f32.xlu0 %v2793
    %v2795 = vpop.xlane.xlu0 %2794
    %v2796 = vsel %vm82, %v2776, 0.0
    %2797 = vadd.xlane.f32.xlu0 %v2796
    %v2798 = vpop.xlane.xlu0 %2797
    %v2799 = vsel %vm82, %v2777, 0.0
    %2800 = vadd.xlane.f32.xlu0 %v2799
    %v2801 = vpop.xlane.xlu0 %2800
    %v2802 = vsel %vm82, %v2778, 0.0
    %2803 = vadd.xlane.f32.xlu0 %v2802
    %v2804 = vpop.xlane.xlu0 %2803
    %v2805 = vsel %vm82, %v2779, 0.0
    %2806 = vadd.xlane.f32.xlu0 %v2805
    %v2807 = vpop.xlane.xlu0 %2806
    %v2808 = vsel %vm82, %v2780, 0.0
    %2809 = vadd.xlane.f32.xlu0 %v2808
    %v2810 = vpop.xlane.xlu0 %2809
    %v2811 = vsel %vm82, %v2781, 0.0
    %2812 = vadd.xlane.f32.xlu0 %v2811
    %v2813 = vpop.xlane.xlu0 %2812
    %v2814 = vsel %vm82, %v2782, 0.0
    %2815 = vadd.xlane.f32.xlu0 %v2814
    %v2816 = vpop.xlane.xlu0 %2815
    %v2817 = vsel %vm82, %v2783, 0.0
    %2818 = vadd.xlane.f32.xlu0 %v2817
    %v2819 = vpop.xlane.xlu0 %2818
    %v2820 = vsel %vm82, %v2784, 0.0
    %2821 = vadd.xlane.f32.xlu0 %v2820
    %v2822 = vpop.xlane.xlu0 %2821
    %v2823 = vsel %vm82, %v2785, 0.0
    %2824 = vadd.xlane.f32.xlu0 %v2823
    %v2825 = vpop.xlane.xlu0 %2824
    %v2826 = vsel %vm82, %v2786, 0.0
    %2827 = vadd.xlane.f32.xlu0 %v2826
    %v2828 = vpop.xlane.xlu0 %2827
    %v2829 = vsel %vm82, %v2787, 0.0
    %2830 = vadd.xlane.f32.xlu0 %v2829
    %v2831 = vpop.xlane.xlu0 %2830
    %v2832 = vsel %vm82, %v2788, 0.0
    %2833 = vadd.xlane.f32.xlu0 %v2832
    %v2834 = vpop.xlane.xlu0 %2833
    %v2835 = vsel %vm82, %v2789, 0.0
    %2836 = vadd.xlane.f32.xlu0 %v2835
    %v2837 = vpop.xlane.xlu0 %2836
    %v2838 = vmul.f32 %v2792, %v2741
    %v2839 = vmul.f32 %v2795, %v2741
    %v2840 = vmul.f32 %v2798, %v2741
    %v2841 = vmul.f32 %v2801, %v2741
    %v2842 = vmul.f32 %v2804, %v2741
    %v2843 = vmul.f32 %v2807, %v2741
    %v2844 = vmul.f32 %v2810, %v2741
    %v2845 = vmul.f32 %v2813, %v2741
    %v2846 = vmul.f32 %v2816, %v2741
    %v2847 = vmul.f32 %v2819, %v2741
    %v2848 = vmul.f32 %v2822, %v2741
    %v2849 = vmul.f32 %v2825, %v2741
    %v2850 = vmul.f32 %v2828, %v2741
    %v2851 = vmul.f32 %v2831, %v2741
    %v2852 = vmul.f32 %v2834, %v2741
    %v2853 = vmul.f32 %v2837, %v2741
    %v2854 = vadd.f32 %v2838, 1e-05
    %v2855 = vadd.f32 %v2839, 1e-05
    %v2856 = vadd.f32 %v2840, 1e-05
    %v2857 = vadd.f32 %v2841, 1e-05
    %v2858 = vadd.f32 %v2842, 1e-05
    %v2859 = vadd.f32 %v2843, 1e-05
    %v2860 = vadd.f32 %v2844, 1e-05
    %v2861 = vadd.f32 %v2845, 1e-05
    %v2862 = vadd.f32 %v2846, 1e-05
    %v2863 = vadd.f32 %v2847, 1e-05
    %v2864 = vadd.f32 %v2848, 1e-05
    %v2865 = vadd.f32 %v2849, 1e-05
    %v2866 = vadd.f32 %v2850, 1e-05
    %v2867 = vadd.f32 %v2851, 1e-05
    %v2868 = vadd.f32 %v2852, 1e-05
    %v2869 = vadd.f32 %v2853, 1e-05
    %v2870 = vrsqrt.pop %v2854
    %v2871 = vrsqrt.pop %v2855
    %v2872 = vrsqrt.pop %v2856
    %v2873 = vrsqrt.pop %v2857
    %v2874 = vrsqrt.pop %v2858
    %v2875 = vrsqrt.pop %v2859
    %v2876 = vrsqrt.pop %v2860
    %v2877 = vrsqrt.pop %v2861
    %v2878 = vrsqrt.pop %v2862
    %v2879 = vrsqrt.pop %v2863
    %v2880 = vrsqrt.pop %v2864
    %v2881 = vrsqrt.pop %v2865
    %v2882 = vrsqrt.pop %v2866
    %v2883 = vrsqrt.pop %v2867
    %v2884 = vrsqrt.pop %v2868
    %v2885 = vrsqrt.pop %v2869
    %v2886 = vmul.f32 %v2758, %v2870
    %v2887 = vmul.f32 %v2759, %v2871
    %v2888 = vmul.f32 %v2760, %v2872
    %v2889 = vmul.f32 %v2761, %v2873
    %v2890 = vmul.f32 %v2762, %v2874
    %v2891 = vmul.f32 %v2763, %v2875
    %v2892 = vmul.f32 %v2764, %v2876
    %v2893 = vmul.f32 %v2765, %v2877
    %v2894 = vmul.f32 %v2766, %v2878
    %v2895 = vmul.f32 %v2767, %v2879
    %v2896 = vmul.f32 %v2768, %v2880
    %v2897 = vmul.f32 %v2769, %v2881
    %v2898 = vmul.f32 %v2770, %v2882
    %v2899 = vmul.f32 %v2771, %v2883
    %v2900 = vmul.f32 %v2772, %v2884
    %v2901 = vmul.f32 %v2773, %v2885
    %v2903 = vlaneseq
    %v2904 = vshrl.u32 %v2903, 7
    %v2905 = vsub.s32 0, %v2904
    %v2906 = vrot.slane %v2691, %v2905
    %v2908 = vmul.f32 %v2886, %v2906
    %v2909 = vmul.f32 %v2887, %v2906
    %v2910 = vmul.f32 %v2888, %v2906
    %v2911 = vmul.f32 %v2889, %v2906
    %v2912 = vmul.f32 %v2890, %v2906
    %v2913 = vmul.f32 %v2891, %v2906
    %v2914 = vmul.f32 %v2892, %v2906
    %v2915 = vmul.f32 %v2893, %v2906
    %v2916 = vmul.f32 %v2894, %v2906
    %v2917 = vmul.f32 %v2895, %v2906
    %v2918 = vmul.f32 %v2896, %v2906
    %v2919 = vmul.f32 %v2897, %v2906
    %v2920 = vmul.f32 %v2898, %v2906
    %v2921 = vmul.f32 %v2899, %v2906
    %v2922 = vmul.f32 %v2900, %v2906
    %v2923 = vmul.f32 %v2901, %v2906
    %v2925 = vlaneseq
    %v2926 = vshrl.u32 %v2925, 7
    %v2927 = vsub.s32 0, %v2926
    %v2928 = vrot.slane %v2692, %v2927
    %v2930 = vadd.f32 %v2908, %v2928
    %v2931 = vadd.f32 %v2909, %v2928
    %v2932 = vadd.f32 %v2910, %v2928
    %v2933 = vadd.f32 %v2911, %v2928
    %v2934 = vadd.f32 %v2912, %v2928
    %v2935 = vadd.f32 %v2913, %v2928
    %v2936 = vadd.f32 %v2914, %v2928
    %v2937 = vadd.f32 %v2915, %v2928
    %v2938 = vadd.f32 %v2916, %v2928
    %v2939 = vadd.f32 %v2917, %v2928
    %v2940 = vadd.f32 %v2918, %v2928
    %v2941 = vadd.f32 %v2919, %v2928
    %v2942 = vadd.f32 %v2920, %v2928
    %v2943 = vadd.f32 %v2921, %v2928
    %v2944 = vadd.f32 %v2922, %v2928
    %v2945 = vadd.f32 %v2923, %v2928
    %v2946 = vadd.f32 %v2930, %v57
    %v2947 = vadd.f32 %v2931, %v58
    %v2948 = vadd.f32 %v2932, %v59
    %v2949 = vadd.f32 %v2933, %v60
    %v2950 = vadd.f32 %v2934, %v61
    %v2951 = vadd.f32 %v2935, %v62
    %v2952 = vadd.f32 %v2936, %v63
    %v2953 = vadd.f32 %v2937, %v64
    %v2954 = vadd.f32 %v2938, %v65
    %v2955 = vadd.f32 %v2939, %v66
    %v2956 = vadd.f32 %v2940, %v67
    %v2957 = vadd.f32 %v2941, %v68
    %v2958 = vadd.f32 %v2942, %v69
    %v2959 = vadd.f32 %v2943, %v70
    %v2960 = vadd.f32 %v2944, %v71
    %v2961 = vadd.f32 %v2945, %v72
    %v2962 = vld [vmem:[%s6] sm:$0xff]
    %v2963 = vld [vmem:[%s6 + $0x8] sm:$0xff]
    %v2964 = vld [vmem:[%s7] sm:$0x1]
    %v2966 = vlaneseq
    %v2967 = vshrl.u32 %v2966, 7
    %v2968 = vsub.s32 0, %v2967
    %v2969 = vrot.slane %v2964, %v2968
    %v2972 = vsel %vm82, %v2946, 0
    %v2975 = vsel %vm82, %v2947, 0
    %v2978 = vsel %vm82, %v2948, 0
    %v2981 = vsel %vm82, %v2949, 0
    %v2984 = vsel %vm82, %v2950, 0
    %v2987 = vsel %vm82, %v2951, 0
    %v2990 = vsel %vm82, %v2952, 0
    %v2993 = vsel %vm82, %v2953, 0
    %v2996 = vsel %vm82, %v2954, 0
    %v2999 = vsel %vm82, %v2955, 0
    %v3002 = vsel %vm82, %v2956, 0
    %v3005 = vsel %vm82, %v2957, 0
    %v3008 = vsel %vm82, %v2958, 0
    %v3011 = vsel %vm82, %v2959, 0
    %v3014 = vsel %vm82, %v2960, 0
    %v3017 = vsel %vm82, %v2961, 0
    %3019 = vmatprep.subr.mxu0 0.0
    %3020 = vmatpush1.msra.mxu0 %v2962
    %3021 = vmatprep.subr.mxu0 0.0
    %3022 = vmatpush1.msra.mxu0 %v2963
    %3023 = vmatprep.subr.mxu0 0.0
    %3024 = vmatpush1.msra.mxu0 0.0
    %3025 = vmatprep.subr.mxu0 0.0
    %3026 = vmatpush1.msra.mxu0 0.0
    %3027 = vmatprep.subr.mxu0 0.0
    %3028 = vmatpush1.msra.mxu0 0.0
    %3029 = vmatprep.subr.mxu0 0.0
    %3030 = vmatpush1.msra.mxu0 0.0
    %3031 = vmatprep.subr.mxu0 0.0
    %3032 = vmatpush1.msra.mxu0 0.0
    %3033 = vmatprep.subr.mxu0 0.0
    %3034 = vmatpush1.msra.mxu0 0.0
    %3035 = vmatprep.subr.mxu0 0.0
    %3036 = vmatpush1.msra.mxu0 0.0
    %3037 = vmatprep.subr.mxu0 0.0
    %3038 = vmatpush1.msra.mxu0 0.0
    %3039 = vmatprep.subr.mxu0 0.0
    %3040 = vmatpush1.msra.mxu0 0.0
    %3041 = vmatprep.subr.mxu0 0.0
    %3042 = vmatpush1.msra.mxu0 0.0
    %3043 = vmatprep.subr.mxu0 0.0
    %3044 = vmatpush1.msra.mxu0 0.0
    %3045 = vmatprep.subr.mxu0 0.0
    %3046 = vmatpush1.msra.mxu0 0.0
    %3047 = vmatprep.subr.mxu0 0.0
    %3048 = vmatpush1.msra.mxu0 0.0
    %3049 = vmatprep.subr.mxu0 0.0
    %3050 = vmatpush1.msra.mxu0 0.0
    %3051 = vmatprep.subr.mxu0 0.0
    %3052 = vmatpush1.msra.mxu0 0.0
    %3053 = vmatprep.subr.mxu0 0.0
    %3054 = vmatpush1.msra.mxu0 0.0
    %3055 = vmatprep.subr.mxu0 0.0
    %3056 = vmatpush1.msra.mxu0 0.0
    %3057 = vmatprep.subr.mxu0 0.0
    %3058 = vmatpush1.msra.mxu0 0.0
    %3059 = vmatprep.subr.mxu0 0.0
    %3060 = vmatpush1.msra.mxu0 0.0
    %3061 = vmatprep.subr.mxu0 0.0
    %3062 = vmatpush1.msra.mxu0 0.0
    %3063 = vmatprep.subr.mxu0 0.0
    %3064 = vmatpush1.msra.mxu0 0.0
    %3065 = vmatprep.subr.mxu0 0.0
    %3066 = vmatpush1.msra.mxu0 0.0
    %3067 = vmatprep.subr.mxu0 0.0
    %3068 = vmatpush1.msra.mxu0 0.0
    %3069 = vmatprep.subr.mxu0 0.0
    %3070 = vmatpush1.msra.mxu0 0.0
    %3071 = vmatprep.subr.mxu0 0.0
    %3072 = vmatpush1.msra.mxu0 0.0
    %3073 = vmatprep.subr.mxu0 0.0
    %3074 = vmatpush1.msra.mxu0 0.0
    %3075 = vmatprep.subr.mxu0 0.0
    %3076 = vmatpush1.msra.mxu0 0.0
    %3077 = vmatprep.subr.mxu0 0.0
    %3078 = vmatpush1.msra.mxu0 0.0
    %3079 = vmatprep.subr.mxu0 0.0
    %3080 = vmatpush1.msra.mxu0 0.0
    %3081 = vmatprep.subr.mxu0 0.0
    %3082 = vmatpush1.msra.mxu0 0.0
    %3083 = vmatprep.mubr.f32.mxu0 0.0
    %3084 = vmatmul.mubr.f32.gmra.mrb[0].mxu0 %v2972
    %v3085 = vpop.f32.mrb[0].mxu0
    %v3086 = vadd.f32 %v2969, %v3085
    %v3087 = vpop.f32.mrb[0].mxu0
    %3088 = vmatprep.mubr.f32.mxu0 0.0
    %3089 = vmatmul.mubr.f32.gmra.mrb[0].mxu0 %v2975
    %v3090 = vpop.f32.mrb[0].mxu0
    %v3091 = vadd.f32 %v2969, %v3090
    %v3092 = vpop.f32.mrb[0].mxu0
    %3093 = vmatprep.mubr.f32.mxu0 0.0
    %3094 = vmatmul.mubr.f32.gmra.mrb[0].mxu0 %v2978
    %v3095 = vpop.f32.mrb[0].mxu0
    %v3096 = vadd.f32 %v2969, %v3095
    %v3097 = vpop.f32.mrb[0].mxu0
    %3098 = vmatprep.mubr.f32.mxu0 0.0
    %3099 = vmatmul.mubr.f32.gmra.mrb[0].mxu0 %v2981
    %v3100 = vpop.f32.mrb[0].mxu0
    %v3101 = vadd.f32 %v2969, %v3100
    %v3102 = vpop.f32.mrb[0].mxu0
    %3103 = vmatprep.mubr.f32.mxu0 0.0
    %3104 = vmatmul.mubr.f32.gmra.mrb[0].mxu0 %v2984
    %v3105 = vpop.f32.mrb[0].mxu0
    %v3106 = vadd.f32 %v2969, %v3105
    %v3107 = vpop.f32.mrb[0].mxu0
    %3108 = vmatprep.mubr.f32.mxu0 0.0
    %3109 = vmatmul.mubr.f32.gmra.mrb[0].mxu0 %v2987
    %v3110 = vpop.f32.mrb[0].mxu0
    %v3111 = vadd.f32 %v2969, %v3110
    %v3112 = vpop.f32.mrb[0].mxu0
    %3113 = vmatprep.mubr.f32.mxu0 0.0
    %3114 = vmatmul.mubr.f32.gmra.mrb[0].mxu0 %v2990
    %v3115 = vpop.f32.mrb[0].mxu0
    %v3116 = vadd.f32 %v2969, %v3115
    %v3117 = vpop.f32.mrb[0].mxu0
    %3118 = vmatprep.mubr.f32.mxu0 0.0
    %3119 = vmatmul.mubr.f32.gmra.mrb[0].mxu0 %v2993
    %v3120 = vpop.f32.mrb[0].mxu0
    %v3121 = vadd.f32 %v2969, %v3120
    %v3122 = vpop.f32.mrb[0].mxu0
    %3123 = vmatprep.mubr.f32.mxu0 0.0
    %3124 = vmatmul.mubr.f32.gmra.mrb[0].mxu0 %v2996
    %v3125 = vpop.f32.mrb[0].mxu0
    %v3126 = vadd.f32 %v2969, %v3125
    %v3127 = vpop.f32.mrb[0].mxu0
    %3128 = vmatprep.mubr.f32.mxu0 0.0
    %3129 = vmatmul.mubr.f32.gmra.mrb[0].mxu0 %v2999
    %v3130 = vpop.f32.mrb[0].mxu0
    %v3131 = vadd.f32 %v2969, %v3130
    %v3132 = vpop.f32.mrb[0].mxu0
    %3133 = vmatprep.mubr.f32.mxu0 0.0
    %3134 = vmatmul.mubr.f32.gmra.mrb[0].mxu0 %v3002
    %v3135 = vpop.f32.mrb[0].mxu0
    %v3136 = vadd.f32 %v2969, %v3135
    %v3137 = vpop.f32.mrb[0].mxu0
    %3138 = vmatprep.mubr.f32.mxu0 0.0
    %3139 = vmatmul.mubr.f32.gmra.mrb[0].mxu0 %v3005
    %v3140 = vpop.f32.mrb[0].mxu0
    %v3141 = vadd.f32 %v2969, %v3140
    %v3142 = vpop.f32.mrb[0].mxu0
    %3143 = vmatprep.mubr.f32.mxu0 0.0
    %3144 = vmatmul.mubr.f32.gmra.mrb[0].mxu0 %v3008
    %v3145 = vpop.f32.mrb[0].mxu0
    %v3146 = vadd.f32 %v2969, %v3145
    %v3147 = vpop.f32.mrb[0].mxu0
    %3148 = vmatprep.mubr.f32.mxu0 0.0
    %3149 = vmatmul.mubr.f32.gmra.mrb[0].mxu0 %v3011
    %v3150 = vpop.f32.mrb[0].mxu0
    %v3151 = vadd.f32 %v2969, %v3150
    %v3152 = vpop.f32.mrb[0].mxu0
    %3153 = vmatprep.mubr.f32.mxu0 0.0
    %3154 = vmatmul.mubr.f32.gmra.mrb[0].mxu0 %v3014
    %v3155 = vpop.f32.mrb[0].mxu0
    %v3156 = vadd.f32 %v2969, %v3155
    %v3157 = vpop.f32.mrb[0].mxu0
    %3158 = vmatprep.mubr.f32.mxu0 0.0
    %3159 = vmatmul.mubr.f32.gmra.mrb[0].mxu0 %v3017
    %v3160 = vpop.f32.mrb[0].mxu0
    %v3161 = vadd.f32 %v2969, %v3160
    %v3162 = vpop.f32.mrb[0].mxu0
    %3163 = vdwg.mxu0
    %vm3164 = vcmp.gt.f32.partialorder %v3086, 0.0
    %vm3165 = vcmp.gt.f32.partialorder %v3091, 0.0
    %vm3166 = vcmp.gt.f32.partialorder %v3096, 0.0
    %vm3167 = vcmp.gt.f32.partialorder %v3101, 0.0
    %vm3168 = vcmp.gt.f32.partialorder %v3106, 0.0
    %vm3169 = vcmp.gt.f32.partialorder %v3111, 0.0
    %vm3170 = vcmp.gt.f32.partialorder %v3116, 0.0
    %vm3171 = vcmp.gt.f32.partialorder %v3121, 0.0
    %vm3172 = vcmp.gt.f32.partialorder %v3126, 0.0
    %vm3173 = vcmp.gt.f32.partialorder %v3131, 0.0
    %vm3174 = vcmp.gt.f32.partialorder %v3136, 0.0
    %vm3175 = vcmp.gt.f32.partialorder %v3141, 0.0
    %vm3176 = vcmp.gt.f32.partialorder %v3146, 0.0
    %vm3177 = vcmp.gt.f32.partialorder %v3151, 0.0
    %vm3178 = vcmp.gt.f32.partialorder %v3156, 0.0
    %vm3179 = vcmp.gt.f32.partialorder %v3161, 0.0
    %v3180 = vmul.f32 %v3086, 1.442695
    %v3181 = vpow.pop %v3180
    %v3182 = vmul.f32 %v3091, 1.442695
    %v3183 = vpow.pop %v3182
    %v3184 = vmul.f32 %v3096, 1.442695
    %v3185 = vpow.pop %v3184
    %v3186 = vmul.f32 %v3101, 1.442695
    %v3187 = vpow.pop %v3186
    %v3188 = vmul.f32 %v3106, 1.442695
    %v3189 = vpow.pop %v3188
    %v3190 = vmul.f32 %v3111, 1.442695
    %v3191 = vpow.pop %v3190
    %v3192 = vmul.f32 %v3116, 1.442695
    %v3193 = vpow.pop %v3192
    %v3194 = vmul.f32 %v3121, 1.442695
    %v3195 = vpow.pop %v3194
    %v3196 = vmul.f32 %v3126, 1.442695
    %v3197 = vpow.pop %v3196
    %v3198 = vmul.f32 %v3131, 1.442695
    %v3199 = vpow.pop %v3198
    %v3200 = vmul.f32 %v3136, 1.442695
    %v3201 = vpow.pop %v3200
    %v3202 = vmul.f32 %v3141, 1.442695
    %v3203 = vpow.pop %v3202
    %v3204 = vmul.f32 %v3146, 1.442695
    %v3205 = vpow.pop %v3204
    %v3206 = vmul.f32 %v3151, 1.442695
    %v3207 = vpow.pop %v3206
    %v3208 = vmul.f32 %v3156, 1.442695
    %v3209 = vpow.pop %v3208
    %v3210 = vmul.f32 %v3161, 1.442695
    %v3211 = vpow.pop %v3210
    %v3212 = vsub.f32 %v3181, 1.0
    %v3213 = vsub.f32 %v3183, 1.0
    %v3214 = vsub.f32 %v3185, 1.0
    %v3215 = vsub.f32 %v3187, 1.0
    %v3216 = vsub.f32 %v3189, 1.0
    %v3217 = vsub.f32 %v3191, 1.0
    %v3218 = vsub.f32 %v3193, 1.0
    %v3219 = vsub.f32 %v3195, 1.0
    %v3220 = vsub.f32 %v3197, 1.0
    %v3221 = vsub.f32 %v3199, 1.0
    %v3222 = vsub.f32 %v3201, 1.0
    %v3223 = vsub.f32 %v3203, 1.0
    %v3224 = vsub.f32 %v3205, 1.0
    %v3225 = vsub.f32 %v3207, 1.0
    %v3226 = vsub.f32 %v3209, 1.0
    %v3227 = vsub.f32 %v3211, 1.0
    %v3228 = vmul.f32 %v3212, 1.6732632
    %v3229 = vmul.f32 %v3213, 1.6732632
    %v3230 = vmul.f32 %v3214, 1.6732632
    %v3231 = vmul.f32 %v3215, 1.6732632
    %v3232 = vmul.f32 %v3216, 1.6732632
    %v3233 = vmul.f32 %v3217, 1.6732632
    %v3234 = vmul.f32 %v3218, 1.6732632
    %v3235 = vmul.f32 %v3219, 1.6732632
    %v3236 = vmul.f32 %v3220, 1.6732632
    %v3237 = vmul.f32 %v3221, 1.6732632
    %v3238 = vmul.f32 %v3222, 1.6732632
    %v3239 = vmul.f32 %v3223, 1.6732632
    %v3240 = vmul.f32 %v3224, 1.6732632
    %v3241 = vmul.f32 %v3225, 1.6732632
    %v3242 = vmul.f32 %v3226, 1.6732632
    %v3243 = vmul.f32 %v3227, 1.6732632
    %v3244 = vsel %vm3164, %v3086, %v3228
    %v3245 = vsel %vm3165, %v3091, %v3229
    %v3246 = vsel %vm3166, %v3096, %v3230
    %v3247 = vsel %vm3167, %v3101, %v3231
    %v3248 = vsel %vm3168, %v3106, %v3232
    %v3249 = vsel %vm3169, %v3111, %v3233
    %v3250 = vsel %vm3170, %v3116, %v3234
    %v3251 = vsel %vm3171, %v3121, %v3235
    %v3252 = vsel %vm3172, %v3126, %v3236
    %v3253 = vsel %vm3173, %v3131, %v3237
    %v3254 = vsel %vm3174, %v3136, %v3238
    %v3255 = vsel %vm3175, %v3141, %v3239
    %v3256 = vsel %vm3176, %v3146, %v3240
    %v3257 = vsel %vm3177, %v3151, %v3241
    %v3258 = vsel %vm3178, %v3156, %v3242
    %v3259 = vsel %vm3179, %v3161, %v3243
    %v3260 = vmul.f32 %v3244, 1.050701
    %v3261 = vmul.f32 %v3245, 1.050701
    %v3262 = vmul.f32 %v3246, 1.050701
    %v3263 = vmul.f32 %v3247, 1.050701
    %v3264 = vmul.f32 %v3248, 1.050701
    %v3265 = vmul.f32 %v3249, 1.050701
    %v3266 = vmul.f32 %v3250, 1.050701
    %v3267 = vmul.f32 %v3251, 1.050701
    %v3268 = vmul.f32 %v3252, 1.050701
    %v3269 = vmul.f32 %v3253, 1.050701
    %v3270 = vmul.f32 %v3254, 1.050701
    %v3271 = vmul.f32 %v3255, 1.050701
    %v3272 = vmul.f32 %v3256, 1.050701
    %v3273 = vmul.f32 %v3257, 1.050701
    %v3274 = vmul.f32 %v3258, 1.050701
    %v3275 = vmul.f32 %v3259, 1.050701
    %v3276 = vld [vmem:[%s8] sm:$0xff]
    %v3277 = vld [vmem:[%s8 + $0x8] sm:$0xff]
    %v3278 = vld [vmem:[%s8 + $0x10] sm:$0xff]
    %v3279 = vld [vmem:[%s8 + $0x18] sm:$0xff]
    %v3280 = vld [vmem:[%s8 + $0x20] sm:$0xff]
    %v3281 = vld [vmem:[%s8 + $0x28] sm:$0xff]
    %v3282 = vld [vmem:[%s8 + $0x30] sm:$0xff]
    %v3283 = vld [vmem:[%s8 + $0x38] sm:$0xff]
    %v3284 = vld [vmem:[%s9] sm:$0x1]
    %v3286 = vlaneseq
    %v3287 = vshrl.u32 %v3286, 7
    %v3288 = vsub.s32 0, %v3287
    %v3289 = vrot.slane %v3284, %v3288
    %vm3291 = vcmask 523264
    %v3293 = vsel %vm3291, %v3260, 0
    %v3296 = vsel %vm3291, %v3261, 0
    %v3299 = vsel %vm3291, %v3262, 0
    %v3302 = vsel %vm3291, %v3263, 0
    %v3305 = vsel %vm3291, %v3264, 0
    %v3308 = vsel %vm3291, %v3265, 0
    %v3311 = vsel %vm3291, %v3266, 0
    %v3314 = vsel %vm3291, %v3267, 0
    %v3317 = vsel %vm3291, %v3268, 0
    %v3320 = vsel %vm3291, %v3269, 0
    %v3323 = vsel %vm3291, %v3270, 0
    %v3326 = vsel %vm3291, %v3271, 0
    %v3329 = vsel %vm3291, %v3272, 0
    %v3332 = vsel %vm3291, %v3273, 0
    %v3335 = vsel %vm3291, %v3274, 0
    %v3338 = vsel %vm3291, %v3275, 0
    %3340 = vmatprep.subr.mxu0 0.0
    %3341 = vmatpush1.msra.mxu0 %v3276
    %3342 = vmatprep.subr.mxu0 0.0
    %3343 = vmatpush1.msra.mxu0 %v3277
    %3344 = vmatprep.subr.mxu0 0.0
    %3345 = vmatpush1.msra.mxu0 %v3278
    %3346 = vmatprep.subr.mxu0 0.0
    %3347 = vmatpush1.msra.mxu0 %v3279
    %3348 = vmatprep.subr.mxu0 0.0
    %3349 = vmatpush1.msra.mxu0 %v3280
    %3350 = vmatprep.subr.mxu0 0.0
    %3351 = vmatpush1.msra.mxu0 %v3281
    %3352 = vmatprep.subr.mxu0 0.0
    %3353 = vmatpush1.msra.mxu0 %v3282
    %3354 = vmatprep.subr.mxu0 0.0
    %3355 = vmatpush1.msra.mxu0 %v3283
    %3356 = vmatprep.subr.mxu0 0.0
    %3357 = vmatpush1.msra.mxu0 0.0
    %3358 = vmatprep.subr.mxu0 0.0
    %3359 = vmatpush1.msra.mxu0 0.0
    %3360 = vmatprep.subr.mxu0 0.0
    %3361 = vmatpush1.msra.mxu0 0.0
    %3362 = vmatprep.subr.mxu0 0.0
    %3363 = vmatpush1.msra.mxu0 0.0
    %3364 = vmatprep.subr.mxu0 0.0
    %3365 = vmatpush1.msra.mxu0 0.0
    %3366 = vmatprep.subr.mxu0 0.0
    %3367 = vmatpush1.msra.mxu0 0.0
    %3368 = vmatprep.subr.mxu0 0.0
    %3369 = vmatpush1.msra.mxu0 0.0
    %3370 = vmatprep.subr.mxu0 0.0
    %3371 = vmatpush1.msra.mxu0 0.0
    %3372 = vmatprep.subr.mxu0 0.0
    %3373 = vmatpush1.msra.mxu0 0.0
    %3374 = vmatprep.subr.mxu0 0.0
    %3375 = vmatpush1.msra.mxu0 0.0
    %3376 = vmatprep.subr.mxu0 0.0
    %3377 = vmatpush1.msra.mxu0 0.0
    %3378 = vmatprep.subr.mxu0 0.0
    %3379 = vmatpush1.msra.mxu0 0.0
    %3380 = vmatprep.subr.mxu0 0.0
    %3381 = vmatpush1.msra.mxu0 0.0
    %3382 = vmatprep.subr.mxu0 0.0
    %3383 = vmatpush1.msra.mxu0 0.0
    %3384 = vmatprep.subr.mxu0 0.0
    %3385 = vmatpush1.msra.mxu0 0.0
    %3386 = vmatprep.subr.mxu0 0.0
    %3387 = vmatpush1.msra.mxu0 0.0
    %3388 = vmatprep.subr.mxu0 0.0
    %3389 = vmatpush1.msra.mxu0 0.0
    %3390 = vmatprep.subr.mxu0 0.0
    %3391 = vmatpush1.msra.mxu0 0.0
    %3392 = vmatprep.subr.mxu0 0.0
    %3393 = vmatpush1.msra.mxu0 0.0
    %3394 = vmatprep.subr.mxu0 0.0
    %3395 = vmatpush1.msra.mxu0 0.0
    %3396 = vmatprep.subr.mxu0 0.0
    %3397 = vmatpush1.msra.mxu0 0.0
    %3398 = vmatprep.subr.mxu0 0.0
    %3399 = vmatpush1.msra.mxu0 0.0
    %3400 = vmatprep.subr.mxu0 0.0
    %3401 = vmatpush1.msra.mxu0 0.0
    %3402 = vmatprep.subr.mxu0 0.0
    %3403 = vmatpush1.msra.mxu0 0.0
    %3404 = vmatprep.mubr.f32.mxu0 0.0
    %3405 = vmatmul.mubr.f32.gmra.mrb[0].mxu0 %v3293
    %v3406 = vpop.f32.mrb[0].mxu0
    %v3407 = vadd.f32 %v3289, %v3406
    %v3408 = vpop.f32.mrb[0].mxu0
    %3409 = vmatprep.mubr.f32.mxu0 0.0
    %3410 = vmatmul.mubr.f32.gmra.mrb[0].mxu0 %v3296
    %v3411 = vpop.f32.mrb[0].mxu0
    %v3412 = vadd.f32 %v3289, %v3411
    %v3413 = vpop.f32.mrb[0].mxu0
    %3414 = vmatprep.mubr.f32.mxu0 0.0
    %3415 = vmatmul.mubr.f32.gmra.mrb[0].mxu0 %v3299
    %v3416 = vpop.f32.mrb[0].mxu0
    %v3417 = vadd.f32 %v3289, %v3416
    %v3418 = vpop.f32.mrb[0].mxu0
    %3419 = vmatprep.mubr.f32.mxu0 0.0
    %3420 = vmatmul.mubr.f32.gmra.mrb[0].mxu0 %v3302
    %v3421 = vpop.f32.mrb[0].mxu0
    %v3422 = vadd.f32 %v3289, %v3421
    %v3423 = vpop.f32.mrb[0].mxu0
    %3424 = vmatprep.mubr.f32.mxu0 0.0
    %3425 = vmatmul.mubr.f32.gmra.mrb[0].mxu0 %v3305
    %v3426 = vpop.f32.mrb[0].mxu0
    %v3427 = vadd.f32 %v3289, %v3426
    %v3428 = vpop.f32.mrb[0].mxu0
    %3429 = vmatprep.mubr.f32.mxu0 0.0
    %3430 = vmatmul.mubr.f32.gmra.mrb[0].mxu0 %v3308
    %v3431 = vpop.f32.mrb[0].mxu0
    %v3432 = vadd.f32 %v3289, %v3431
    %v3433 = vpop.f32.mrb[0].mxu0
    %3434 = vmatprep.mubr.f32.mxu0 0.0
    %3435 = vmatmul.mubr.f32.gmra.mrb[0].mxu0 %v3311
    %v3436 = vpop.f32.mrb[0].mxu0
    %v3437 = vadd.f32 %v3289, %v3436
    %v3438 = vpop.f32.mrb[0].mxu0
    %3439 = vmatprep.mubr.f32.mxu0 0.0
    %3440 = vmatmul.mubr.f32.gmra.mrb[0].mxu0 %v3314
    %v3441 = vpop.f32.mrb[0].mxu0
    %v3442 = vadd.f32 %v3289, %v3441
    %v3443 = vpop.f32.mrb[0].mxu0
    %3444 = vmatprep.mubr.f32.mxu0 0.0
    %3445 = vmatmul.mubr.f32.gmra.mrb[0].mxu0 %v3317
    %v3446 = vpop.f32.mrb[0].mxu0
    %v3447 = vadd.f32 %v3289, %v3446
    %v3448 = vpop.f32.mrb[0].mxu0
    %3449 = vmatprep.mubr.f32.mxu0 0.0
    %3450 = vmatmul.mubr.f32.gmra.mrb[0].mxu0 %v3320
    %v3451 = vpop.f32.mrb[0].mxu0
    %v3452 = vadd.f32 %v3289, %v3451
    %v3453 = vpop.f32.mrb[0].mxu0
    %3454 = vmatprep.mubr.f32.mxu0 0.0
    %3455 = vmatmul.mubr.f32.gmra.mrb[0].mxu0 %v3323
    %v3456 = vpop.f32.mrb[0].mxu0
    %v3457 = vadd.f32 %v3289, %v3456
    %v3458 = vpop.f32.mrb[0].mxu0
    %3459 = vmatprep.mubr.f32.mxu0 0.0
    %3460 = vmatmul.mubr.f32.gmra.mrb[0].mxu0 %v3326
    %v3461 = vpop.f32.mrb[0].mxu0
    %v3462 = vadd.f32 %v3289, %v3461
    %v3463 = vpop.f32.mrb[0].mxu0
    %3464 = vmatprep.mubr.f32.mxu0 0.0
    %3465 = vmatmul.mubr.f32.gmra.mrb[0].mxu0 %v3329
    %v3466 = vpop.f32.mrb[0].mxu0
    %v3467 = vadd.f32 %v3289, %v3466
    %v3468 = vpop.f32.mrb[0].mxu0
    %3469 = vmatprep.mubr.f32.mxu0 0.0
    %3470 = vmatmul.mubr.f32.gmra.mrb[0].mxu0 %v3332
    %v3471 = vpop.f32.mrb[0].mxu0
    %v3472 = vadd.f32 %v3289, %v3471
    %v3473 = vpop.f32.mrb[0].mxu0
    %3474 = vmatprep.mubr.f32.mxu0 0.0
    %3475 = vmatmul.mubr.f32.gmra.mrb[0].mxu0 %v3335
    %v3476 = vpop.f32.mrb[0].mxu0
    %v3477 = vadd.f32 %v3289, %v3476
    %v3478 = vpop.f32.mrb[0].mxu0
    %3479 = vmatprep.mubr.f32.mxu0 0.0
    %3480 = vmatmul.mubr.f32.gmra.mrb[0].mxu0 %v3338
    %v3481 = vpop.f32.mrb[0].mxu0
    %v3482 = vadd.f32 %v3289, %v3481
    %v3483 = vpop.f32.mrb[0].mxu0
    %3484 = vdwg.mxu0
    %v3485 = vld [vmem:[%s10] sm:$0x1]
    %v3486 = vld [vmem:[%s11] sm:$0x1]
    %v3487 = vsel %vm82, %v3407, 0.0
    %3488 = vadd.xlane.f32.xlu0 %v3487
    %v3489 = vpop.xlane.xlu0 %3488
    %v3490 = vsel %vm82, %v3412, 0.0
    %3491 = vadd.xlane.f32.xlu0 %v3490
    %v3492 = vpop.xlane.xlu0 %3491
    %v3493 = vsel %vm82, %v3417, 0.0
    %3494 = vadd.xlane.f32.xlu0 %v3493
    %v3495 = vpop.xlane.xlu0 %3494
    %v3496 = vsel %vm82, %v3422, 0.0
    %3497 = vadd.xlane.f32.xlu0 %v3496
    %v3498 = vpop.xlane.xlu0 %3497
    %v3499 = vsel %vm82, %v3427, 0.0
    %3500 = vadd.xlane.f32.xlu0 %v3499
    %v3501 = vpop.xlane.xlu0 %3500
    %v3502 = vsel %vm82, %v3432, 0.0
    %3503 = vadd.xlane.f32.xlu0 %v3502
    %v3504 = vpop.xlane.xlu0 %3503
    %v3505 = vsel %vm82, %v3437, 0.0
    %3506 = vadd.xlane.f32.xlu0 %v3505
    %v3507 = vpop.xlane.xlu0 %3506
    %v3508 = vsel %vm82, %v3442, 0.0
    %3509 = vadd.xlane.f32.xlu0 %v3508
    %v3510 = vpop.xlane.xlu0 %3509
    %v3511 = vsel %vm82, %v3447, 0.0
    %3512 = vadd.xlane.f32.xlu0 %v3511
    %v3513 = vpop.xlane.xlu0 %3512
    %v3514 = vsel %vm82, %v3452, 0.0
    %3515 = vadd.xlane.f32.xlu0 %v3514
    %v3516 = vpop.xlane.xlu0 %3515
    %v3517 = vsel %vm82, %v3457, 0.0
    %3518 = vadd.xlane.f32.xlu0 %v3517
    %v3519 = vpop.xlane.xlu0 %3518
    %v3520 = vsel %vm82, %v3462, 0.0
    %3521 = vadd.xlane.f32.xlu0 %v3520
    %v3522 = vpop.xlane.xlu0 %3521
    %v3523 = vsel %vm82, %v3467, 0.0
    %3524 = vadd.xlane.f32.xlu0 %v3523
    %v3525 = vpop.xlane.xlu0 %3524
    %v3526 = vsel %vm82, %v3472, 0.0
    %3527 = vadd.xlane.f32.xlu0 %v3526
    %v3528 = vpop.xlane.xlu0 %3527
    %v3529 = vsel %vm82, %v3477, 0.0
    %3530 = vadd.xlane.f32.xlu0 %v3529
    %v3531 = vpop.xlane.xlu0 %3530
    %v3532 = vsel %vm82, %v3482, 0.0
    %3533 = vadd.xlane.f32.xlu0 %v3532
    %v3534 = vpop.xlane.xlu0 %3533
    %v3535 = vmul.f32 %v3489, %v2741
    %v3536 = vmul.f32 %v3492, %v2741
    %v3537 = vmul.f32 %v3495, %v2741
    %v3538 = vmul.f32 %v3498, %v2741
    %v3539 = vmul.f32 %v3501, %v2741
    %v3540 = vmul.f32 %v3504, %v2741
    %v3541 = vmul.f32 %v3507, %v2741
    %v3542 = vmul.f32 %v3510, %v2741
    %v3543 = vmul.f32 %v3513, %v2741
    %v3544 = vmul.f32 %v3516, %v2741
    %v3545 = vmul.f32 %v3519, %v2741
    %v3546 = vmul.f32 %v3522, %v2741
    %v3547 = vmul.f32 %v3525, %v2741
    %v3548 = vmul.f32 %v3528, %v2741
    %v3549 = vmul.f32 %v3531, %v2741
    %v3550 = vmul.f32 %v3534, %v2741
    %v3551 = vsub.f32 %v3407, %v3535
    %v3552 = vsub.f32 %v3412, %v3536
    %v3553 = vsub.f32 %v3417, %v3537
    %v3554 = vsub.f32 %v3422, %v3538
    %v3555 = vsub.f32 %v3427, %v3539
    %v3556 = vsub.f32 %v3432, %v3540
    %v3557 = vsub.f32 %v3437, %v3541
    %v3558 = vsub.f32 %v3442, %v3542
    %v3559 = vsub.f32 %v3447, %v3543
    %v3560 = vsub.f32 %v3452, %v3544
    %v3561 = vsub.f32 %v3457, %v3545
    %v3562 = vsub.f32 %v3462, %v3546
    %v3563 = vsub.f32 %v3467, %v3547
    %v3564 = vsub.f32 %v3472, %v3548
    %v3565 = vsub.f32 %v3477, %v3549
    %v3566 = vsub.f32 %v3482, %v3550
    %v3567 = vmul.f32 %v3551, %v3551
    %v3568 = vmul.f32 %v3552, %v3552
    %v3569 = vmul.f32 %v3553, %v3553
    %v3570 = vmul.f32 %v3554, %v3554
    %v3571 = vmul.f32 %v3555, %v3555
    %v3572 = vmul.f32 %v3556, %v3556
    %v3573 = vmul.f32 %v3557, %v3557
    %v3574 = vmul.f32 %v3558, %v3558
    %v3575 = vmul.f32 %v3559, %v3559
    %v3576 = vmul.f32 %v3560, %v3560
    %v3577 = vmul.f32 %v3561, %v3561
    %v3578 = vmul.f32 %v3562, %v3562
    %v3579 = vmul.f32 %v3563, %v3563
    %v3580 = vmul.f32 %v3564, %v3564
    %v3581 = vmul.f32 %v3565, %v3565
    %v3582 = vmul.f32 %v3566, %v3566
    %v3583 = vsel %vm82, %v3567, 0.0
    %3584 = vadd.xlane.f32.xlu0 %v3583
    %v3585 = vpop.xlane.xlu0 %3584
    %v3586 = vsel %vm82, %v3568, 0.0
    %3587 = vadd.xlane.f32.xlu0 %v3586
    %v3588 = vpop.xlane.xlu0 %3587
    %v3589 = vsel %vm82, %v3569, 0.0
    %3590 = vadd.xlane.f32.xlu0 %v3589
    %v3591 = vpop.xlane.xlu0 %3590
    %v3592 = vsel %vm82, %v3570, 0.0
    %3593 = vadd.xlane.f32.xlu0 %v3592
    %v3594 = vpop.xlane.xlu0 %3593
    %v3595 = vsel %vm82, %v3571, 0.0
    %3596 = vadd.xlane.f32.xlu0 %v3595
    %v3597 = vpop.xlane.xlu0 %3596
    %v3598 = vsel %vm82, %v3572, 0.0
    %3599 = vadd.xlane.f32.xlu0 %v3598
    %v3600 = vpop.xlane.xlu0 %3599
    %v3601 = vsel %vm82, %v3573, 0.0
    %3602 = vadd.xlane.f32.xlu0 %v3601
    %v3603 = vpop.xlane.xlu0 %3602
    %v3604 = vsel %vm82, %v3574, 0.0
    %3605 = vadd.xlane.f32.xlu0 %v3604
    %v3606 = vpop.xlane.xlu0 %3605
    %v3607 = vsel %vm82, %v3575, 0.0
    %3608 = vadd.xlane.f32.xlu0 %v3607
    %v3609 = vpop.xlane.xlu0 %3608
    %v3610 = vsel %vm82, %v3576, 0.0
    %3611 = vadd.xlane.f32.xlu0 %v3610
    %v3612 = vpop.xlane.xlu0 %3611
    %v3613 = vsel %vm82, %v3577, 0.0
    %3614 = vadd.xlane.f32.xlu0 %v3613
    %v3615 = vpop.xlane.xlu0 %3614
    %v3616 = vsel %vm82, %v3578, 0.0
    %3617 = vadd.xlane.f32.xlu0 %v3616
    %v3618 = vpop.xlane.xlu0 %3617
    %v3619 = vsel %vm82, %v3579, 0.0
    %3620 = vadd.xlane.f32.xlu0 %v3619
    %v3621 = vpop.xlane.xlu0 %3620
    %v3622 = vsel %vm82, %v3580, 0.0
    %3623 = vadd.xlane.f32.xlu0 %v3622
    %v3624 = vpop.xlane.xlu0 %3623
    %v3625 = vsel %vm82, %v3581, 0.0
    %3626 = vadd.xlane.f32.xlu0 %v3625
    %v3627 = vpop.xlane.xlu0 %3626
    %v3628 = vsel %vm82, %v3582, 0.0
    %3629 = vadd.xlane.f32.xlu0 %v3628
    %v3630 = vpop.xlane.xlu0 %3629
    %v3631 = vmul.f32 %v3585, %v2741
    %v3632 = vmul.f32 %v3588, %v2741
    %v3633 = vmul.f32 %v3591, %v2741
    %v3634 = vmul.f32 %v3594, %v2741
    %v3635 = vmul.f32 %v3597, %v2741
    %v3636 = vmul.f32 %v3600, %v2741
    %v3637 = vmul.f32 %v3603, %v2741
    %v3638 = vmul.f32 %v3606, %v2741
    %v3639 = vmul.f32 %v3609, %v2741
    %v3640 = vmul.f32 %v3612, %v2741
    %v3641 = vmul.f32 %v3615, %v2741
    %v3642 = vmul.f32 %v3618, %v2741
    %v3643 = vmul.f32 %v3621, %v2741
    %v3644 = vmul.f32 %v3624, %v2741
    %v3645 = vmul.f32 %v3627, %v2741
    %v3646 = vmul.f32 %v3630, %v2741
    %v3647 = vadd.f32 %v3631, 1e-05
    %v3648 = vadd.f32 %v3632, 1e-05
    %v3649 = vadd.f32 %v3633, 1e-05
    %v3650 = vadd.f32 %v3634, 1e-05
    %v3651 = vadd.f32 %v3635, 1e-05
    %v3652 = vadd.f32 %v3636, 1e-05
    %v3653 = vadd.f32 %v3637, 1e-05
    %v3654 = vadd.f32 %v3638, 1e-05
    %v3655 = vadd.f32 %v3639, 1e-05
    %v3656 = vadd.f32 %v3640, 1e-05
    %v3657 = vadd.f32 %v3641, 1e-05
    %v3658 = vadd.f32 %v3642, 1e-05
    %v3659 = vadd.f32 %v3643, 1e-05
    %v3660 = vadd.f32 %v3644, 1e-05
    %v3661 = vadd.f32 %v3645, 1e-05
    %v3662 = vadd.f32 %v3646, 1e-05
    %v3663 = vrsqrt.pop %v3647
    %v3664 = vrsqrt.pop %v3648
    %v3665 = vrsqrt.pop %v3649
    %v3666 = vrsqrt.pop %v3650
    %v3667 = vrsqrt.pop %v3651
    %v3668 = vrsqrt.pop %v3652
    %v3669 = vrsqrt.pop %v3653
    %v3670 = vrsqrt.pop %v3654
    %v3671 = vrsqrt.pop %v3655
    %v3672 = vrsqrt.pop %v3656
    %v3673 = vrsqrt.pop %v3657
    %v3674 = vrsqrt.pop %v3658
    %v3675 = vrsqrt.pop %v3659
    %v3676 = vrsqrt.pop %v3660
    %v3677 = vrsqrt.pop %v3661
    %v3678 = vrsqrt.pop %v3662
    %v3679 = vmul.f32 %v3551, %v3663
    %v3680 = vmul.f32 %v3552, %v3664
    %v3681 = vmul.f32 %v3553, %v3665
    %v3682 = vmul.f32 %v3554, %v3666
    %v3683 = vmul.f32 %v3555, %v3667
    %v3684 = vmul.f32 %v3556, %v3668
    %v3685 = vmul.f32 %v3557, %v3669
    %v3686 = vmul.f32 %v3558, %v3670
    %v3687 = vmul.f32 %v3559, %v3671
    %v3688 = vmul.f32 %v3560, %v3672
    %v3689 = vmul.f32 %v3561, %v3673
    %v3690 = vmul.f32 %v3562, %v3674
    %v3691 = vmul.f32 %v3563, %v3675
    %v3692 = vmul.f32 %v3564, %v3676
    %v3693 = vmul.f32 %v3565, %v3677
    %v3694 = vmul.f32 %v3566, %v3678
    %v3696 = vlaneseq
    %v3697 = vshrl.u32 %v3696, 7
    %v3698 = vsub.s32 0, %v3697
    %v3699 = vrot.slane %v3485, %v3698
    %v3701 = vmul.f32 %v3679, %v3699
    %v3702 = vmul.f32 %v3680, %v3699
    %v3703 = vmul.f32 %v3681, %v3699
    %v3704 = vmul.f32 %v3682, %v3699
    %v3705 = vmul.f32 %v3683, %v3699
    %v3706 = vmul.f32 %v3684, %v3699
    %v3707 = vmul.f32 %v3685, %v3699
    %v3708 = vmul.f32 %v3686, %v3699
    %v3709 = vmul.f32 %v3687, %v3699
    %v3710 = vmul.f32 %v3688, %v3699
    %v3711 = vmul.f32 %v3689, %v3699
    %v3712 = vmul.f32 %v3690, %v3699
    %v3713 = vmul.f32 %v3691, %v3699
    %v3714 = vmul.f32 %v3692, %v3699
    %v3715 = vmul.f32 %v3693, %v3699
    %v3716 = vmul.f32 %v3694, %v3699
    %v3718 = vlaneseq
    %v3719 = vshrl.u32 %v3718, 7
    %v3720 = vsub.s32 0, %v3719
    %v3721 = vrot.slane %v3486, %v3720
    %v3723 = vadd.f32 %v3701, %v3721
    %v3724 = vadd.f32 %v3702, %v3721
    %v3725 = vadd.f32 %v3703, %v3721
    %v3726 = vadd.f32 %v3704, %v3721
    %v3727 = vadd.f32 %v3705, %v3721
    %v3728 = vadd.f32 %v3706, %v3721
    %v3729 = vadd.f32 %v3707, %v3721
    %v3730 = vadd.f32 %v3708, %v3721
    %v3731 = vadd.f32 %v3709, %v3721
    %v3732 = vadd.f32 %v3710, %v3721
    %v3733 = vadd.f32 %v3711, %v3721
    %v3734 = vadd.f32 %v3712, %v3721
    %v3735 = vadd.f32 %v3713, %v3721
    %v3736 = vadd.f32 %v3714, %v3721
    %v3737 = vadd.f32 %v3715, %v3721
    %v3738 = vadd.f32 %v3716, %v3721
    %v3739 = vadd.f32 %v2946, %v3723
    %v3740 = vadd.f32 %v2947, %v3724
    %v3741 = vadd.f32 %v2948, %v3725
    %v3742 = vadd.f32 %v2949, %v3726
    %v3743 = vadd.f32 %v2950, %v3727
    %v3744 = vadd.f32 %v2951, %v3728
    %v3745 = vadd.f32 %v2952, %v3729
    %v3746 = vadd.f32 %v2953, %v3730
    %v3747 = vadd.f32 %v2954, %v3731
    %v3748 = vadd.f32 %v2955, %v3732
    %v3749 = vadd.f32 %v2956, %v3733
    %v3750 = vadd.f32 %v2957, %v3734
    %v3751 = vadd.f32 %v2958, %v3735
    %v3752 = vadd.f32 %v2959, %v3736
    %v3753 = vadd.f32 %v2960, %v3737
    %v3754 = vadd.f32 %v2961, %v3738
    %v3755 = vld [vmem:[%s13] sm:$0x1]
    %v3756 = vld [vmem:[%s12] sm:$0xff]
    %v3757 = vld [vmem:[%s12 + $0x8] sm:$0xff]
    %v3758 = vld [vmem:[%s12 + $0x10] sm:$0xff]
    %v3759 = vld [vmem:[%s12 + $0x18] sm:$0xff]
    %v3760 = vld [vmem:[%s12 + $0x20] sm:$0xff]
    %v3761 = vld [vmem:[%s12 + $0x28] sm:$0xff]
    %v3762 = vld [vmem:[%s12 + $0x30] sm:$0xff]
    %v3763 = vld [vmem:[%s12 + $0x38] sm:$0xff]
    %v3764 = vld [vmem:[%s12 + $0x40] sm:$0xff]
    %v3765 = vld [vmem:[%s12 + $0x48] sm:$0xff]
    %v3766 = vld [vmem:[%s12 + $0x50] sm:$0xff]
    %v3767 = vld [vmem:[%s12 + $0x58] sm:$0xff]
    %v3768 = vld [vmem:[%s12 + $0x60] sm:$0xff]
    %v3769 = vld [vmem:[%s12 + $0x68] sm:$0xff]
    %v3770 = vld [vmem:[%s12 + $0x70] sm:$0xff]
    %v3771 = vld [vmem:[%s12 + $0x78] sm:$0xff]
    %v3772 = vmul.f32 %v3739, %v3756
    %v3773 = vmul.f32 %v3740, %v3757
    %v3774 = vmul.f32 %v3741, %v3758
    %v3775 = vmul.f32 %v3742, %v3759
    %v3776 = vmul.f32 %v3743, %v3760
    %v3777 = vmul.f32 %v3744, %v3761
    %v3778 = vmul.f32 %v3745, %v3762
    %v3779 = vmul.f32 %v3746, %v3763
    %v3780 = vmul.f32 %v3747, %v3764
    %v3781 = vmul.f32 %v3748, %v3765
    %v3782 = vmul.f32 %v3749, %v3766
    %v3783 = vmul.f32 %v3750, %v3767
    %v3784 = vmul.f32 %v3751, %v3768
    %v3785 = vmul.f32 %v3752, %v3769
    %v3786 = vmul.f32 %v3753, %v3770
    %v3787 = vmul.f32 %v3754, %v3771
    %v3788 = vsel %vm82, %v3772, 0.0
    %3789 = vadd.xlane.f32.xlu0 %v3788
    %v3790 = vpop.xlane.xlu0 %3789
    %v3791 = vsel %vm82, %v3773, 0.0
    %3792 = vadd.xlane.f32.xlu0 %v3791
    %v3793 = vpop.xlane.xlu0 %3792
    %v3794 = vsel %vm82, %v3774, 0.0
    %3795 = vadd.xlane.f32.xlu0 %v3794
    %v3796 = vpop.xlane.xlu0 %3795
    %v3797 = vsel %vm82, %v3775, 0.0
    %3798 = vadd.xlane.f32.xlu0 %v3797
    %v3799 = vpop.xlane.xlu0 %3798
    %v3800 = vsel %vm82, %v3776, 0.0
    %3801 = vadd.xlane.f32.xlu0 %v3800
    %v3802 = vpop.xlane.xlu0 %3801
    %v3803 = vsel %vm82, %v3777, 0.0
    %3804 = vadd.xlane.f32.xlu0 %v3803
    %v3805 = vpop.xlane.xlu0 %3804
    %v3806 = vsel %vm82, %v3778, 0.0
    %3807 = vadd.xlane.f32.xlu0 %v3806
    %v3808 = vpop.xlane.xlu0 %3807
    %v3809 = vsel %vm82, %v3779, 0.0
    %3810 = vadd.xlane.f32.xlu0 %v3809
    %v3811 = vpop.xlane.xlu0 %3810
    %v3812 = vsel %vm82, %v3780, 0.0
    %3813 = vadd.xlane.f32.xlu0 %v3812
    %v3814 = vpop.xlane.xlu0 %3813
    %v3815 = vsel %vm82, %v3781, 0.0
    %3816 = vadd.xlane.f32.xlu0 %v3815
    %v3817 = vpop.xlane.xlu0 %3816
    %v3818 = vsel %vm82, %v3782, 0.0
    %3819 = vadd.xlane.f32.xlu0 %v3818
    %v3820 = vpop.xlane.xlu0 %3819
    %v3821 = vsel %vm82, %v3783, 0.0
    %3822 = vadd.xlane.f32.xlu0 %v3821
    %v3823 = vpop.xlane.xlu0 %3822
    %v3824 = vsel %vm82, %v3784, 0.0
    %3825 = vadd.xlane.f32.xlu0 %v3824
    %v3826 = vpop.xlane.xlu0 %3825
    %v3827 = vsel %vm82, %v3785, 0.0
    %3828 = vadd.xlane.f32.xlu0 %v3827
    %v3829 = vpop.xlane.xlu0 %3828
    %v3830 = vsel %vm82, %v3786, 0.0
    %3831 = vadd.xlane.f32.xlu0 %v3830
    %v3832 = vpop.xlane.xlu0 %3831
    %v3833 = vsel %vm82, %v3787, 0.0
    %3834 = vadd.xlane.f32.xlu0 %v3833
    %v3835 = vpop.xlane.xlu0 %3834
    %v3836 = vadd.f32 %v3790, %v3793
    %v3837 = vadd.f32 %v3836, %v3796
    %v3838 = vadd.f32 %v3837, %v3799
    %v3839 = vadd.f32 %v3838, %v3802
    %v3840 = vadd.f32 %v3839, %v3805
    %v3841 = vadd.f32 %v3840, %v3808
    %v3842 = vadd.f32 %v3841, %v3811
    %v3843 = vadd.f32 %v3842, %v3814
    %v3844 = vadd.f32 %v3843, %v3817
    %v3845 = vadd.f32 %v3844, %v3820
    %v3846 = vadd.f32 %v3845, %v3823
    %v3847 = vadd.f32 %v3846, %v3826
    %v3848 = vadd.f32 %v3847, %v3829
    %v3849 = vadd.f32 %v3848, %v3832
    %v3850 = vadd.f32 %v3849, %v3835
    %v3851 = vrot.slane %v3850, 4
    %v3852 = vadd.f32 %v3850, %v3851
    %v3853 = vrot.slane %v3852, 2
    %v3854 = vadd.f32 %v3852, %v3853
    %v3855 = vrot.slane %v3854, 1
    %v3856 = vadd.f32 %v3854, %v3855
    %vm3857 = vcmp.eq.s32.totalorder %v293, 0
    %v3858 = vsel %vm3857, %v3856, 0.0
    %v3859 = vadd.f32 %v3755, %v3858
    %s3860 = scalar_lea.vmem %s12, 128
    %v3861 = vld [vmem:[%s3860] sm:$0xff]
    %v3862 = vld [vmem:[%s3860 + $0x8] sm:$0xff]
    %v3863 = vld [vmem:[%s3860 + $0x10] sm:$0xff]
    %v3864 = vld [vmem:[%s3860 + $0x18] sm:$0xff]
    %v3865 = vld [vmem:[%s3860 + $0x20] sm:$0xff]
    %v3866 = vld [vmem:[%s3860 + $0x28] sm:$0xff]
    %v3867 = vld [vmem:[%s3860 + $0x30] sm:$0xff]
    %v3868 = vld [vmem:[%s3860 + $0x38] sm:$0xff]
    %v3869 = vld [vmem:[%s3860 + $0x40] sm:$0xff]
    %v3870 = vld [vmem:[%s3860 + $0x48] sm:$0xff]
    %v3871 = vld [vmem:[%s3860 + $0x50] sm:$0xff]
    %v3872 = vld [vmem:[%s3860 + $0x58] sm:$0xff]
    %v3873 = vld [vmem:[%s3860 + $0x60] sm:$0xff]
    %v3874 = vld [vmem:[%s3860 + $0x68] sm:$0xff]
    %v3875 = vld [vmem:[%s3860 + $0x70] sm:$0xff]
    %v3876 = vld [vmem:[%s3860 + $0x78] sm:$0xff]
    %v3877 = vmul.f32 %v3739, %v3861
    %v3878 = vmul.f32 %v3740, %v3862
    %v3879 = vmul.f32 %v3741, %v3863
    %v3880 = vmul.f32 %v3742, %v3864
    %v3881 = vmul.f32 %v3743, %v3865
    %v3882 = vmul.f32 %v3744, %v3866
    %v3883 = vmul.f32 %v3745, %v3867
    %v3884 = vmul.f32 %v3746, %v3868
    %v3885 = vmul.f32 %v3747, %v3869
    %v3886 = vmul.f32 %v3748, %v3870
    %v3887 = vmul.f32 %v3749, %v3871
    %v3888 = vmul.f32 %v3750, %v3872
    %v3889 = vmul.f32 %v3751, %v3873
    %v3890 = vmul.f32 %v3752, %v3874
    %v3891 = vmul.f32 %v3753, %v3875
    %v3892 = vmul.f32 %v3754, %v3876
    %v3893 = vsel %vm82, %v3877, 0.0
    %3894 = vadd.xlane.f32.xlu0 %v3893
    %v3895 = vpop.xlane.xlu0 %3894
    %v3896 = vsel %vm82, %v3878, 0.0
    %3897 = vadd.xlane.f32.xlu0 %v3896
    %v3898 = vpop.xlane.xlu0 %3897
    %v3899 = vsel %vm82, %v3879, 0.0
    %3900 = vadd.xlane.f32.xlu0 %v3899
    %v3901 = vpop.xlane.xlu0 %3900
    %v3902 = vsel %vm82, %v3880, 0.0
    %3903 = vadd.xlane.f32.xlu0 %v3902
    %v3904 = vpop.xlane.xlu0 %3903
    %v3905 = vsel %vm82, %v3881, 0.0
    %3906 = vadd.xlane.f32.xlu0 %v3905
    %v3907 = vpop.xlane.xlu0 %3906
    %v3908 = vsel %vm82, %v3882, 0.0
    %3909 = vadd.xlane.f32.xlu0 %v3908
    %v3910 = vpop.xlane.xlu0 %3909
    %v3911 = vsel %vm82, %v3883, 0.0
    %3912 = vadd.xlane.f32.xlu0 %v3911
    %v3913 = vpop.xlane.xlu0 %3912
    %v3914 = vsel %vm82, %v3884, 0.0
    %3915 = vadd.xlane.f32.xlu0 %v3914
    %v3916 = vpop.xlane.xlu0 %3915
    %v3917 = vsel %vm82, %v3885, 0.0
    %3918 = vadd.xlane.f32.xlu0 %v3917
    %v3919 = vpop.xlane.xlu0 %3918
    %v3920 = vsel %vm82, %v3886, 0.0
    %3921 = vadd.xlane.f32.xlu0 %v3920
    %v3922 = vpop.xlane.xlu0 %3921
    %v3923 = vsel %vm82, %v3887, 0.0
    %3924 = vadd.xlane.f32.xlu0 %v3923
    %v3925 = vpop.xlane.xlu0 %3924
    %v3926 = vsel %vm82, %v3888, 0.0
    %3927 = vadd.xlane.f32.xlu0 %v3926
    %v3928 = vpop.xlane.xlu0 %3927
    %v3929 = vsel %vm82, %v3889, 0.0
    %3930 = vadd.xlane.f32.xlu0 %v3929
    %v3931 = vpop.xlane.xlu0 %3930
    %v3932 = vsel %vm82, %v3890, 0.0
    %3933 = vadd.xlane.f32.xlu0 %v3932
    %v3934 = vpop.xlane.xlu0 %3933
    %v3935 = vsel %vm82, %v3891, 0.0
    %3936 = vadd.xlane.f32.xlu0 %v3935
    %v3937 = vpop.xlane.xlu0 %3936
    %v3938 = vsel %vm82, %v3892, 0.0
    %3939 = vadd.xlane.f32.xlu0 %v3938
    %v3940 = vpop.xlane.xlu0 %3939
    %v3941 = vadd.f32 %v3895, %v3898
    %v3942 = vadd.f32 %v3941, %v3901
    %v3943 = vadd.f32 %v3942, %v3904
    %v3944 = vadd.f32 %v3943, %v3907
    %v3945 = vadd.f32 %v3944, %v3910
    %v3946 = vadd.f32 %v3945, %v3913
    %v3947 = vadd.f32 %v3946, %v3916
    %v3948 = vadd.f32 %v3947, %v3919
    %v3949 = vadd.f32 %v3948, %v3922
    %v3950 = vadd.f32 %v3949, %v3925
    %v3951 = vadd.f32 %v3950, %v3928
    %v3952 = vadd.f32 %v3951, %v3931
    %v3953 = vadd.f32 %v3952, %v3934
    %v3954 = vadd.f32 %v3953, %v3937
    %v3955 = vadd.f32 %v3954, %v3940
    %v3956 = vrot.slane %v3955, 4
    %v3957 = vadd.f32 %v3955, %v3956
    %v3958 = vrot.slane %v3957, 2
    %v3959 = vadd.f32 %v3957, %v3958
    %v3960 = vrot.slane %v3959, 1
    %v3961 = vadd.f32 %v3959, %v3960
    %vm3962 = vcmp.eq.s32.totalorder %v293, 1
    %v3963 = vsel %vm3962, %v3961, 0.0
    %v3964 = vadd.f32 %v3859, %v3963
    %s3965 = scalar_lea.vmem %s12, 256
    %v3966 = vld [vmem:[%s3965] sm:$0xff]
    %v3967 = vld [vmem:[%s3965 + $0x8] sm:$0xff]
    %v3968 = vld [vmem:[%s3965 + $0x10] sm:$0xff]
    %v3969 = vld [vmem:[%s3965 + $0x18] sm:$0xff]
    %v3970 = vld [vmem:[%s3965 + $0x20] sm:$0xff]
    %v3971 = vld [vmem:[%s3965 + $0x28] sm:$0xff]
    %v3972 = vld [vmem:[%s3965 + $0x30] sm:$0xff]
    %v3973 = vld [vmem:[%s3965 + $0x38] sm:$0xff]
    %v3974 = vld [vmem:[%s3965 + $0x40] sm:$0xff]
    %v3975 = vld [vmem:[%s3965 + $0x48] sm:$0xff]
    %v3976 = vld [vmem:[%s3965 + $0x50] sm:$0xff]
    %v3977 = vld [vmem:[%s3965 + $0x58] sm:$0xff]
    %v3978 = vld [vmem:[%s3965 + $0x60] sm:$0xff]
    %v3979 = vld [vmem:[%s3965 + $0x68] sm:$0xff]
    %v3980 = vld [vmem:[%s3965 + $0x70] sm:$0xff]
    %v3981 = vld [vmem:[%s3965 + $0x78] sm:$0xff]
    %v3982 = vmul.f32 %v3739, %v3966
    %v3983 = vmul.f32 %v3740, %v3967
    %v3984 = vmul.f32 %v3741, %v3968
    %v3985 = vmul.f32 %v3742, %v3969
    %v3986 = vmul.f32 %v3743, %v3970
    %v3987 = vmul.f32 %v3744, %v3971
    %v3988 = vmul.f32 %v3745, %v3972
    %v3989 = vmul.f32 %v3746, %v3973
    %v3990 = vmul.f32 %v3747, %v3974
    %v3991 = vmul.f32 %v3748, %v3975
    %v3992 = vmul.f32 %v3749, %v3976
    %v3993 = vmul.f32 %v3750, %v3977
    %v3994 = vmul.f32 %v3751, %v3978
    %v3995 = vmul.f32 %v3752, %v3979
    %v3996 = vmul.f32 %v3753, %v3980
    %v3997 = vmul.f32 %v3754, %v3981
    %v3998 = vsel %vm82, %v3982, 0.0
    %3999 = vadd.xlane.f32.xlu0 %v3998
    %v4000 = vpop.xlane.xlu0 %3999
    %v4001 = vsel %vm82, %v3983, 0.0
    %4002 = vadd.xlane.f32.xlu0 %v4001
    %v4003 = vpop.xlane.xlu0 %4002
    %v4004 = vsel %vm82, %v3984, 0.0
    %4005 = vadd.xlane.f32.xlu0 %v4004
    %v4006 = vpop.xlane.xlu0 %4005
    %v4007 = vsel %vm82, %v3985, 0.0
    %4008 = vadd.xlane.f32.xlu0 %v4007
    %v4009 = vpop.xlane.xlu0 %4008
    %v4010 = vsel %vm82, %v3986, 0.0
    %4011 = vadd.xlane.f32.xlu0 %v4010
    %v4012 = vpop.xlane.xlu0 %4011
    %v4013 = vsel %vm82, %v3987, 0.0
    %4014 = vadd.xlane.f32.xlu0 %v4013
    %v4015 = vpop.xlane.xlu0 %4014
    %v4016 = vsel %vm82, %v3988, 0.0
    %4017 = vadd.xlane.f32.xlu0 %v4016
    %v4018 = vpop.xlane.xlu0 %4017
    %v4019 = vsel %vm82, %v3989, 0.0
    %4020 = vadd.xlane.f32.xlu0 %v4019
    %v4021 = vpop.xlane.xlu0 %4020
    %v4022 = vsel %vm82, %v3990, 0.0
    %4023 = vadd.xlane.f32.xlu0 %v4022
    %v4024 = vpop.xlane.xlu0 %4023
    %v4025 = vsel %vm82, %v3991, 0.0
    %4026 = vadd.xlane.f32.xlu0 %v4025
    %v4027 = vpop.xlane.xlu0 %4026
    %v4028 = vsel %vm82, %v3992, 0.0
    %4029 = vadd.xlane.f32.xlu0 %v4028
    %v4030 = vpop.xlane.xlu0 %4029
    %v4031 = vsel %vm82, %v3993, 0.0
    %4032 = vadd.xlane.f32.xlu0 %v4031
    %v4033 = vpop.xlane.xlu0 %4032
    %v4034 = vsel %vm82, %v3994, 0.0
    %4035 = vadd.xlane.f32.xlu0 %v4034
    %v4036 = vpop.xlane.xlu0 %4035
    %v4037 = vsel %vm82, %v3995, 0.0
    %4038 = vadd.xlane.f32.xlu0 %v4037
    %v4039 = vpop.xlane.xlu0 %4038
    %v4040 = vsel %vm82, %v3996, 0.0
    %4041 = vadd.xlane.f32.xlu0 %v4040
    %v4042 = vpop.xlane.xlu0 %4041
    %v4043 = vsel %vm82, %v3997, 0.0
    %4044 = vadd.xlane.f32.xlu0 %v4043
    %v4045 = vpop.xlane.xlu0 %4044
    %v4046 = vadd.f32 %v4000, %v4003
    %v4047 = vadd.f32 %v4046, %v4006
    %v4048 = vadd.f32 %v4047, %v4009
    %v4049 = vadd.f32 %v4048, %v4012
    %v4050 = vadd.f32 %v4049, %v4015
    %v4051 = vadd.f32 %v4050, %v4018
    %v4052 = vadd.f32 %v4051, %v4021
    %v4053 = vadd.f32 %v4052, %v4024
    %v4054 = vadd.f32 %v4053, %v4027
    %v4055 = vadd.f32 %v4054, %v4030
    %v4056 = vadd.f32 %v4055, %v4033
    %v4057 = vadd.f32 %v4056, %v4036
    %v4058 = vadd.f32 %v4057, %v4039
    %v4059 = vadd.f32 %v4058, %v4042
    %v4060 = vadd.f32 %v4059, %v4045
    %v4061 = vrot.slane %v4060, 4
    %v4062 = vadd.f32 %v4060, %v4061
    %v4063 = vrot.slane %v4062, 2
    %v4064 = vadd.f32 %v4062, %v4063
    %v4065 = vrot.slane %v4064, 1
    %v4066 = vadd.f32 %v4064, %v4065
    %vm4067 = vcmp.eq.s32.totalorder %v293, 2
    %v4068 = vsel %vm4067, %v4066, 0.0
    %v4069 = vadd.f32 %v3964, %v4068
    %s4070 = scalar_lea.vmem %s12, 384
    %v4071 = vld [vmem:[%s4070] sm:$0xff]
    %v4072 = vld [vmem:[%s4070 + $0x8] sm:$0xff]
    %v4073 = vld [vmem:[%s4070 + $0x10] sm:$0xff]
    %v4074 = vld [vmem:[%s4070 + $0x18] sm:$0xff]
    %v4075 = vld [vmem:[%s4070 + $0x20] sm:$0xff]
    %v4076 = vld [vmem:[%s4070 + $0x28] sm:$0xff]
    %v4077 = vld [vmem:[%s4070 + $0x30] sm:$0xff]
    %v4078 = vld [vmem:[%s4070 + $0x38] sm:$0xff]
    %v4079 = vld [vmem:[%s4070 + $0x40] sm:$0xff]
    %v4080 = vld [vmem:[%s4070 + $0x48] sm:$0xff]
    %v4081 = vld [vmem:[%s4070 + $0x50] sm:$0xff]
    %v4082 = vld [vmem:[%s4070 + $0x58] sm:$0xff]
    %v4083 = vld [vmem:[%s4070 + $0x60] sm:$0xff]
    %v4084 = vld [vmem:[%s4070 + $0x68] sm:$0xff]
    %v4085 = vld [vmem:[%s4070 + $0x70] sm:$0xff]
    %v4086 = vld [vmem:[%s4070 + $0x78] sm:$0xff]
    %v4087 = vmul.f32 %v3739, %v4071
    %v4088 = vmul.f32 %v3740, %v4072
    %v4089 = vmul.f32 %v3741, %v4073
    %v4090 = vmul.f32 %v3742, %v4074
    %v4091 = vmul.f32 %v3743, %v4075
    %v4092 = vmul.f32 %v3744, %v4076
    %v4093 = vmul.f32 %v3745, %v4077
    %v4094 = vmul.f32 %v3746, %v4078
    %v4095 = vmul.f32 %v3747, %v4079
    %v4096 = vmul.f32 %v3748, %v4080
    %v4097 = vmul.f32 %v3749, %v4081
    %v4098 = vmul.f32 %v3750, %v4082
    %v4099 = vmul.f32 %v3751, %v4083
    %v4100 = vmul.f32 %v3752, %v4084
    %v4101 = vmul.f32 %v3753, %v4085
    %v4102 = vmul.f32 %v3754, %v4086
    %v4103 = vsel %vm82, %v4087, 0.0
    %4104 = vadd.xlane.f32.xlu0 %v4103
    %v4105 = vpop.xlane.xlu0 %4104
    %v4106 = vsel %vm82, %v4088, 0.0
    %4107 = vadd.xlane.f32.xlu0 %v4106
    %v4108 = vpop.xlane.xlu0 %4107
    %v4109 = vsel %vm82, %v4089, 0.0
    %4110 = vadd.xlane.f32.xlu0 %v4109
    %v4111 = vpop.xlane.xlu0 %4110
    %v4112 = vsel %vm82, %v4090, 0.0
    %4113 = vadd.xlane.f32.xlu0 %v4112
    %v4114 = vpop.xlane.xlu0 %4113
    %v4115 = vsel %vm82, %v4091, 0.0
    %4116 = vadd.xlane.f32.xlu0 %v4115
    %v4117 = vpop.xlane.xlu0 %4116
    %v4118 = vsel %vm82, %v4092, 0.0
    %4119 = vadd.xlane.f32.xlu0 %v4118
    %v4120 = vpop.xlane.xlu0 %4119
    %v4121 = vsel %vm82, %v4093, 0.0
    %4122 = vadd.xlane.f32.xlu0 %v4121
    %v4123 = vpop.xlane.xlu0 %4122
    %v4124 = vsel %vm82, %v4094, 0.0
    %4125 = vadd.xlane.f32.xlu0 %v4124
    %v4126 = vpop.xlane.xlu0 %4125
    %v4127 = vsel %vm82, %v4095, 0.0
    %4128 = vadd.xlane.f32.xlu0 %v4127
    %v4129 = vpop.xlane.xlu0 %4128
    %v4130 = vsel %vm82, %v4096, 0.0
    %4131 = vadd.xlane.f32.xlu0 %v4130
    %v4132 = vpop.xlane.xlu0 %4131
    %v4133 = vsel %vm82, %v4097, 0.0
    %4134 = vadd.xlane.f32.xlu0 %v4133
    %v4135 = vpop.xlane.xlu0 %4134
    %v4136 = vsel %vm82, %v4098, 0.0
    %4137 = vadd.xlane.f32.xlu0 %v4136
    %v4138 = vpop.xlane.xlu0 %4137
    %v4139 = vsel %vm82, %v4099, 0.0
    %4140 = vadd.xlane.f32.xlu0 %v4139
    %v4141 = vpop.xlane.xlu0 %4140
    %v4142 = vsel %vm82, %v4100, 0.0
    %4143 = vadd.xlane.f32.xlu0 %v4142
    %v4144 = vpop.xlane.xlu0 %4143
    %v4145 = vsel %vm82, %v4101, 0.0
    %4146 = vadd.xlane.f32.xlu0 %v4145
    %v4147 = vpop.xlane.xlu0 %4146
    %v4148 = vsel %vm82, %v4102, 0.0
    %4149 = vadd.xlane.f32.xlu0 %v4148
    %v4150 = vpop.xlane.xlu0 %4149
    %v4151 = vadd.f32 %v4105, %v4108
    %v4152 = vadd.f32 %v4151, %v4111
    %v4153 = vadd.f32 %v4152, %v4114
    %v4154 = vadd.f32 %v4153, %v4117
    %v4155 = vadd.f32 %v4154, %v4120
    %v4156 = vadd.f32 %v4155, %v4123
    %v4157 = vadd.f32 %v4156, %v4126
    %v4158 = vadd.f32 %v4157, %v4129
    %v4159 = vadd.f32 %v4158, %v4132
    %v4160 = vadd.f32 %v4159, %v4135
    %v4161 = vadd.f32 %v4160, %v4138
    %v4162 = vadd.f32 %v4161, %v4141
    %v4163 = vadd.f32 %v4162, %v4144
    %v4164 = vadd.f32 %v4163, %v4147
    %v4165 = vadd.f32 %v4164, %v4150
    %v4166 = vrot.slane %v4165, 4
    %v4167 = vadd.f32 %v4165, %v4166
    %v4168 = vrot.slane %v4167, 2
    %v4169 = vadd.f32 %v4167, %v4168
    %v4170 = vrot.slane %v4169, 1
    %v4171 = vadd.f32 %v4169, %v4170
    %vm4172 = vcmp.eq.s32.totalorder %v293, 3
    %v4173 = vsel %vm4172, %v4171, 0.0
    %v4174 = vadd.f32 %v4069, %v4173
    %s4175 = scalar_lea.vmem %s12, 512
    %v4176 = vld [vmem:[%s4175] sm:$0xff]
    %v4177 = vld [vmem:[%s4175 + $0x8] sm:$0xff]
    %v4178 = vld [vmem:[%s4175 + $0x10] sm:$0xff]
    %v4179 = vld [vmem:[%s4175 + $0x18] sm:$0xff]
    %v4180 = vld [vmem:[%s4175 + $0x20] sm:$0xff]
    %v4181 = vld [vmem:[%s4175 + $0x28] sm:$0xff]
    %v4182 = vld [vmem:[%s4175 + $0x30] sm:$0xff]
    %v4183 = vld [vmem:[%s4175 + $0x38] sm:$0xff]
    %v4184 = vld [vmem:[%s4175 + $0x40] sm:$0xff]
    %v4185 = vld [vmem:[%s4175 + $0x48] sm:$0xff]
    %v4186 = vld [vmem:[%s4175 + $0x50] sm:$0xff]
    %v4187 = vld [vmem:[%s4175 + $0x58] sm:$0xff]
    %v4188 = vld [vmem:[%s4175 + $0x60] sm:$0xff]
    %v4189 = vld [vmem:[%s4175 + $0x68] sm:$0xff]
    %v4190 = vld [vmem:[%s4175 + $0x70] sm:$0xff]
    %v4191 = vld [vmem:[%s4175 + $0x78] sm:$0xff]
    %v4192 = vmul.f32 %v3739, %v4176
    %v4193 = vmul.f32 %v3740, %v4177
    %v4194 = vmul.f32 %v3741, %v4178
    %v4195 = vmul.f32 %v3742, %v4179
    %v4196 = vmul.f32 %v3743, %v4180
    %v4197 = vmul.f32 %v3744, %v4181
    %v4198 = vmul.f32 %v3745, %v4182
    %v4199 = vmul.f32 %v3746, %v4183
    %v4200 = vmul.f32 %v3747, %v4184
    %v4201 = vmul.f32 %v3748, %v4185
    %v4202 = vmul.f32 %v3749, %v4186
    %v4203 = vmul.f32 %v3750, %v4187
    %v4204 = vmul.f32 %v3751, %v4188
    %v4205 = vmul.f32 %v3752, %v4189
    %v4206 = vmul.f32 %v3753, %v4190
    %v4207 = vmul.f32 %v3754, %v4191
    %v4208 = vsel %vm82, %v4192, 0.0
    %4209 = vadd.xlane.f32.xlu0 %v4208
    %v4210 = vpop.xlane.xlu0 %4209
    %v4211 = vsel %vm82, %v4193, 0.0
    %4212 = vadd.xlane.f32.xlu0 %v4211
    %v4213 = vpop.xlane.xlu0 %4212
    %v4214 = vsel %vm82, %v4194, 0.0
    %4215 = vadd.xlane.f32.xlu0 %v4214
    %v4216 = vpop.xlane.xlu0 %4215
    %v4217 = vsel %vm82, %v4195, 0.0
    %4218 = vadd.xlane.f32.xlu0 %v4217
    %v4219 = vpop.xlane.xlu0 %4218
    %v4220 = vsel %vm82, %v4196, 0.0
    %4221 = vadd.xlane.f32.xlu0 %v4220
    %v4222 = vpop.xlane.xlu0 %4221
    %v4223 = vsel %vm82, %v4197, 0.0
    %4224 = vadd.xlane.f32.xlu0 %v4223
    %v4225 = vpop.xlane.xlu0 %4224
    %v4226 = vsel %vm82, %v4198, 0.0
    %4227 = vadd.xlane.f32.xlu0 %v4226
    %v4228 = vpop.xlane.xlu0 %4227
    %v4229 = vsel %vm82, %v4199, 0.0
    %4230 = vadd.xlane.f32.xlu0 %v4229
    %v4231 = vpop.xlane.xlu0 %4230
    %v4232 = vsel %vm82, %v4200, 0.0
    %4233 = vadd.xlane.f32.xlu0 %v4232
    %v4234 = vpop.xlane.xlu0 %4233
    %v4235 = vsel %vm82, %v4201, 0.0
    %4236 = vadd.xlane.f32.xlu0 %v4235
    %v4237 = vpop.xlane.xlu0 %4236
    %v4238 = vsel %vm82, %v4202, 0.0
    %4239 = vadd.xlane.f32.xlu0 %v4238
    %v4240 = vpop.xlane.xlu0 %4239
    %v4241 = vsel %vm82, %v4203, 0.0
    %4242 = vadd.xlane.f32.xlu0 %v4241
    %v4243 = vpop.xlane.xlu0 %4242
    %v4244 = vsel %vm82, %v4204, 0.0
    %4245 = vadd.xlane.f32.xlu0 %v4244
    %v4246 = vpop.xlane.xlu0 %4245
    %v4247 = vsel %vm82, %v4205, 0.0
    %4248 = vadd.xlane.f32.xlu0 %v4247
    %v4249 = vpop.xlane.xlu0 %4248
    %v4250 = vsel %vm82, %v4206, 0.0
    %4251 = vadd.xlane.f32.xlu0 %v4250
    %v4252 = vpop.xlane.xlu0 %4251
    %v4253 = vsel %vm82, %v4207, 0.0
    %4254 = vadd.xlane.f32.xlu0 %v4253
    %v4255 = vpop.xlane.xlu0 %4254
    %v4256 = vadd.f32 %v4210, %v4213
    %v4257 = vadd.f32 %v4256, %v4216
    %v4258 = vadd.f32 %v4257, %v4219
    %v4259 = vadd.f32 %v4258, %v4222
    %v4260 = vadd.f32 %v4259, %v4225
    %v4261 = vadd.f32 %v4260, %v4228
    %v4262 = vadd.f32 %v4261, %v4231
    %v4263 = vadd.f32 %v4262, %v4234
    %v4264 = vadd.f32 %v4263, %v4237
    %v4265 = vadd.f32 %v4264, %v4240
    %v4266 = vadd.f32 %v4265, %v4243
    %v4267 = vadd.f32 %v4266, %v4246
    %v4268 = vadd.f32 %v4267, %v4249
    %v4269 = vadd.f32 %v4268, %v4252
    %v4270 = vadd.f32 %v4269, %v4255
    %v4271 = vrot.slane %v4270, 4
    %v4272 = vadd.f32 %v4270, %v4271
    %v4273 = vrot.slane %v4272, 2
    %v4274 = vadd.f32 %v4272, %v4273
    %v4275 = vrot.slane %v4274, 1
    %v4276 = vadd.f32 %v4274, %v4275
    %vm4277 = vcmp.eq.s32.totalorder %v293, 4
    %v4278 = vsel %vm4277, %v4276, 0.0
    %v4279 = vadd.f32 %v4174, %v4278
    %s4280 = scalar_lea.vmem %s12, 640
    %v4281 = vld [vmem:[%s4280] sm:$0xff]
    %v4282 = vld [vmem:[%s4280 + $0x8] sm:$0xff]
    %v4283 = vld [vmem:[%s4280 + $0x10] sm:$0xff]
    %v4284 = vld [vmem:[%s4280 + $0x18] sm:$0xff]
    %v4285 = vld [vmem:[%s4280 + $0x20] sm:$0xff]
    %v4286 = vld [vmem:[%s4280 + $0x28] sm:$0xff]
    %v4287 = vld [vmem:[%s4280 + $0x30] sm:$0xff]
    %v4288 = vld [vmem:[%s4280 + $0x38] sm:$0xff]
    %v4289 = vld [vmem:[%s4280 + $0x40] sm:$0xff]
    %v4290 = vld [vmem:[%s4280 + $0x48] sm:$0xff]
    %v4291 = vld [vmem:[%s4280 + $0x50] sm:$0xff]
    %v4292 = vld [vmem:[%s4280 + $0x58] sm:$0xff]
    %v4293 = vld [vmem:[%s4280 + $0x60] sm:$0xff]
    %v4294 = vld [vmem:[%s4280 + $0x68] sm:$0xff]
    %v4295 = vld [vmem:[%s4280 + $0x70] sm:$0xff]
    %v4296 = vld [vmem:[%s4280 + $0x78] sm:$0xff]
    %v4297 = vmul.f32 %v3739, %v4281
    %v4298 = vmul.f32 %v3740, %v4282
    %v4299 = vmul.f32 %v3741, %v4283
    %v4300 = vmul.f32 %v3742, %v4284
    %v4301 = vmul.f32 %v3743, %v4285
    %v4302 = vmul.f32 %v3744, %v4286
    %v4303 = vmul.f32 %v3745, %v4287
    %v4304 = vmul.f32 %v3746, %v4288
    %v4305 = vmul.f32 %v3747, %v4289
    %v4306 = vmul.f32 %v3748, %v4290
    %v4307 = vmul.f32 %v3749, %v4291
    %v4308 = vmul.f32 %v3750, %v4292
    %v4309 = vmul.f32 %v3751, %v4293
    %v4310 = vmul.f32 %v3752, %v4294
    %v4311 = vmul.f32 %v3753, %v4295
    %v4312 = vmul.f32 %v3754, %v4296
    %v4313 = vsel %vm82, %v4297, 0.0
    %4314 = vadd.xlane.f32.xlu0 %v4313
    %v4315 = vpop.xlane.xlu0 %4314
    %v4316 = vsel %vm82, %v4298, 0.0
    %4317 = vadd.xlane.f32.xlu0 %v4316
    %v4318 = vpop.xlane.xlu0 %4317
    %v4319 = vsel %vm82, %v4299, 0.0
    %4320 = vadd.xlane.f32.xlu0 %v4319
    %v4321 = vpop.xlane.xlu0 %4320
    %v4322 = vsel %vm82, %v4300, 0.0
    %4323 = vadd.xlane.f32.xlu0 %v4322
    %v4324 = vpop.xlane.xlu0 %4323
    %v4325 = vsel %vm82, %v4301, 0.0
    %4326 = vadd.xlane.f32.xlu0 %v4325
    %v4327 = vpop.xlane.xlu0 %4326
    %v4328 = vsel %vm82, %v4302, 0.0
    %4329 = vadd.xlane.f32.xlu0 %v4328
    %v4330 = vpop.xlane.xlu0 %4329
    %v4331 = vsel %vm82, %v4303, 0.0
    %4332 = vadd.xlane.f32.xlu0 %v4331
    %v4333 = vpop.xlane.xlu0 %4332
    %v4334 = vsel %vm82, %v4304, 0.0
    %4335 = vadd.xlane.f32.xlu0 %v4334
    %v4336 = vpop.xlane.xlu0 %4335
    %v4337 = vsel %vm82, %v4305, 0.0
    %4338 = vadd.xlane.f32.xlu0 %v4337
    %v4339 = vpop.xlane.xlu0 %4338
    %v4340 = vsel %vm82, %v4306, 0.0
    %4341 = vadd.xlane.f32.xlu0 %v4340
    %v4342 = vpop.xlane.xlu0 %4341
    %v4343 = vsel %vm82, %v4307, 0.0
    %4344 = vadd.xlane.f32.xlu0 %v4343
    %v4345 = vpop.xlane.xlu0 %4344
    %v4346 = vsel %vm82, %v4308, 0.0
    %4347 = vadd.xlane.f32.xlu0 %v4346
    %v4348 = vpop.xlane.xlu0 %4347
    %v4349 = vsel %vm82, %v4309, 0.0
    %4350 = vadd.xlane.f32.xlu0 %v4349
    %v4351 = vpop.xlane.xlu0 %4350
    %v4352 = vsel %vm82, %v4310, 0.0
    %4353 = vadd.xlane.f32.xlu0 %v4352
    %v4354 = vpop.xlane.xlu0 %4353
    %v4355 = vsel %vm82, %v4311, 0.0
    %4356 = vadd.xlane.f32.xlu0 %v4355
    %v4357 = vpop.xlane.xlu0 %4356
    %v4358 = vsel %vm82, %v4312, 0.0
    %4359 = vadd.xlane.f32.xlu0 %v4358
    %v4360 = vpop.xlane.xlu0 %4359
    %v4361 = vadd.f32 %v4315, %v4318
    %v4362 = vadd.f32 %v4361, %v4321
    %v4363 = vadd.f32 %v4362, %v4324
    %v4364 = vadd.f32 %v4363, %v4327
    %v4365 = vadd.f32 %v4364, %v4330
    %v4366 = vadd.f32 %v4365, %v4333
    %v4367 = vadd.f32 %v4366, %v4336
    %v4368 = vadd.f32 %v4367, %v4339
    %v4369 = vadd.f32 %v4368, %v4342
    %v4370 = vadd.f32 %v4369, %v4345
    %v4371 = vadd.f32 %v4370, %v4348
    %v4372 = vadd.f32 %v4371, %v4351
    %v4373 = vadd.f32 %v4372, %v4354
    %v4374 = vadd.f32 %v4373, %v4357
    %v4375 = vadd.f32 %v4374, %v4360
    %v4376 = vrot.slane %v4375, 4
    %v4377 = vadd.f32 %v4375, %v4376
    %v4378 = vrot.slane %v4377, 2
    %v4379 = vadd.f32 %v4377, %v4378
    %v4380 = vrot.slane %v4379, 1
    %v4381 = vadd.f32 %v4379, %v4380
    %vm4382 = vcmp.eq.s32.totalorder %v293, 5
    %v4383 = vsel %vm4382, %v4381, 0.0
    %v4384 = vadd.f32 %v4279, %v4383
    %s4385 = scalar_lea.vmem %s12, 768
    %v4386 = vld [vmem:[%s4385] sm:$0xff]
    %v4387 = vld [vmem:[%s4385 + $0x8] sm:$0xff]
    %v4388 = vld [vmem:[%s4385 + $0x10] sm:$0xff]
    %v4389 = vld [vmem:[%s4385 + $0x18] sm:$0xff]
    %v4390 = vld [vmem:[%s4385 + $0x20] sm:$0xff]
    %v4391 = vld [vmem:[%s4385 + $0x28] sm:$0xff]
    %v4392 = vld [vmem:[%s4385 + $0x30] sm:$0xff]
    %v4393 = vld [vmem:[%s4385 + $0x38] sm:$0xff]
    %v4394 = vld [vmem:[%s4385 + $0x40] sm:$0xff]
    %v4395 = vld [vmem:[%s4385 + $0x48] sm:$0xff]
    %v4396 = vld [vmem:[%s4385 + $0x50] sm:$0xff]
    %v4397 = vld [vmem:[%s4385 + $0x58] sm:$0xff]
    %v4398 = vld [vmem:[%s4385 + $0x60] sm:$0xff]
    %v4399 = vld [vmem:[%s4385 + $0x68] sm:$0xff]
    %v4400 = vld [vmem:[%s4385 + $0x70] sm:$0xff]
    %v4401 = vld [vmem:[%s4385 + $0x78] sm:$0xff]
    %v4402 = vmul.f32 %v3739, %v4386
    %v4403 = vmul.f32 %v3740, %v4387
    %v4404 = vmul.f32 %v3741, %v4388
    %v4405 = vmul.f32 %v3742, %v4389
    %v4406 = vmul.f32 %v3743, %v4390
    %v4407 = vmul.f32 %v3744, %v4391
    %v4408 = vmul.f32 %v3745, %v4392
    %v4409 = vmul.f32 %v3746, %v4393
    %v4410 = vmul.f32 %v3747, %v4394
    %v4411 = vmul.f32 %v3748, %v4395
    %v4412 = vmul.f32 %v3749, %v4396
    %v4413 = vmul.f32 %v3750, %v4397
    %v4414 = vmul.f32 %v3751, %v4398
    %v4415 = vmul.f32 %v3752, %v4399
    %v4416 = vmul.f32 %v3753, %v4400
    %v4417 = vmul.f32 %v3754, %v4401
    %v4418 = vsel %vm82, %v4402, 0.0
    %4419 = vadd.xlane.f32.xlu0 %v4418
    %v4420 = vpop.xlane.xlu0 %4419
    %v4421 = vsel %vm82, %v4403, 0.0
    %4422 = vadd.xlane.f32.xlu0 %v4421
    %v4423 = vpop.xlane.xlu0 %4422
    %v4424 = vsel %vm82, %v4404, 0.0
    %4425 = vadd.xlane.f32.xlu0 %v4424
    %v4426 = vpop.xlane.xlu0 %4425
    %v4427 = vsel %vm82, %v4405, 0.0
    %4428 = vadd.xlane.f32.xlu0 %v4427
    %v4429 = vpop.xlane.xlu0 %4428
    %v4430 = vsel %vm82, %v4406, 0.0
    %4431 = vadd.xlane.f32.xlu0 %v4430
    %v4432 = vpop.xlane.xlu0 %4431
    %v4433 = vsel %vm82, %v4407, 0.0
    %4434 = vadd.xlane.f32.xlu0 %v4433
    %v4435 = vpop.xlane.xlu0 %4434
    %v4436 = vsel %vm82, %v4408, 0.0
    %4437 = vadd.xlane.f32.xlu0 %v4436
    %v4438 = vpop.xlane.xlu0 %4437
    %v4439 = vsel %vm82, %v4409, 0.0
    %4440 = vadd.xlane.f32.xlu0 %v4439
    %v4441 = vpop.xlane.xlu0 %4440
    %v4442 = vsel %vm82, %v4410, 0.0
    %4443 = vadd.xlane.f32.xlu0 %v4442
    %v4444 = vpop.xlane.xlu0 %4443
    %v4445 = vsel %vm82, %v4411, 0.0
    %4446 = vadd.xlane.f32.xlu0 %v4445
    %v4447 = vpop.xlane.xlu0 %4446
    %v4448 = vsel %vm82, %v4412, 0.0
    %4449 = vadd.xlane.f32.xlu0 %v4448
    %v4450 = vpop.xlane.xlu0 %4449
    %v4451 = vsel %vm82, %v4413, 0.0
    %4452 = vadd.xlane.f32.xlu0 %v4451
    %v4453 = vpop.xlane.xlu0 %4452
    %v4454 = vsel %vm82, %v4414, 0.0
    %4455 = vadd.xlane.f32.xlu0 %v4454
    %v4456 = vpop.xlane.xlu0 %4455
    %v4457 = vsel %vm82, %v4415, 0.0
    %4458 = vadd.xlane.f32.xlu0 %v4457
    %v4459 = vpop.xlane.xlu0 %4458
    %v4460 = vsel %vm82, %v4416, 0.0
    %4461 = vadd.xlane.f32.xlu0 %v4460
    %v4462 = vpop.xlane.xlu0 %4461
    %v4463 = vsel %vm82, %v4417, 0.0
    %4464 = vadd.xlane.f32.xlu0 %v4463
    %v4465 = vpop.xlane.xlu0 %4464
    %v4466 = vadd.f32 %v4420, %v4423
    %v4467 = vadd.f32 %v4466, %v4426
    %v4468 = vadd.f32 %v4467, %v4429
    %v4469 = vadd.f32 %v4468, %v4432
    %v4470 = vadd.f32 %v4469, %v4435
    %v4471 = vadd.f32 %v4470, %v4438
    %v4472 = vadd.f32 %v4471, %v4441
    %v4473 = vadd.f32 %v4472, %v4444
    %v4474 = vadd.f32 %v4473, %v4447
    %v4475 = vadd.f32 %v4474, %v4450
    %v4476 = vadd.f32 %v4475, %v4453
    %v4477 = vadd.f32 %v4476, %v4456
    %v4478 = vadd.f32 %v4477, %v4459
    %v4479 = vadd.f32 %v4478, %v4462
    %v4480 = vadd.f32 %v4479, %v4465
    %v4481 = vrot.slane %v4480, 4
    %v4482 = vadd.f32 %v4480, %v4481
    %v4483 = vrot.slane %v4482, 2
    %v4484 = vadd.f32 %v4482, %v4483
    %v4485 = vrot.slane %v4484, 1
    %v4486 = vadd.f32 %v4484, %v4485
    %vm4487 = vcmp.eq.s32.totalorder %v293, 6
    %v4488 = vsel %vm4487, %v4486, 0.0
    %v4489 = vadd.f32 %v4384, %v4488
    %s4490 = scalar_lea.vmem %s12, 896
    %v4491 = vld [vmem:[%s4490] sm:$0xff]
    %v4492 = vld [vmem:[%s4490 + $0x8] sm:$0xff]
    %v4493 = vld [vmem:[%s4490 + $0x10] sm:$0xff]
    %v4494 = vld [vmem:[%s4490 + $0x18] sm:$0xff]
    %v4495 = vld [vmem:[%s4490 + $0x20] sm:$0xff]
    %v4496 = vld [vmem:[%s4490 + $0x28] sm:$0xff]
    %v4497 = vld [vmem:[%s4490 + $0x30] sm:$0xff]
    %v4498 = vld [vmem:[%s4490 + $0x38] sm:$0xff]
    %v4499 = vld [vmem:[%s4490 + $0x40] sm:$0xff]
    %v4500 = vld [vmem:[%s4490 + $0x48] sm:$0xff]
    %v4501 = vld [vmem:[%s4490 + $0x50] sm:$0xff]
    %v4502 = vld [vmem:[%s4490 + $0x58] sm:$0xff]
    %v4503 = vld [vmem:[%s4490 + $0x60] sm:$0xff]
    %v4504 = vld [vmem:[%s4490 + $0x68] sm:$0xff]
    %v4505 = vld [vmem:[%s4490 + $0x70] sm:$0xff]
    %v4506 = vld [vmem:[%s4490 + $0x78] sm:$0xff]
    %v4507 = vmul.f32 %v3739, %v4491
    %v4508 = vmul.f32 %v3740, %v4492
    %v4509 = vmul.f32 %v3741, %v4493
    %v4510 = vmul.f32 %v3742, %v4494
    %v4511 = vmul.f32 %v3743, %v4495
    %v4512 = vmul.f32 %v3744, %v4496
    %v4513 = vmul.f32 %v3745, %v4497
    %v4514 = vmul.f32 %v3746, %v4498
    %v4515 = vmul.f32 %v3747, %v4499
    %v4516 = vmul.f32 %v3748, %v4500
    %v4517 = vmul.f32 %v3749, %v4501
    %v4518 = vmul.f32 %v3750, %v4502
    %v4519 = vmul.f32 %v3751, %v4503
    %v4520 = vmul.f32 %v3752, %v4504
    %v4521 = vmul.f32 %v3753, %v4505
    %v4522 = vmul.f32 %v3754, %v4506
    %v4523 = vsel %vm82, %v4507, 0.0
    %4524 = vadd.xlane.f32.xlu0 %v4523
    %v4525 = vpop.xlane.xlu0 %4524
    %v4526 = vsel %vm82, %v4508, 0.0
    %4527 = vadd.xlane.f32.xlu0 %v4526
    %v4528 = vpop.xlane.xlu0 %4527
    %v4529 = vsel %vm82, %v4509, 0.0
    %4530 = vadd.xlane.f32.xlu0 %v4529
    %v4531 = vpop.xlane.xlu0 %4530
    %v4532 = vsel %vm82, %v4510, 0.0
    %4533 = vadd.xlane.f32.xlu0 %v4532
    %v4534 = vpop.xlane.xlu0 %4533
    %v4535 = vsel %vm82, %v4511, 0.0
    %4536 = vadd.xlane.f32.xlu0 %v4535
    %v4537 = vpop.xlane.xlu0 %4536
    %v4538 = vsel %vm82, %v4512, 0.0
    %4539 = vadd.xlane.f32.xlu0 %v4538
    %v4540 = vpop.xlane.xlu0 %4539
    %v4541 = vsel %vm82, %v4513, 0.0
    %4542 = vadd.xlane.f32.xlu0 %v4541
    %v4543 = vpop.xlane.xlu0 %4542
    %v4544 = vsel %vm82, %v4514, 0.0
    %4545 = vadd.xlane.f32.xlu0 %v4544
    %v4546 = vpop.xlane.xlu0 %4545
    %v4547 = vsel %vm82, %v4515, 0.0
    %4548 = vadd.xlane.f32.xlu0 %v4547
    %v4549 = vpop.xlane.xlu0 %4548
    %v4550 = vsel %vm82, %v4516, 0.0
    %4551 = vadd.xlane.f32.xlu0 %v4550
    %v4552 = vpop.xlane.xlu0 %4551
    %v4553 = vsel %vm82, %v4517, 0.0
    %4554 = vadd.xlane.f32.xlu0 %v4553
    %v4555 = vpop.xlane.xlu0 %4554
    %v4556 = vsel %vm82, %v4518, 0.0
    %4557 = vadd.xlane.f32.xlu0 %v4556
    %v4558 = vpop.xlane.xlu0 %4557
    %v4559 = vsel %vm82, %v4519, 0.0
    %4560 = vadd.xlane.f32.xlu0 %v4559
    %v4561 = vpop.xlane.xlu0 %4560
    %v4562 = vsel %vm82, %v4520, 0.0
    %4563 = vadd.xlane.f32.xlu0 %v4562
    %v4564 = vpop.xlane.xlu0 %4563
    %v4565 = vsel %vm82, %v4521, 0.0
    %4566 = vadd.xlane.f32.xlu0 %v4565
    %v4567 = vpop.xlane.xlu0 %4566
    %v4568 = vsel %vm82, %v4522, 0.0
    %4569 = vadd.xlane.f32.xlu0 %v4568
    %v4570 = vpop.xlane.xlu0 %4569
    %v4571 = vadd.f32 %v4525, %v4528
    %v4572 = vadd.f32 %v4571, %v4531
    %v4573 = vadd.f32 %v4572, %v4534
    %v4574 = vadd.f32 %v4573, %v4537
    %v4575 = vadd.f32 %v4574, %v4540
    %v4576 = vadd.f32 %v4575, %v4543
    %v4577 = vadd.f32 %v4576, %v4546
    %v4578 = vadd.f32 %v4577, %v4549
    %v4579 = vadd.f32 %v4578, %v4552
    %v4580 = vadd.f32 %v4579, %v4555
    %v4581 = vadd.f32 %v4580, %v4558
    %v4582 = vadd.f32 %v4581, %v4561
    %v4583 = vadd.f32 %v4582, %v4564
    %v4584 = vadd.f32 %v4583, %v4567
    %v4585 = vadd.f32 %v4584, %v4570
    %v4586 = vrot.slane %v4585, 4
    %v4587 = vadd.f32 %v4585, %v4586
    %v4588 = vrot.slane %v4587, 2
    %v4589 = vadd.f32 %v4587, %v4588
    %v4590 = vrot.slane %v4589, 1
    %v4591 = vadd.f32 %v4589, %v4590
    %vm4592 = vcmp.eq.s32.totalorder %v293, 7
    %v4593 = vsel %vm4592, %v4591, 0.0
    %v4594 = vadd.f32 %v4489, %v4593
    %s4595 = scalar_lea.vmem %s12, 1024
    %v4596 = vld [vmem:[%s4595] sm:$0xff]
    %v4597 = vld [vmem:[%s4595 + $0x8] sm:$0xff]
    %v4598 = vld [vmem:[%s4595 + $0x10] sm:$0xff]
    %v4599 = vld [vmem:[%s4595 + $0x18] sm:$0xff]
    %v4600 = vld [vmem:[%s4595 + $0x20] sm:$0xff]
    %v4601 = vld [vmem:[%s4595 + $0x28] sm:$0xff]
    %v4602 = vld [vmem:[%s4595 + $0x30] sm:$0xff]
    %v4603 = vld [vmem:[%s4595 + $0x38] sm:$0xff]
    %v4604 = vld [vmem:[%s4595 + $0x40] sm:$0xff]
    %v4605 = vld [vmem:[%s4595 + $0x48] sm:$0xff]
    %v4606 = vld [vmem:[%s4595 + $0x50] sm:$0xff]
    %v4607 = vld [vmem:[%s4595 + $0x58] sm:$0xff]
    %v4608 = vld [vmem:[%s4595 + $0x60] sm:$0xff]
    %v4609 = vld [vmem:[%s4595 + $0x68] sm:$0xff]
    %v4610 = vld [vmem:[%s4595 + $0x70] sm:$0xff]
    %v4611 = vld [vmem:[%s4595 + $0x78] sm:$0xff]
    %v4612 = vmul.f32 %v3739, %v4596
    %v4613 = vmul.f32 %v3740, %v4597
    %v4614 = vmul.f32 %v3741, %v4598
    %v4615 = vmul.f32 %v3742, %v4599
    %v4616 = vmul.f32 %v3743, %v4600
    %v4617 = vmul.f32 %v3744, %v4601
    %v4618 = vmul.f32 %v3745, %v4602
    %v4619 = vmul.f32 %v3746, %v4603
    %v4620 = vmul.f32 %v3747, %v4604
    %v4621 = vmul.f32 %v3748, %v4605
    %v4622 = vmul.f32 %v3749, %v4606
    %v4623 = vmul.f32 %v3750, %v4607
    %v4624 = vmul.f32 %v3751, %v4608
    %v4625 = vmul.f32 %v3752, %v4609
    %v4626 = vmul.f32 %v3753, %v4610
    %v4627 = vmul.f32 %v3754, %v4611
    %v4628 = vsel %vm82, %v4612, 0.0
    %4629 = vadd.xlane.f32.xlu0 %v4628
    %v4630 = vpop.xlane.xlu0 %4629
    %v4631 = vsel %vm82, %v4613, 0.0
    %4632 = vadd.xlane.f32.xlu0 %v4631
    %v4633 = vpop.xlane.xlu0 %4632
    %v4634 = vsel %vm82, %v4614, 0.0
    %4635 = vadd.xlane.f32.xlu0 %v4634
    %v4636 = vpop.xlane.xlu0 %4635
    %v4637 = vsel %vm82, %v4615, 0.0
    %4638 = vadd.xlane.f32.xlu0 %v4637
    %v4639 = vpop.xlane.xlu0 %4638
    %v4640 = vsel %vm82, %v4616, 0.0
    %4641 = vadd.xlane.f32.xlu0 %v4640
    %v4642 = vpop.xlane.xlu0 %4641
    %v4643 = vsel %vm82, %v4617, 0.0
    %4644 = vadd.xlane.f32.xlu0 %v4643
    %v4645 = vpop.xlane.xlu0 %4644
    %v4646 = vsel %vm82, %v4618, 0.0
    %4647 = vadd.xlane.f32.xlu0 %v4646
    %v4648 = vpop.xlane.xlu0 %4647
    %v4649 = vsel %vm82, %v4619, 0.0
    %4650 = vadd.xlane.f32.xlu0 %v4649
    %v4651 = vpop.xlane.xlu0 %4650
    %v4652 = vsel %vm82, %v4620, 0.0
    %4653 = vadd.xlane.f32.xlu0 %v4652
    %v4654 = vpop.xlane.xlu0 %4653
    %v4655 = vsel %vm82, %v4621, 0.0
    %4656 = vadd.xlane.f32.xlu0 %v4655
    %v4657 = vpop.xlane.xlu0 %4656
    %v4658 = vsel %vm82, %v4622, 0.0
    %4659 = vadd.xlane.f32.xlu0 %v4658
    %v4660 = vpop.xlane.xlu0 %4659
    %v4661 = vsel %vm82, %v4623, 0.0
    %4662 = vadd.xlane.f32.xlu0 %v4661
    %v4663 = vpop.xlane.xlu0 %4662
    %v4664 = vsel %vm82, %v4624, 0.0
    %4665 = vadd.xlane.f32.xlu0 %v4664
    %v4666 = vpop.xlane.xlu0 %4665
    %v4667 = vsel %vm82, %v4625, 0.0
    %4668 = vadd.xlane.f32.xlu0 %v4667
    %v4669 = vpop.xlane.xlu0 %4668
    %v4670 = vsel %vm82, %v4626, 0.0
    %4671 = vadd.xlane.f32.xlu0 %v4670
    %v4672 = vpop.xlane.xlu0 %4671
    %v4673 = vsel %vm82, %v4627, 0.0
    %4674 = vadd.xlane.f32.xlu0 %v4673
    %v4675 = vpop.xlane.xlu0 %4674
    %v4676 = vadd.f32 %v4630, %v4633
    %v4677 = vadd.f32 %v4676, %v4636
    %v4678 = vadd.f32 %v4677, %v4639
    %v4679 = vadd.f32 %v4678, %v4642
    %v4680 = vadd.f32 %v4679, %v4645
    %v4681 = vadd.f32 %v4680, %v4648
    %v4682 = vadd.f32 %v4681, %v4651
    %v4683 = vadd.f32 %v4682, %v4654
    %v4684 = vadd.f32 %v4683, %v4657
    %v4685 = vadd.f32 %v4684, %v4660
    %v4686 = vadd.f32 %v4685, %v4663
    %v4687 = vadd.f32 %v4686, %v4666
    %v4688 = vadd.f32 %v4687, %v4669
    %v4689 = vadd.f32 %v4688, %v4672
    %v4690 = vadd.f32 %v4689, %v4675
    %v4691 = vrot.slane %v4690, 4
    %v4692 = vadd.f32 %v4690, %v4691
    %v4693 = vrot.slane %v4692, 2
    %v4694 = vadd.f32 %v4692, %v4693
    %v4695 = vrot.slane %v4694, 1
    %v4696 = vadd.f32 %v4694, %v4695
    %vm4697 = vcmp.eq.s32.totalorder %v293, 8
    %v4698 = vsel %vm4697, %v4696, 0.0
    %v4699 = vadd.f32 %v4594, %v4698
    %s4700 = scalar_lea.vmem %s12, 1152
    %v4701 = vld [vmem:[%s4700] sm:$0xff]
    %v4702 = vld [vmem:[%s4700 + $0x8] sm:$0xff]
    %v4703 = vld [vmem:[%s4700 + $0x10] sm:$0xff]
    %v4704 = vld [vmem:[%s4700 + $0x18] sm:$0xff]
    %v4705 = vld [vmem:[%s4700 + $0x20] sm:$0xff]
    %v4706 = vld [vmem:[%s4700 + $0x28] sm:$0xff]
    %v4707 = vld [vmem:[%s4700 + $0x30] sm:$0xff]
    %v4708 = vld [vmem:[%s4700 + $0x38] sm:$0xff]
    %v4709 = vld [vmem:[%s4700 + $0x40] sm:$0xff]
    %v4710 = vld [vmem:[%s4700 + $0x48] sm:$0xff]
    %v4711 = vld [vmem:[%s4700 + $0x50] sm:$0xff]
    %v4712 = vld [vmem:[%s4700 + $0x58] sm:$0xff]
    %v4713 = vld [vmem:[%s4700 + $0x60] sm:$0xff]
    %v4714 = vld [vmem:[%s4700 + $0x68] sm:$0xff]
    %v4715 = vld [vmem:[%s4700 + $0x70] sm:$0xff]
    %v4716 = vld [vmem:[%s4700 + $0x78] sm:$0xff]
    %v4717 = vmul.f32 %v3739, %v4701
    %v4718 = vmul.f32 %v3740, %v4702
    %v4719 = vmul.f32 %v3741, %v4703
    %v4720 = vmul.f32 %v3742, %v4704
    %v4721 = vmul.f32 %v3743, %v4705
    %v4722 = vmul.f32 %v3744, %v4706
    %v4723 = vmul.f32 %v3745, %v4707
    %v4724 = vmul.f32 %v3746, %v4708
    %v4725 = vmul.f32 %v3747, %v4709
    %v4726 = vmul.f32 %v3748, %v4710
    %v4727 = vmul.f32 %v3749, %v4711
    %v4728 = vmul.f32 %v3750, %v4712
    %v4729 = vmul.f32 %v3751, %v4713
    %v4730 = vmul.f32 %v3752, %v4714
    %v4731 = vmul.f32 %v3753, %v4715
    %v4732 = vmul.f32 %v3754, %v4716
    %v4733 = vsel %vm82, %v4717, 0.0
    %4734 = vadd.xlane.f32.xlu0 %v4733
    %v4735 = vpop.xlane.xlu0 %4734
    %v4736 = vsel %vm82, %v4718, 0.0
    %4737 = vadd.xlane.f32.xlu0 %v4736
    %v4738 = vpop.xlane.xlu0 %4737
    %v4739 = vsel %vm82, %v4719, 0.0
    %4740 = vadd.xlane.f32.xlu0 %v4739
    %v4741 = vpop.xlane.xlu0 %4740
    %v4742 = vsel %vm82, %v4720, 0.0
    %4743 = vadd.xlane.f32.xlu0 %v4742
    %v4744 = vpop.xlane.xlu0 %4743
    %v4745 = vsel %vm82, %v4721, 0.0
    %4746 = vadd.xlane.f32.xlu0 %v4745
    %v4747 = vpop.xlane.xlu0 %4746
    %v4748 = vsel %vm82, %v4722, 0.0
    %4749 = vadd.xlane.f32.xlu0 %v4748
    %v4750 = vpop.xlane.xlu0 %4749
    %v4751 = vsel %vm82, %v4723, 0.0
    %4752 = vadd.xlane.f32.xlu0 %v4751
    %v4753 = vpop.xlane.xlu0 %4752
    %v4754 = vsel %vm82, %v4724, 0.0
    %4755 = vadd.xlane.f32.xlu0 %v4754
    %v4756 = vpop.xlane.xlu0 %4755
    %v4757 = vsel %vm82, %v4725, 0.0
    %4758 = vadd.xlane.f32.xlu0 %v4757
    %v4759 = vpop.xlane.xlu0 %4758
    %v4760 = vsel %vm82, %v4726, 0.0
    %4761 = vadd.xlane.f32.xlu0 %v4760
    %v4762 = vpop.xlane.xlu0 %4761
    %v4763 = vsel %vm82, %v4727, 0.0
    %4764 = vadd.xlane.f32.xlu0 %v4763
    %v4765 = vpop.xlane.xlu0 %4764
    %v4766 = vsel %vm82, %v4728, 0.0
    %4767 = vadd.xlane.f32.xlu0 %v4766
    %v4768 = vpop.xlane.xlu0 %4767
    %v4769 = vsel %vm82, %v4729, 0.0
    %4770 = vadd.xlane.f32.xlu0 %v4769
    %v4771 = vpop.xlane.xlu0 %4770
    %v4772 = vsel %vm82, %v4730, 0.0
    %4773 = vadd.xlane.f32.xlu0 %v4772
    %v4774 = vpop.xlane.xlu0 %4773
    %v4775 = vsel %vm82, %v4731, 0.0
    %4776 = vadd.xlane.f32.xlu0 %v4775
    %v4777 = vpop.xlane.xlu0 %4776
    %v4778 = vsel %vm82, %v4732, 0.0
    %4779 = vadd.xlane.f32.xlu0 %v4778
    %v4780 = vpop.xlane.xlu0 %4779
    %v4781 = vadd.f32 %v4735, %v4738
    %v4782 = vadd.f32 %v4781, %v4741
    %v4783 = vadd.f32 %v4782, %v4744
    %v4784 = vadd.f32 %v4783, %v4747
    %v4785 = vadd.f32 %v4784, %v4750
    %v4786 = vadd.f32 %v4785, %v4753
    %v4787 = vadd.f32 %v4786, %v4756
    %v4788 = vadd.f32 %v4787, %v4759
    %v4789 = vadd.f32 %v4788, %v4762
    %v4790 = vadd.f32 %v4789, %v4765
    %v4791 = vadd.f32 %v4790, %v4768
    %v4792 = vadd.f32 %v4791, %v4771
    %v4793 = vadd.f32 %v4792, %v4774
    %v4794 = vadd.f32 %v4793, %v4777
    %v4795 = vadd.f32 %v4794, %v4780
    %v4796 = vrot.slane %v4795, 4
    %v4797 = vadd.f32 %v4795, %v4796
    %v4798 = vrot.slane %v4797, 2
    %v4799 = vadd.f32 %v4797, %v4798
    %v4800 = vrot.slane %v4799, 1
    %v4801 = vadd.f32 %v4799, %v4800
    %vm4802 = vcmp.eq.s32.totalorder %v293, 9
    %v4803 = vsel %vm4802, %v4801, 0.0
    %v4804 = vadd.f32 %v4699, %v4803
    %s4805 = scalar_lea.vmem %s12, 1280
    %v4806 = vld [vmem:[%s4805] sm:$0xff]
    %v4807 = vld [vmem:[%s4805 + $0x8] sm:$0xff]
    %v4808 = vld [vmem:[%s4805 + $0x10] sm:$0xff]
    %v4809 = vld [vmem:[%s4805 + $0x18] sm:$0xff]
    %v4810 = vld [vmem:[%s4805 + $0x20] sm:$0xff]
    %v4811 = vld [vmem:[%s4805 + $0x28] sm:$0xff]
    %v4812 = vld [vmem:[%s4805 + $0x30] sm:$0xff]
    %v4813 = vld [vmem:[%s4805 + $0x38] sm:$0xff]
    %v4814 = vld [vmem:[%s4805 + $0x40] sm:$0xff]
    %v4815 = vld [vmem:[%s4805 + $0x48] sm:$0xff]
    %v4816 = vld [vmem:[%s4805 + $0x50] sm:$0xff]
    %v4817 = vld [vmem:[%s4805 + $0x58] sm:$0xff]
    %v4818 = vld [vmem:[%s4805 + $0x60] sm:$0xff]
    %v4819 = vld [vmem:[%s4805 + $0x68] sm:$0xff]
    %v4820 = vld [vmem:[%s4805 + $0x70] sm:$0xff]
    %v4821 = vld [vmem:[%s4805 + $0x78] sm:$0xff]
    %v4822 = vmul.f32 %v3739, %v4806
    %v4823 = vmul.f32 %v3740, %v4807
    %v4824 = vmul.f32 %v3741, %v4808
    %v4825 = vmul.f32 %v3742, %v4809
    %v4826 = vmul.f32 %v3743, %v4810
    %v4827 = vmul.f32 %v3744, %v4811
    %v4828 = vmul.f32 %v3745, %v4812
    %v4829 = vmul.f32 %v3746, %v4813
    %v4830 = vmul.f32 %v3747, %v4814
    %v4831 = vmul.f32 %v3748, %v4815
    %v4832 = vmul.f32 %v3749, %v4816
    %v4833 = vmul.f32 %v3750, %v4817
    %v4834 = vmul.f32 %v3751, %v4818
    %v4835 = vmul.f32 %v3752, %v4819
    %v4836 = vmul.f32 %v3753, %v4820
    %v4837 = vmul.f32 %v3754, %v4821
    %v4838 = vsel %vm82, %v4822, 0.0
    %4839 = vadd.xlane.f32.xlu0 %v4838
    %v4840 = vpop.xlane.xlu0 %4839
    %v4841 = vsel %vm82, %v4823, 0.0
    %4842 = vadd.xlane.f32.xlu0 %v4841
    %v4843 = vpop.xlane.xlu0 %4842
    %v4844 = vsel %vm82, %v4824, 0.0
    %4845 = vadd.xlane.f32.xlu0 %v4844
    %v4846 = vpop.xlane.xlu0 %4845
    %v4847 = vsel %vm82, %v4825, 0.0
    %4848 = vadd.xlane.f32.xlu0 %v4847
    %v4849 = vpop.xlane.xlu0 %4848
    %v4850 = vsel %vm82, %v4826, 0.0
    %4851 = vadd.xlane.f32.xlu0 %v4850
    %v4852 = vpop.xlane.xlu0 %4851
    %v4853 = vsel %vm82, %v4827, 0.0
    %4854 = vadd.xlane.f32.xlu0 %v4853
    %v4855 = vpop.xlane.xlu0 %4854
    %v4856 = vsel %vm82, %v4828, 0.0
    %4857 = vadd.xlane.f32.xlu0 %v4856
    %v4858 = vpop.xlane.xlu0 %4857
    %v4859 = vsel %vm82, %v4829, 0.0
    %4860 = vadd.xlane.f32.xlu0 %v4859
    %v4861 = vpop.xlane.xlu0 %4860
    %v4862 = vsel %vm82, %v4830, 0.0
    %4863 = vadd.xlane.f32.xlu0 %v4862
    %v4864 = vpop.xlane.xlu0 %4863
    %v4865 = vsel %vm82, %v4831, 0.0
    %4866 = vadd.xlane.f32.xlu0 %v4865
    %v4867 = vpop.xlane.xlu0 %4866
    %v4868 = vsel %vm82, %v4832, 0.0
    %4869 = vadd.xlane.f32.xlu0 %v4868
    %v4870 = vpop.xlane.xlu0 %4869
    %v4871 = vsel %vm82, %v4833, 0.0
    %4872 = vadd.xlane.f32.xlu0 %v4871
    %v4873 = vpop.xlane.xlu0 %4872
    %v4874 = vsel %vm82, %v4834, 0.0
    %4875 = vadd.xlane.f32.xlu0 %v4874
    %v4876 = vpop.xlane.xlu0 %4875
    %v4877 = vsel %vm82, %v4835, 0.0
    %4878 = vadd.xlane.f32.xlu0 %v4877
    %v4879 = vpop.xlane.xlu0 %4878
    %v4880 = vsel %vm82, %v4836, 0.0
    %4881 = vadd.xlane.f32.xlu0 %v4880
    %v4882 = vpop.xlane.xlu0 %4881
    %v4883 = vsel %vm82, %v4837, 0.0
    %4884 = vadd.xlane.f32.xlu0 %v4883
    %v4885 = vpop.xlane.xlu0 %4884
    %v4886 = vadd.f32 %v4840, %v4843
    %v4887 = vadd.f32 %v4886, %v4846
    %v4888 = vadd.f32 %v4887, %v4849
    %v4889 = vadd.f32 %v4888, %v4852
    %v4890 = vadd.f32 %v4889, %v4855
    %v4891 = vadd.f32 %v4890, %v4858
    %v4892 = vadd.f32 %v4891, %v4861
    %v4893 = vadd.f32 %v4892, %v4864
    %v4894 = vadd.f32 %v4893, %v4867
    %v4895 = vadd.f32 %v4894, %v4870
    %v4896 = vadd.f32 %v4895, %v4873
    %v4897 = vadd.f32 %v4896, %v4876
    %v4898 = vadd.f32 %v4897, %v4879
    %v4899 = vadd.f32 %v4898, %v4882
    %v4900 = vadd.f32 %v4899, %v4885
    %v4901 = vrot.slane %v4900, 4
    %v4902 = vadd.f32 %v4900, %v4901
    %v4903 = vrot.slane %v4902, 2
    %v4904 = vadd.f32 %v4902, %v4903
    %v4905 = vrot.slane %v4904, 1
    %v4906 = vadd.f32 %v4904, %v4905
    %vm4907 = vcmp.eq.s32.totalorder %v293, 10
    %v4908 = vsel %vm4907, %v4906, 0.0
    %v4909 = vadd.f32 %v4804, %v4908
    %s4910 = scalar_lea.vmem %s12, 1408
    %v4911 = vld [vmem:[%s4910] sm:$0xff]
    %v4912 = vld [vmem:[%s4910 + $0x8] sm:$0xff]
    %v4913 = vld [vmem:[%s4910 + $0x10] sm:$0xff]
    %v4914 = vld [vmem:[%s4910 + $0x18] sm:$0xff]
    %v4915 = vld [vmem:[%s4910 + $0x20] sm:$0xff]
    %v4916 = vld [vmem:[%s4910 + $0x28] sm:$0xff]
    %v4917 = vld [vmem:[%s4910 + $0x30] sm:$0xff]
    %v4918 = vld [vmem:[%s4910 + $0x38] sm:$0xff]
    %v4919 = vld [vmem:[%s4910 + $0x40] sm:$0xff]
    %v4920 = vld [vmem:[%s4910 + $0x48] sm:$0xff]
    %v4921 = vld [vmem:[%s4910 + $0x50] sm:$0xff]
    %v4922 = vld [vmem:[%s4910 + $0x58] sm:$0xff]
    %v4923 = vld [vmem:[%s4910 + $0x60] sm:$0xff]
    %v4924 = vld [vmem:[%s4910 + $0x68] sm:$0xff]
    %v4925 = vld [vmem:[%s4910 + $0x70] sm:$0xff]
    %v4926 = vld [vmem:[%s4910 + $0x78] sm:$0xff]
    %v4927 = vmul.f32 %v3739, %v4911
    %v4928 = vmul.f32 %v3740, %v4912
    %v4929 = vmul.f32 %v3741, %v4913
    %v4930 = vmul.f32 %v3742, %v4914
    %v4931 = vmul.f32 %v3743, %v4915
    %v4932 = vmul.f32 %v3744, %v4916
    %v4933 = vmul.f32 %v3745, %v4917
    %v4934 = vmul.f32 %v3746, %v4918
    %v4935 = vmul.f32 %v3747, %v4919
    %v4936 = vmul.f32 %v3748, %v4920
    %v4937 = vmul.f32 %v3749, %v4921
    %v4938 = vmul.f32 %v3750, %v4922
    %v4939 = vmul.f32 %v3751, %v4923
    %v4940 = vmul.f32 %v3752, %v4924
    %v4941 = vmul.f32 %v3753, %v4925
    %v4942 = vmul.f32 %v3754, %v4926
    %v4943 = vsel %vm82, %v4927, 0.0
    %4944 = vadd.xlane.f32.xlu0 %v4943
    %v4945 = vpop.xlane.xlu0 %4944
    %v4946 = vsel %vm82, %v4928, 0.0
    %4947 = vadd.xlane.f32.xlu0 %v4946
    %v4948 = vpop.xlane.xlu0 %4947
    %v4949 = vsel %vm82, %v4929, 0.0
    %4950 = vadd.xlane.f32.xlu0 %v4949
    %v4951 = vpop.xlane.xlu0 %4950
    %v4952 = vsel %vm82, %v4930, 0.0
    %4953 = vadd.xlane.f32.xlu0 %v4952
    %v4954 = vpop.xlane.xlu0 %4953
    %v4955 = vsel %vm82, %v4931, 0.0
    %4956 = vadd.xlane.f32.xlu0 %v4955
    %v4957 = vpop.xlane.xlu0 %4956
    %v4958 = vsel %vm82, %v4932, 0.0
    %4959 = vadd.xlane.f32.xlu0 %v4958
    %v4960 = vpop.xlane.xlu0 %4959
    %v4961 = vsel %vm82, %v4933, 0.0
    %4962 = vadd.xlane.f32.xlu0 %v4961
    %v4963 = vpop.xlane.xlu0 %4962
    %v4964 = vsel %vm82, %v4934, 0.0
    %4965 = vadd.xlane.f32.xlu0 %v4964
    %v4966 = vpop.xlane.xlu0 %4965
    %v4967 = vsel %vm82, %v4935, 0.0
    %4968 = vadd.xlane.f32.xlu0 %v4967
    %v4969 = vpop.xlane.xlu0 %4968
    %v4970 = vsel %vm82, %v4936, 0.0
    %4971 = vadd.xlane.f32.xlu0 %v4970
    %v4972 = vpop.xlane.xlu0 %4971
    %v4973 = vsel %vm82, %v4937, 0.0
    %4974 = vadd.xlane.f32.xlu0 %v4973
    %v4975 = vpop.xlane.xlu0 %4974
    %v4976 = vsel %vm82, %v4938, 0.0
    %4977 = vadd.xlane.f32.xlu0 %v4976
    %v4978 = vpop.xlane.xlu0 %4977
    %v4979 = vsel %vm82, %v4939, 0.0
    %4980 = vadd.xlane.f32.xlu0 %v4979
    %v4981 = vpop.xlane.xlu0 %4980
    %v4982 = vsel %vm82, %v4940, 0.0
    %4983 = vadd.xlane.f32.xlu0 %v4982
    %v4984 = vpop.xlane.xlu0 %4983
    %v4985 = vsel %vm82, %v4941, 0.0
    %4986 = vadd.xlane.f32.xlu0 %v4985
    %v4987 = vpop.xlane.xlu0 %4986
    %v4988 = vsel %vm82, %v4942, 0.0
    %4989 = vadd.xlane.f32.xlu0 %v4988
    %v4990 = vpop.xlane.xlu0 %4989
    %v4991 = vadd.f32 %v4945, %v4948
    %v4992 = vadd.f32 %v4991, %v4951
    %v4993 = vadd.f32 %v4992, %v4954
    %v4994 = vadd.f32 %v4993, %v4957
    %v4995 = vadd.f32 %v4994, %v4960
    %v4996 = vadd.f32 %v4995, %v4963
    %v4997 = vadd.f32 %v4996, %v4966
    %v4998 = vadd.f32 %v4997, %v4969
    %v4999 = vadd.f32 %v4998, %v4972
    %v5000 = vadd.f32 %v4999, %v4975
    %v5001 = vadd.f32 %v5000, %v4978
    %v5002 = vadd.f32 %v5001, %v4981
    %v5003 = vadd.f32 %v5002, %v4984
    %v5004 = vadd.f32 %v5003, %v4987
    %v5005 = vadd.f32 %v5004, %v4990
    %v5006 = vrot.slane %v5005, 4
    %v5007 = vadd.f32 %v5005, %v5006
    %v5008 = vrot.slane %v5007, 2
    %v5009 = vadd.f32 %v5007, %v5008
    %v5010 = vrot.slane %v5009, 1
    %v5011 = vadd.f32 %v5009, %v5010
    %vm5012 = vcmp.eq.s32.totalorder %v293, 11
    %v5013 = vsel %vm5012, %v5011, 0.0
    %v5014 = vadd.f32 %v4909, %v5013
    %s5015 = scalar_lea.vmem %s12, 1536
    %v5016 = vld [vmem:[%s5015] sm:$0xff]
    %v5017 = vld [vmem:[%s5015 + $0x8] sm:$0xff]
    %v5018 = vld [vmem:[%s5015 + $0x10] sm:$0xff]
    %v5019 = vld [vmem:[%s5015 + $0x18] sm:$0xff]
    %v5020 = vld [vmem:[%s5015 + $0x20] sm:$0xff]
    %v5021 = vld [vmem:[%s5015 + $0x28] sm:$0xff]
    %v5022 = vld [vmem:[%s5015 + $0x30] sm:$0xff]
    %v5023 = vld [vmem:[%s5015 + $0x38] sm:$0xff]
    %v5024 = vld [vmem:[%s5015 + $0x40] sm:$0xff]
    %v5025 = vld [vmem:[%s5015 + $0x48] sm:$0xff]
    %v5026 = vld [vmem:[%s5015 + $0x50] sm:$0xff]
    %v5027 = vld [vmem:[%s5015 + $0x58] sm:$0xff]
    %v5028 = vld [vmem:[%s5015 + $0x60] sm:$0xff]
    %v5029 = vld [vmem:[%s5015 + $0x68] sm:$0xff]
    %v5030 = vld [vmem:[%s5015 + $0x70] sm:$0xff]
    %v5031 = vld [vmem:[%s5015 + $0x78] sm:$0xff]
    %v5032 = vmul.f32 %v3739, %v5016
    %v5033 = vmul.f32 %v3740, %v5017
    %v5034 = vmul.f32 %v3741, %v5018
    %v5035 = vmul.f32 %v3742, %v5019
    %v5036 = vmul.f32 %v3743, %v5020
    %v5037 = vmul.f32 %v3744, %v5021
    %v5038 = vmul.f32 %v3745, %v5022
    %v5039 = vmul.f32 %v3746, %v5023
    %v5040 = vmul.f32 %v3747, %v5024
    %v5041 = vmul.f32 %v3748, %v5025
    %v5042 = vmul.f32 %v3749, %v5026
    %v5043 = vmul.f32 %v3750, %v5027
    %v5044 = vmul.f32 %v3751, %v5028
    %v5045 = vmul.f32 %v3752, %v5029
    %v5046 = vmul.f32 %v3753, %v5030
    %v5047 = vmul.f32 %v3754, %v5031
    %v5048 = vsel %vm82, %v5032, 0.0
    %5049 = vadd.xlane.f32.xlu0 %v5048
    %v5050 = vpop.xlane.xlu0 %5049
    %v5051 = vsel %vm82, %v5033, 0.0
    %5052 = vadd.xlane.f32.xlu0 %v5051
    %v5053 = vpop.xlane.xlu0 %5052
    %v5054 = vsel %vm82, %v5034, 0.0
    %5055 = vadd.xlane.f32.xlu0 %v5054
    %v5056 = vpop.xlane.xlu0 %5055
    %v5057 = vsel %vm82, %v5035, 0.0
    %5058 = vadd.xlane.f32.xlu0 %v5057
    %v5059 = vpop.xlane.xlu0 %5058
    %v5060 = vsel %vm82, %v5036, 0.0
    %5061 = vadd.xlane.f32.xlu0 %v5060
    %v5062 = vpop.xlane.xlu0 %5061
    %v5063 = vsel %vm82, %v5037, 0.0
    %5064 = vadd.xlane.f32.xlu0 %v5063
    %v5065 = vpop.xlane.xlu0 %5064
    %v5066 = vsel %vm82, %v5038, 0.0
    %5067 = vadd.xlane.f32.xlu0 %v5066
    %v5068 = vpop.xlane.xlu0 %5067
    %v5069 = vsel %vm82, %v5039, 0.0
    %5070 = vadd.xlane.f32.xlu0 %v5069
    %v5071 = vpop.xlane.xlu0 %5070
    %v5072 = vsel %vm82, %v5040, 0.0
    %5073 = vadd.xlane.f32.xlu0 %v5072
    %v5074 = vpop.xlane.xlu0 %5073
    %v5075 = vsel %vm82, %v5041, 0.0
    %5076 = vadd.xlane.f32.xlu0 %v5075
    %v5077 = vpop.xlane.xlu0 %5076
    %v5078 = vsel %vm82, %v5042, 0.0
    %5079 = vadd.xlane.f32.xlu0 %v5078
    %v5080 = vpop.xlane.xlu0 %5079
    %v5081 = vsel %vm82, %v5043, 0.0
    %5082 = vadd.xlane.f32.xlu0 %v5081
    %v5083 = vpop.xlane.xlu0 %5082
    %v5084 = vsel %vm82, %v5044, 0.0
    %5085 = vadd.xlane.f32.xlu0 %v5084
    %v5086 = vpop.xlane.xlu0 %5085
    %v5087 = vsel %vm82, %v5045, 0.0
    %5088 = vadd.xlane.f32.xlu0 %v5087
    %v5089 = vpop.xlane.xlu0 %5088
    %v5090 = vsel %vm82, %v5046, 0.0
    %5091 = vadd.xlane.f32.xlu0 %v5090
    %v5092 = vpop.xlane.xlu0 %5091
    %v5093 = vsel %vm82, %v5047, 0.0
    %5094 = vadd.xlane.f32.xlu0 %v5093
    %v5095 = vpop.xlane.xlu0 %5094
    %v5096 = vadd.f32 %v5050, %v5053
    %v5097 = vadd.f32 %v5096, %v5056
    %v5098 = vadd.f32 %v5097, %v5059
    %v5099 = vadd.f32 %v5098, %v5062
    %v5100 = vadd.f32 %v5099, %v5065
    %v5101 = vadd.f32 %v5100, %v5068
    %v5102 = vadd.f32 %v5101, %v5071
    %v5103 = vadd.f32 %v5102, %v5074
    %v5104 = vadd.f32 %v5103, %v5077
    %v5105 = vadd.f32 %v5104, %v5080
    %v5106 = vadd.f32 %v5105, %v5083
    %v5107 = vadd.f32 %v5106, %v5086
    %v5108 = vadd.f32 %v5107, %v5089
    %v5109 = vadd.f32 %v5108, %v5092
    %v5110 = vadd.f32 %v5109, %v5095
    %v5111 = vrot.slane %v5110, 4
    %v5112 = vadd.f32 %v5110, %v5111
    %v5113 = vrot.slane %v5112, 2
    %v5114 = vadd.f32 %v5112, %v5113
    %v5115 = vrot.slane %v5114, 1
    %v5116 = vadd.f32 %v5114, %v5115
    %vm5117 = vcmp.eq.s32.totalorder %v293, 12
    %v5118 = vsel %vm5117, %v5116, 0.0
    %v5119 = vadd.f32 %v5014, %v5118
    %s5120 = scalar_lea.vmem %s12, 1664
    %v5121 = vld [vmem:[%s5120] sm:$0xff]
    %v5122 = vld [vmem:[%s5120 + $0x8] sm:$0xff]
    %v5123 = vld [vmem:[%s5120 + $0x10] sm:$0xff]
    %v5124 = vld [vmem:[%s5120 + $0x18] sm:$0xff]
    %v5125 = vld [vmem:[%s5120 + $0x20] sm:$0xff]
    %v5126 = vld [vmem:[%s5120 + $0x28] sm:$0xff]
    %v5127 = vld [vmem:[%s5120 + $0x30] sm:$0xff]
    %v5128 = vld [vmem:[%s5120 + $0x38] sm:$0xff]
    %v5129 = vld [vmem:[%s5120 + $0x40] sm:$0xff]
    %v5130 = vld [vmem:[%s5120 + $0x48] sm:$0xff]
    %v5131 = vld [vmem:[%s5120 + $0x50] sm:$0xff]
    %v5132 = vld [vmem:[%s5120 + $0x58] sm:$0xff]
    %v5133 = vld [vmem:[%s5120 + $0x60] sm:$0xff]
    %v5134 = vld [vmem:[%s5120 + $0x68] sm:$0xff]
    %v5135 = vld [vmem:[%s5120 + $0x70] sm:$0xff]
    %v5136 = vld [vmem:[%s5120 + $0x78] sm:$0xff]
    %v5137 = vmul.f32 %v3739, %v5121
    %v5138 = vmul.f32 %v3740, %v5122
    %v5139 = vmul.f32 %v3741, %v5123
    %v5140 = vmul.f32 %v3742, %v5124
    %v5141 = vmul.f32 %v3743, %v5125
    %v5142 = vmul.f32 %v3744, %v5126
    %v5143 = vmul.f32 %v3745, %v5127
    %v5144 = vmul.f32 %v3746, %v5128
    %v5145 = vmul.f32 %v3747, %v5129
    %v5146 = vmul.f32 %v3748, %v5130
    %v5147 = vmul.f32 %v3749, %v5131
    %v5148 = vmul.f32 %v3750, %v5132
    %v5149 = vmul.f32 %v3751, %v5133
    %v5150 = vmul.f32 %v3752, %v5134
    %v5151 = vmul.f32 %v3753, %v5135
    %v5152 = vmul.f32 %v3754, %v5136
    %v5153 = vsel %vm82, %v5137, 0.0
    %5154 = vadd.xlane.f32.xlu0 %v5153
    %v5155 = vpop.xlane.xlu0 %5154
    %v5156 = vsel %vm82, %v5138, 0.0
    %5157 = vadd.xlane.f32.xlu0 %v5156
    %v5158 = vpop.xlane.xlu0 %5157
    %v5159 = vsel %vm82, %v5139, 0.0
    %5160 = vadd.xlane.f32.xlu0 %v5159
    %v5161 = vpop.xlane.xlu0 %5160
    %v5162 = vsel %vm82, %v5140, 0.0
    %5163 = vadd.xlane.f32.xlu0 %v5162
    %v5164 = vpop.xlane.xlu0 %5163
    %v5165 = vsel %vm82, %v5141, 0.0
    %5166 = vadd.xlane.f32.xlu0 %v5165
    %v5167 = vpop.xlane.xlu0 %5166
    %v5168 = vsel %vm82, %v5142, 0.0
    %5169 = vadd.xlane.f32.xlu0 %v5168
    %v5170 = vpop.xlane.xlu0 %5169
    %v5171 = vsel %vm82, %v5143, 0.0
    %5172 = vadd.xlane.f32.xlu0 %v5171
    %v5173 = vpop.xlane.xlu0 %5172
    %v5174 = vsel %vm82, %v5144, 0.0
    %5175 = vadd.xlane.f32.xlu0 %v5174
    %v5176 = vpop.xlane.xlu0 %5175
    %v5177 = vsel %vm82, %v5145, 0.0
    %5178 = vadd.xlane.f32.xlu0 %v5177
    %v5179 = vpop.xlane.xlu0 %5178
    %v5180 = vsel %vm82, %v5146, 0.0
    %5181 = vadd.xlane.f32.xlu0 %v5180
    %v5182 = vpop.xlane.xlu0 %5181
    %v5183 = vsel %vm82, %v5147, 0.0
    %5184 = vadd.xlane.f32.xlu0 %v5183
    %v5185 = vpop.xlane.xlu0 %5184
    %v5186 = vsel %vm82, %v5148, 0.0
    %5187 = vadd.xlane.f32.xlu0 %v5186
    %v5188 = vpop.xlane.xlu0 %5187
    %v5189 = vsel %vm82, %v5149, 0.0
    %5190 = vadd.xlane.f32.xlu0 %v5189
    %v5191 = vpop.xlane.xlu0 %5190
    %v5192 = vsel %vm82, %v5150, 0.0
    %5193 = vadd.xlane.f32.xlu0 %v5192
    %v5194 = vpop.xlane.xlu0 %5193
    %v5195 = vsel %vm82, %v5151, 0.0
    %5196 = vadd.xlane.f32.xlu0 %v5195
    %v5197 = vpop.xlane.xlu0 %5196
    %v5198 = vsel %vm82, %v5152, 0.0
    %5199 = vadd.xlane.f32.xlu0 %v5198
    %v5200 = vpop.xlane.xlu0 %5199
    %v5201 = vadd.f32 %v5155, %v5158
    %v5202 = vadd.f32 %v5201, %v5161
    %v5203 = vadd.f32 %v5202, %v5164
    %v5204 = vadd.f32 %v5203, %v5167
    %v5205 = vadd.f32 %v5204, %v5170
    %v5206 = vadd.f32 %v5205, %v5173
    %v5207 = vadd.f32 %v5206, %v5176
    %v5208 = vadd.f32 %v5207, %v5179
    %v5209 = vadd.f32 %v5208, %v5182
    %v5210 = vadd.f32 %v5209, %v5185
    %v5211 = vadd.f32 %v5210, %v5188
    %v5212 = vadd.f32 %v5211, %v5191
    %v5213 = vadd.f32 %v5212, %v5194
    %v5214 = vadd.f32 %v5213, %v5197
    %v5215 = vadd.f32 %v5214, %v5200
    %v5216 = vrot.slane %v5215, 4
    %v5217 = vadd.f32 %v5215, %v5216
    %v5218 = vrot.slane %v5217, 2
    %v5219 = vadd.f32 %v5217, %v5218
    %v5220 = vrot.slane %v5219, 1
    %v5221 = vadd.f32 %v5219, %v5220
    %vm5222 = vcmp.eq.s32.totalorder %v293, 13
    %v5223 = vsel %vm5222, %v5221, 0.0
    %v5224 = vadd.f32 %v5119, %v5223
    %s5225 = scalar_lea.vmem %s12, 1792
    %v5226 = vld [vmem:[%s5225] sm:$0xff]
    %v5227 = vld [vmem:[%s5225 + $0x8] sm:$0xff]
    %v5228 = vld [vmem:[%s5225 + $0x10] sm:$0xff]
    %v5229 = vld [vmem:[%s5225 + $0x18] sm:$0xff]
    %v5230 = vld [vmem:[%s5225 + $0x20] sm:$0xff]
    %v5231 = vld [vmem:[%s5225 + $0x28] sm:$0xff]
    %v5232 = vld [vmem:[%s5225 + $0x30] sm:$0xff]
    %v5233 = vld [vmem:[%s5225 + $0x38] sm:$0xff]
    %v5234 = vld [vmem:[%s5225 + $0x40] sm:$0xff]
    %v5235 = vld [vmem:[%s5225 + $0x48] sm:$0xff]
    %v5236 = vld [vmem:[%s5225 + $0x50] sm:$0xff]
    %v5237 = vld [vmem:[%s5225 + $0x58] sm:$0xff]
    %v5238 = vld [vmem:[%s5225 + $0x60] sm:$0xff]
    %v5239 = vld [vmem:[%s5225 + $0x68] sm:$0xff]
    %v5240 = vld [vmem:[%s5225 + $0x70] sm:$0xff]
    %v5241 = vld [vmem:[%s5225 + $0x78] sm:$0xff]
    %v5242 = vmul.f32 %v3739, %v5226
    %v5243 = vmul.f32 %v3740, %v5227
    %v5244 = vmul.f32 %v3741, %v5228
    %v5245 = vmul.f32 %v3742, %v5229
    %v5246 = vmul.f32 %v3743, %v5230
    %v5247 = vmul.f32 %v3744, %v5231
    %v5248 = vmul.f32 %v3745, %v5232
    %v5249 = vmul.f32 %v3746, %v5233
    %v5250 = vmul.f32 %v3747, %v5234
    %v5251 = vmul.f32 %v3748, %v5235
    %v5252 = vmul.f32 %v3749, %v5236
    %v5253 = vmul.f32 %v3750, %v5237
    %v5254 = vmul.f32 %v3751, %v5238
    %v5255 = vmul.f32 %v3752, %v5239
    %v5256 = vmul.f32 %v3753, %v5240
    %v5257 = vmul.f32 %v3754, %v5241
    %v5258 = vsel %vm82, %v5242, 0.0
    %5259 = vadd.xlane.f32.xlu0 %v5258
    %v5260 = vpop.xlane.xlu0 %5259
    %v5261 = vsel %vm82, %v5243, 0.0
    %5262 = vadd.xlane.f32.xlu0 %v5261
    %v5263 = vpop.xlane.xlu0 %5262
    %v5264 = vsel %vm82, %v5244, 0.0
    %5265 = vadd.xlane.f32.xlu0 %v5264
    %v5266 = vpop.xlane.xlu0 %5265
    %v5267 = vsel %vm82, %v5245, 0.0
    %5268 = vadd.xlane.f32.xlu0 %v5267
    %v5269 = vpop.xlane.xlu0 %5268
    %v5270 = vsel %vm82, %v5246, 0.0
    %5271 = vadd.xlane.f32.xlu0 %v5270
    %v5272 = vpop.xlane.xlu0 %5271
    %v5273 = vsel %vm82, %v5247, 0.0
    %5274 = vadd.xlane.f32.xlu0 %v5273
    %v5275 = vpop.xlane.xlu0 %5274
    %v5276 = vsel %vm82, %v5248, 0.0
    %5277 = vadd.xlane.f32.xlu0 %v5276
    %v5278 = vpop.xlane.xlu0 %5277
    %v5279 = vsel %vm82, %v5249, 0.0
    %5280 = vadd.xlane.f32.xlu0 %v5279
    %v5281 = vpop.xlane.xlu0 %5280
    %v5282 = vsel %vm82, %v5250, 0.0
    %5283 = vadd.xlane.f32.xlu0 %v5282
    %v5284 = vpop.xlane.xlu0 %5283
    %v5285 = vsel %vm82, %v5251, 0.0
    %5286 = vadd.xlane.f32.xlu0 %v5285
    %v5287 = vpop.xlane.xlu0 %5286
    %v5288 = vsel %vm82, %v5252, 0.0
    %5289 = vadd.xlane.f32.xlu0 %v5288
    %v5290 = vpop.xlane.xlu0 %5289
    %v5291 = vsel %vm82, %v5253, 0.0
    %5292 = vadd.xlane.f32.xlu0 %v5291
    %v5293 = vpop.xlane.xlu0 %5292
    %v5294 = vsel %vm82, %v5254, 0.0
    %5295 = vadd.xlane.f32.xlu0 %v5294
    %v5296 = vpop.xlane.xlu0 %5295
    %v5297 = vsel %vm82, %v5255, 0.0
    %5298 = vadd.xlane.f32.xlu0 %v5297
    %v5299 = vpop.xlane.xlu0 %5298
    %v5300 = vsel %vm82, %v5256, 0.0
    %5301 = vadd.xlane.f32.xlu0 %v5300
    %v5302 = vpop.xlane.xlu0 %5301
    %v5303 = vsel %vm82, %v5257, 0.0
    %5304 = vadd.xlane.f32.xlu0 %v5303
    %v5305 = vpop.xlane.xlu0 %5304
    %v5306 = vadd.f32 %v5260, %v5263
    %v5307 = vadd.f32 %v5306, %v5266
    %v5308 = vadd.f32 %v5307, %v5269
    %v5309 = vadd.f32 %v5308, %v5272
    %v5310 = vadd.f32 %v5309, %v5275
    %v5311 = vadd.f32 %v5310, %v5278
    %v5312 = vadd.f32 %v5311, %v5281
    %v5313 = vadd.f32 %v5312, %v5284
    %v5314 = vadd.f32 %v5313, %v5287
    %v5315 = vadd.f32 %v5314, %v5290
    %v5316 = vadd.f32 %v5315, %v5293
    %v5317 = vadd.f32 %v5316, %v5296
    %v5318 = vadd.f32 %v5317, %v5299
    %v5319 = vadd.f32 %v5318, %v5302
    %v5320 = vadd.f32 %v5319, %v5305
    %v5321 = vrot.slane %v5320, 4
    %v5322 = vadd.f32 %v5320, %v5321
    %v5323 = vrot.slane %v5322, 2
    %v5324 = vadd.f32 %v5322, %v5323
    %v5325 = vrot.slane %v5324, 1
    %v5326 = vadd.f32 %v5324, %v5325
    %vm5327 = vcmp.eq.s32.totalorder %v293, 14
    %v5328 = vsel %vm5327, %v5326, 0.0
    %v5329 = vadd.f32 %v5224, %v5328
    %s5330 = scalar_lea.vmem %s12, 1920
    %v5331 = vld [vmem:[%s5330] sm:$0xff]
    %v5332 = vld [vmem:[%s5330 + $0x8] sm:$0xff]
    %v5333 = vld [vmem:[%s5330 + $0x10] sm:$0xff]
    %v5334 = vld [vmem:[%s5330 + $0x18] sm:$0xff]
    %v5335 = vld [vmem:[%s5330 + $0x20] sm:$0xff]
    %v5336 = vld [vmem:[%s5330 + $0x28] sm:$0xff]
    %v5337 = vld [vmem:[%s5330 + $0x30] sm:$0xff]
    %v5338 = vld [vmem:[%s5330 + $0x38] sm:$0xff]
    %v5339 = vld [vmem:[%s5330 + $0x40] sm:$0xff]
    %v5340 = vld [vmem:[%s5330 + $0x48] sm:$0xff]
    %v5341 = vld [vmem:[%s5330 + $0x50] sm:$0xff]
    %v5342 = vld [vmem:[%s5330 + $0x58] sm:$0xff]
    %v5343 = vld [vmem:[%s5330 + $0x60] sm:$0xff]
    %v5344 = vld [vmem:[%s5330 + $0x68] sm:$0xff]
    %v5345 = vld [vmem:[%s5330 + $0x70] sm:$0xff]
    %v5346 = vld [vmem:[%s5330 + $0x78] sm:$0xff]
    %v5347 = vmul.f32 %v3739, %v5331
    %v5348 = vmul.f32 %v3740, %v5332
    %v5349 = vmul.f32 %v3741, %v5333
    %v5350 = vmul.f32 %v3742, %v5334
    %v5351 = vmul.f32 %v3743, %v5335
    %v5352 = vmul.f32 %v3744, %v5336
    %v5353 = vmul.f32 %v3745, %v5337
    %v5354 = vmul.f32 %v3746, %v5338
    %v5355 = vmul.f32 %v3747, %v5339
    %v5356 = vmul.f32 %v3748, %v5340
    %v5357 = vmul.f32 %v3749, %v5341
    %v5358 = vmul.f32 %v3750, %v5342
    %v5359 = vmul.f32 %v3751, %v5343
    %v5360 = vmul.f32 %v3752, %v5344
    %v5361 = vmul.f32 %v3753, %v5345
    %v5362 = vmul.f32 %v3754, %v5346
    %v5363 = vsel %vm82, %v5347, 0.0
    %5364 = vadd.xlane.f32.xlu0 %v5363
    %v5365 = vpop.xlane.xlu0 %5364
    %v5366 = vsel %vm82, %v5348, 0.0
    %5367 = vadd.xlane.f32.xlu0 %v5366
    %v5368 = vpop.xlane.xlu0 %5367
    %v5369 = vsel %vm82, %v5349, 0.0
    %5370 = vadd.xlane.f32.xlu0 %v5369
    %v5371 = vpop.xlane.xlu0 %5370
    %v5372 = vsel %vm82, %v5350, 0.0
    %5373 = vadd.xlane.f32.xlu0 %v5372
    %v5374 = vpop.xlane.xlu0 %5373
    %v5375 = vsel %vm82, %v5351, 0.0
    %5376 = vadd.xlane.f32.xlu0 %v5375
    %v5377 = vpop.xlane.xlu0 %5376
    %v5378 = vsel %vm82, %v5352, 0.0
    %5379 = vadd.xlane.f32.xlu0 %v5378
    %v5380 = vpop.xlane.xlu0 %5379
    %v5381 = vsel %vm82, %v5353, 0.0
    %5382 = vadd.xlane.f32.xlu0 %v5381
    %v5383 = vpop.xlane.xlu0 %5382
    %v5384 = vsel %vm82, %v5354, 0.0
    %5385 = vadd.xlane.f32.xlu0 %v5384
    %v5386 = vpop.xlane.xlu0 %5385
    %v5387 = vsel %vm82, %v5355, 0.0
    %5388 = vadd.xlane.f32.xlu0 %v5387
    %v5389 = vpop.xlane.xlu0 %5388
    %v5390 = vsel %vm82, %v5356, 0.0
    %5391 = vadd.xlane.f32.xlu0 %v5390
    %v5392 = vpop.xlane.xlu0 %5391
    %v5393 = vsel %vm82, %v5357, 0.0
    %5394 = vadd.xlane.f32.xlu0 %v5393
    %v5395 = vpop.xlane.xlu0 %5394
    %v5396 = vsel %vm82, %v5358, 0.0
    %5397 = vadd.xlane.f32.xlu0 %v5396
    %v5398 = vpop.xlane.xlu0 %5397
    %v5399 = vsel %vm82, %v5359, 0.0
    %5400 = vadd.xlane.f32.xlu0 %v5399
    %v5401 = vpop.xlane.xlu0 %5400
    %v5402 = vsel %vm82, %v5360, 0.0
    %5403 = vadd.xlane.f32.xlu0 %v5402
    %v5404 = vpop.xlane.xlu0 %5403
    %v5405 = vsel %vm82, %v5361, 0.0
    %5406 = vadd.xlane.f32.xlu0 %v5405
    %v5407 = vpop.xlane.xlu0 %5406
    %v5408 = vsel %vm82, %v5362, 0.0
    %5409 = vadd.xlane.f32.xlu0 %v5408
    %v5410 = vpop.xlane.xlu0 %5409
    %v5411 = vadd.f32 %v5365, %v5368
    %v5412 = vadd.f32 %v5411, %v5371
    %v5413 = vadd.f32 %v5412, %v5374
    %v5414 = vadd.f32 %v5413, %v5377
    %v5415 = vadd.f32 %v5414, %v5380
    %v5416 = vadd.f32 %v5415, %v5383
    %v5417 = vadd.f32 %v5416, %v5386
    %v5418 = vadd.f32 %v5417, %v5389
    %v5419 = vadd.f32 %v5418, %v5392
    %v5420 = vadd.f32 %v5419, %v5395
    %v5421 = vadd.f32 %v5420, %v5398
    %v5422 = vadd.f32 %v5421, %v5401
    %v5423 = vadd.f32 %v5422, %v5404
    %v5424 = vadd.f32 %v5423, %v5407
    %v5425 = vadd.f32 %v5424, %v5410
    %v5426 = vrot.slane %v5425, 4
    %v5427 = vadd.f32 %v5425, %v5426
    %v5428 = vrot.slane %v5427, 2
    %v5429 = vadd.f32 %v5427, %v5428
    %v5430 = vrot.slane %v5429, 1
    %v5431 = vadd.f32 %v5429, %v5430
    %vm5432 = vcmp.eq.s32.totalorder %v293, 15
    %v5433 = vsel %vm5432, %v5431, 0.0
    %v5434 = vadd.f32 %v5329, %v5433
    %vm5435 = vcmask 122880
    %5436 = vst.msk [vmem:[#allocation4] sm:$0x1] %vm5435, %v5434
    %v5437 = vld [vmem:[%s14] sm:$0xff]
    %v5438 = vld [vmem:[%s14 + $0x8] sm:$0xff]
    %v5439 = vld [vmem:[%s15] sm:$0x1]
    %v5441 = vsel %vm82, %v5434, 0
    %5443 = vmatprep.subr.mxu0 0.0
    %5444 = vmatpush1.msra.mxu0 %v5437
    %5445 = vmatprep.subr.mxu0 0.0
    %5446 = vmatpush1.msra.mxu0 %v5438
    %5447 = vmatprep.subr.mxu0 0.0
    %5448 = vmatpush1.msra.mxu0 0.0
    %5449 = vmatprep.subr.mxu0 0.0
    %5450 = vmatpush1.msra.mxu0 0.0
    %5451 = vmatprep.subr.mxu0 0.0
    %5452 = vmatpush1.msra.mxu0 0.0
    %5453 = vmatprep.subr.mxu0 0.0
    %5454 = vmatpush1.msra.mxu0 0.0
    %5455 = vmatprep.subr.mxu0 0.0
    %5456 = vmatpush1.msra.mxu0 0.0
    %5457 = vmatprep.subr.mxu0 0.0
    %5458 = vmatpush1.msra.mxu0 0.0
    %5459 = vmatprep.subr.mxu0 0.0
    %5460 = vmatpush1.msra.mxu0 0.0
    %5461 = vmatprep.subr.mxu0 0.0
    %5462 = vmatpush1.msra.mxu0 0.0
    %5463 = vmatprep.subr.mxu0 0.0
    %5464 = vmatpush1.msra.mxu0 0.0
    %5465 = vmatprep.subr.mxu0 0.0
    %5466 = vmatpush1.msra.mxu0 0.0
    %5467 = vmatprep.subr.mxu0 0.0
    %5468 = vmatpush1.msra.mxu0 0.0
    %5469 = vmatprep.subr.mxu0 0.0
    %5470 = vmatpush1.msra.mxu0 0.0
    %5471 = vmatprep.subr.mxu0 0.0
    %5472 = vmatpush1.msra.mxu0 0.0
    %5473 = vmatprep.subr.mxu0 0.0
    %5474 = vmatpush1.msra.mxu0 0.0
    %5475 = vmatprep.subr.mxu0 0.0
    %5476 = vmatpush1.msra.mxu0 0.0
    %5477 = vmatprep.subr.mxu0 0.0
    %5478 = vmatpush1.msra.mxu0 0.0
    %5479 = vmatprep.subr.mxu0 0.0
    %5480 = vmatpush1.msra.mxu0 0.0
    %5481 = vmatprep.subr.mxu0 0.0
    %5482 = vmatpush1.msra.mxu0 0.0
    %5483 = vmatprep.subr.mxu0 0.0
    %5484 = vmatpush1.msra.mxu0 0.0
    %5485 = vmatprep.subr.mxu0 0.0
    %5486 = vmatpush1.msra.mxu0 0.0
    %5487 = vmatprep.subr.mxu0 0.0
    %5488 = vmatpush1.msra.mxu0 0.0
    %5489 = vmatprep.subr.mxu0 0.0
    %5490 = vmatpush1.msra.mxu0 0.0
    %5491 = vmatprep.subr.mxu0 0.0
    %5492 = vmatpush1.msra.mxu0 0.0
    %5493 = vmatprep.subr.mxu0 0.0
    %5494 = vmatpush1.msra.mxu0 0.0
    %5495 = vmatprep.subr.mxu0 0.0
    %5496 = vmatpush1.msra.mxu0 0.0
    %5497 = vmatprep.subr.mxu0 0.0
    %5498 = vmatpush1.msra.mxu0 0.0
    %5499 = vmatprep.subr.mxu0 0.0
    %5500 = vmatpush1.msra.mxu0 0.0
    %5501 = vmatprep.subr.mxu0 0.0
    %5502 = vmatpush1.msra.mxu0 0.0
    %5503 = vmatprep.subr.mxu0 0.0
    %5504 = vmatpush1.msra.mxu0 0.0
    %5505 = vmatprep.subr.mxu0 0.0
    %5506 = vmatpush1.msra.mxu0 0.0
    %5507 = vmatprep.mubr.f32.mxu0 0.0
    %5508 = vmatmul.mubr.f32.gmra.mrb[0].mxu0 %v5441
    %v5509 = vpop.f32.mrb[0].mxu0
    %v5510 = vadd.f32 %v5439, %v5509
    %v5511 = vpop.f32.mrb[0].mxu0
    %5512 = vdwg.mxu0
    %v5513 = vand.u32 2147483647, %v5510
    %5514 = vst.msk [vmem:[#allocation2] sm:$0x1] %vm5435, %v5513
    // Predicated region
    $region66: #{tpu_custom_call.1} parent=1 // pred_check
      _
    $region67: #{tpu_custom_call.1} parent=1 // pred_check_branch
      %5516 = sbr.rel (0) target = $region69
    $region68: #{tpu_custom_call.1} parent=1 // pred_region
      %s5518 = ssub.s32 16, 16
      %5519 = vsyncadd [#allocation3], %s5518
      %s5521 = sshll.u32 [#allocation2], 4
      %s5522 = int_to_ptr.vmem [resolvable:$true] %s5521
      %5524 = dma.vmem_to_hbm [thread:$0]  %s5522, 16, %s16, [#allocation3]
    $region69: #{tpu_custom_call.1} parent=1 // pred_fallthru
      _
    // Predicated region
    $region70: #{tpu_custom_call.1} parent=1 // pred_check
      _
    $region71: #{tpu_custom_call.1} parent=1 // pred_check_branch
      %5526 = sbr.rel (0) target = $region73
    $region72: #{tpu_custom_call.1} parent=1 // pred_region
      %s5528 = ssub.s32 16, 16
      %5529 = vsyncadd [#allocation5], %s5528
      %s5531 = sshll.u32 [#allocation4], 4
      %s5532 = int_to_ptr.vmem [resolvable:$true] %s5531
      %5534 = dma.vmem_to_hbm [thread:$0]  %s5532, 16, %s17, [#allocation5]
    $region73: #{tpu_custom_call.1} parent=1 // pred_fallthru
      _
    // Predicated region
    $region74: #{tpu_custom_call.1} parent=1 // pred_check
      _
    $region75: #{tpu_custom_call.1} parent=1 // pred_check_branch
      %5536 = sbr.rel (0) target = $region77
    $region76: #{tpu_custom_call.1} parent=1 // pred_region
      %5537 = dma.done [#allocation3], 16
    $region77: #{tpu_custom_call.1} parent=1 // pred_fallthru
      _
    // Predicated region
    $region78: #{tpu_custom_call.1} parent=1 // pred_check
      _
    $region79: #{tpu_custom_call.1} parent=1 // pred_check_branch
      %5539 = sbr.rel (0) target = $region81
    $region80: #{tpu_custom_call.1} parent=1 // pred_region
      %5540 = dma.done [#allocation5], 16
    $region81: #{tpu_custom_call.1} parent=1 // pred_fallthru
      _
    %5541 = vsyncpa [#allocation3], 1
    %5542 = vsyncpa [#allocation5], 1

</llo_original>
